<compile_context>
chip_gen: v5e
topology: v5e:2x2
jax: 0.10.0
libtpu: 0.0.40
codegen_flags: <defaults>
</compile_context>

<pallas_src>
import functools

import jax
import jax.numpy as jnp
import numpy as np
from jax.experimental import pallas as pl
from jax.experimental.pallas import tpu as pltpu

A = 3  # anchors per yolo head (len(mask))


def _ceil_to(x, m):
    return (x + m - 1) // m * m


def _padded_f32_bytes(shape):
    """VMEM footprint of an f32 block: last dim pads to 128 lanes, 2nd-last to 8."""
    s = list(shape)
    s[-1] = _ceil_to(s[-1], 128)
    if len(s) >= 2:
        s[-2] = _ceil_to(s[-2], 8)
    n = 1
    for d in s:
        n *= d
    return n * 4


def _step_vmem_bytes(bt, t, e, nc):
    return (_padded_f32_bytes((bt, A, t, e))     # prediction block
            + _padded_f32_bytes((bt, A, t, 5))   # box/conf block
            + _padded_f32_bytes((bt, A, t, nc))  # classes block
            + _padded_f32_bytes((t, 2))          # grid-cell coords block
            + _padded_f32_bytes((A, 1, 2)))      # anchors


def _choose_tiling(batch, wh, e, nc):
    """Pick (Bt images per grid step, T spatial cells per grid step)."""
    vmem_budget = 8 << 20   # per buffer set (x2 below for double buffering)
    target_step = 1 << 20   # aim for >= ~1 MiB of real HBM traffic per step

    # Spatial tile: a divisor of WH that is a multiple of 8 (sublane dim),
    # or the full plane.
    cands = set()
    k = 1
    while k * k <= wh:
        if wh % k == 0:
            for d in (k, wh // k):
                if d == wh or d % 8 == 0:
                    cands.add(d)
        k += 1
    cands = sorted(cands, reverse=True)
    t = cands[-1]
    for d in cands:
        if _step_vmem_bytes(1, d, e, nc) <= vmem_budget:
            t = d
            break

    # Pack several images per step for tiny heads.
    per_image = 2 * A * t * e * 4
    bt = max(1, min(batch, target_step // max(per_image, 1)))
    while batch % bt:
        bt -= 1
    while bt > 1 and _step_vmem_bytes(bt, t, e, nc) > vmem_budget:
        bt -= 1
        while batch % bt:
            bt -= 1

    # Keep >= 2 grid steps when possible so both v7x TensorCores get work.
    if (batch // bt) * (wh // t) < 2:
        if bt > 1:
            bt2 = batch // 2
            while bt2 > 1 and batch % bt2:
                bt2 -= 1
            bt = max(1, bt2)
        elif t == wh and wh % 2 == 0 and (wh // 2) % 8 == 0:
            t = wh // 2
    return bt, t


def _yolo_decode_kernel(anchors_ref, coords_ref, pred_ref, box_ref, cls_ref):
    """Decode one (Bt images, A anchors, T cells) slab.

    Everything stays in the natural channel-interleaved layout (spatial cells
    on sublanes, the 5+NC entries on lanes), so the raw prediction is read
    from HBM exactly once and no in-kernel relayout is required.

    anchors_ref : (A, 1, 2)       per-anchor (w, h), already divided by stride
    coords_ref  : (T, 2)          per-cell (x, y) grid offsets
    pred_ref    : (Bt, A, T, E)   raw prediction view, E = 5 + num_classes
    box_ref     : (Bt, A, T, 5)   decoded x, y, w, h, conf
    cls_ref     : (Bt, A, T, NC)  decoded class probabilities
    """
    p = pred_ref[...]
    sig = jax.nn.sigmoid(p)  # one EUP pass covers x, y, conf and all classes
    box_ref[:, :, :, 0:2] = sig[:, :, :, 0:2] + coords_ref[...]
    box_ref[:, :, :, 2:4] = jnp.exp(p[:, :, :, 2:4]) * anchors_ref[...]
    box_ref[:, :, :, 4:5] = sig[:, :, :, 4:5]
    cls_ref[...] = sig[:, :, :, 5:]


@functools.partial(jax.jit, static_argnums=(2,))
def yolo_forward(prediction, anchors_layer, num_classes):
    """prediction: (B, C, W, H) float32, C = 3*(5+num_classes).
    anchors_layer: (3, 2) float32, anchors[mask] / stride (grid units).
    Returns (predx, predy, predw, predh, confp, classesp) matching torch shapes.
    """
    B, C, W, H = prediction.shape
    E = 5 + num_classes
    NC = num_classes
    assert C == A * E, (C, A, E)
    WH = W * H

    # torch's prediction.view((B, 3, W, H, -1)) on a contiguous NCHW tensor is,
    # with (W, H) flattened, exactly this *free* (no-copy) reshape.  Note this
    # intentionally reproduces that view's channel/spatial mixing.
    pred4 = prediction.reshape(B, A, WH, E)
    if pred4.dtype != jnp.float32:
        pred4 = pred4.astype(jnp.float32)

    # Grid-cell offsets: cell s = w*H + h -> x offset = s % H, y offset = s // H.
    s = jnp.arange(WH, dtype=jnp.int32)
    coords = jnp.stack(
        [(s % H).astype(jnp.float32), (s // H).astype(jnp.float32)], axis=1)  # (WH, 2)

    anchors = anchors_layer.astype(jnp.float32).reshape(A, 1, 2)

    Bt, T = _choose_tiling(B, WH, E, NC)
    grid = (B // Bt, WH // T)

    out_shapes = (
        jax.ShapeDtypeStruct((B, A, WH, 5), jnp.float32),   # x, y, w, h, conf
        jax.ShapeDtypeStruct((B, A, WH, NC), jnp.float32),  # classes (torch layout)
    )

    grid_spec = pltpu.PrefetchScalarGridSpec(
        num_scalar_prefetch=0,
        grid=grid,
        in_specs=[
            pl.BlockSpec((A, 1, 2), lambda b, t: (0, 0, 0)),
            pl.BlockSpec((T, 2), lambda b, t: (t, 0)),
            pl.BlockSpec((Bt, A, T, E), lambda b, t: (b, 0, t, 0)),
        ],
        out_specs=[
            pl.BlockSpec((Bt, A, T, 5), lambda b, t: (b, 0, t, 0)),
            pl.BlockSpec((Bt, A, T, NC), lambda b, t: (b, 0, t, 0)),
        ],
    )

    # Accurate double-buffered VMEM demand (padded blocks) + a little slack.
    vmem_limit = int(min(max(2 * _step_vmem_bytes(Bt, T, E, NC) + (2 << 20),
                             16 << 20), 96 << 20))

    box5, cls = pl.pallas_call(
        _yolo_decode_kernel,
        out_shape=out_shapes,
        grid_spec=grid_spec,
        compiler_params=pltpu.CompilerParams(
            dimension_semantics=("parallel", "parallel"),
            vmem_limit_bytes=vmem_limit),
    )(anchors, coords, pred4)

    box5 = box5.reshape(B, A, W, H, 5)
    predx = box5[..., 0]
    predy = box5[..., 1]
    predw = box5[..., 2]
    predh = box5[..., 3]
    confp = box5[..., 4]
    classesp = cls.reshape(B, A, W, H, NC)
    return predx, predy, predw, predh, confp, classesp


def reference_forward(prediction, anchors_layer, num_classes):
    """Pure-JAX reference mirroring the torch forward (gt == [])."""
    B, C, W, H = prediction.shape
    E = C // A
    p5 = prediction.reshape(B, A, W, H, E)
    cxp = jax.nn.sigmoid(p5[..., 0])
    cyp = jax.nn.sigmoid(p5[..., 1])
    wp = p5[..., 2]
    hp = p5[..., 3]
    confp = jax.nn.sigmoid(p5[..., 4])
    classesp = jax.nn.sigmoid(p5[..., 5:])
    predx = cxp + jnp.arange(H, dtype=jnp.float32)[None, None, None, :]
    predy = cyp + jnp.arange(W, dtype=jnp.float32)[None, None, :, None]
    predw = jnp.exp(wp) * anchors_layer[None, :, 0, None, None]
    predh = jnp.exp(hp) * anchors_layer[None, :, 1, None, None]
    return predx, predy, predw, predh, confp, classesp


if __name__ == "__main__":
    anchors_np = np.array(
        [[10, 13], [16, 30], [33, 23],
         [30, 61], [62, 45], [59, 119],
         [116, 90], [156, 198], [373, 326]], dtype=np.float32)
    strides_np = np.array([8, 8, 8, 16, 16, 16, 32, 32, 32], dtype=np.float32)
    mask = [0, 1, 2]
    # self.anchors = anchors / strides[:, None]; anchors_g-style masked slice:
    anchors_grid = anchors_np / strides_np[:, None]
    anchors_layer = jnp.asarray(anchors_grid[mask])           # (3, 2)

    def run_case(num_classes, B, W, H):
        C = A * (5 + num_classes)
        key = jax.random.PRNGKey(0)
        prediction = jax.random.normal(key, (B, C, W, H), dtype=jnp.float32)

        outs = yolo_forward(prediction, anchors_layer, num_classes)
        outs = jax.block_until_ready(outs)
        refs = reference_forward(prediction, anchors_layer, num_classes)

        names = ["predx", "predy", "predw", "predh", "confp", "classesp"]
        for name, o, r in zip(names, outs, refs):
            np.testing.assert_allclose(np.asarray(o), np.asarray(r),
                                       rtol=1e-5, atol=1e-5, err_msg=name)

        # The torch forward with empty gt returns (..., 3, 3); replicated here.
        result = (*outs, 3, 3)
        assert result[0].shape == (B, A, W, H)
        assert result[5].shape == (B, A, W, H, num_classes)
        assert result[6] == 3 and result[7] == 3
        return result

    # Primary config matching the module (C = 3*(5+num_classes) = 27).
    run_case(num_classes=4, B=2, W=16, H=16)
    # Second shape to exercise a different grid / class count.
    run_case(num_classes=2, B=3, W=8, H=8)

    print("KERNEL_OK")
</pallas_src>

<mosaic_0001>
module attributes {stable_mosaic.version = 11 : i64} {
  func.func @_yolo_decode_kernel(%arg0: i32, %arg1: i32, %arg2: memref<3x1x2xf32, #tpu.memory_space<vmem>>, %arg3: memref<256x2xf32, #tpu.memory_space<vmem>>, %arg4: memref<1x3x256x9xf32, #tpu.memory_space<vmem>>, %arg5: memref<1x3x256x5xf32, #tpu.memory_space<vmem>>, %arg6: memref<1x3x256x4xf32, #tpu.memory_space<vmem>>) attributes {dimension_semantics = [#tpu.dimension_semantics<parallel>, #tpu.dimension_semantics<parallel>], iteration_bounds = array<i64: 2, 1>, scalar_prefetch = 0 : i64, scratch_operands = 0 : i64, tpu.core_type = #tpu.core_type<tc>, window_params = [{pipeline_mode = #tpu.pipeline_mode<synchronous>, transform_indices = @transform_0, window_bounds = array<i64: 3, 1, 2>}, {transform_indices = @transform_1, window_bounds = array<i64: 256, 2>}, {transform_indices = @transform_2, window_bounds = array<i64: 1, 3, 256, 9>}, {transform_indices = @transform_3, window_bounds = array<i64: 1, 3, 256, 5>}, {transform_indices = @transform_4, window_bounds = array<i64: 1, 3, 256, 4>}]} {
    %c0 = arith.constant 0 : index
    %c0_0 = arith.constant 0 : index
    %c0_1 = arith.constant 0 : index
    %c0_2 = arith.constant 0 : index
    %0 = vector.load %arg4[%c0, %c0_0, %c0_1, %c0_2] : memref<1x3x256x9xf32, #tpu.memory_space<vmem>>, vector<1x3x256x9xf32>
    %1 = arith.negf %0 : vector<1x3x256x9xf32>
    %2 = math.exp %1 : vector<1x3x256x9xf32>
    %cst = arith.constant 1.000000e+00 : f32
    %3 = vector.broadcast %cst : f32 to vector<1x3x256x9xf32>
    %4 = arith.addf %3, %2 : vector<1x3x256x9xf32>
    %5 = arith.divf %3, %4 : vector<1x3x256x9xf32>
    %6 = vector.extract_strided_slice %5 {offsets = [0, 0, 0, 0], sizes = [1, 3, 256, 2], strides = [1, 1, 1, 1]} : vector<1x3x256x9xf32> to vector<1x3x256x2xf32>
    %c0_3 = arith.constant 0 : index
    %c0_4 = arith.constant 0 : index
    %7 = vector.load %arg3[%c0_3, %c0_4] : memref<256x2xf32, #tpu.memory_space<vmem>>, vector<256x2xf32>
    %8 = vector.shape_cast %7 : vector<256x2xf32> to vector<1x1x256x2xf32>
    %9 = vector.broadcast %8 : vector<1x1x256x2xf32> to vector<1x3x256x2xf32>
    %10 = arith.addf %6, %9 : vector<1x3x256x2xf32>
    %c0_5 = arith.constant 0 : index
    %c0_6 = arith.constant 0 : index
    %c0_7 = arith.constant 0 : index
    %c0_8 = arith.constant 0 : index
    %11 = vector.load %arg5[%c0_5, %c0_6, %c0_7, %c0_8] : memref<1x3x256x5xf32, #tpu.memory_space<vmem>>, vector<1x3x256x2xf32>
    tpu.vector_store %arg5[%c0_5, %c0_6, %c0_7, %c0_8], %10 {strides = array<i32>} : memref<1x3x256x5xf32, #tpu.memory_space<vmem>>, vector<1x3x256x2xf32>,
    %12 = vector.extract_strided_slice %0 {offsets = [0, 0, 0, 2], sizes = [1, 3, 256, 2], strides = [1, 1, 1, 1]} : vector<1x3x256x9xf32> to vector<1x3x256x2xf32>
    %13 = math.exp %12 : vector<1x3x256x2xf32>
    %c0_9 = arith.constant 0 : index
    %c0_10 = arith.constant 0 : index
    %c0_11 = arith.constant 0 : index
    %14 = vector.load %arg2[%c0_9, %c0_10, %c0_11] : memref<3x1x2xf32, #tpu.memory_space<vmem>>, vector<3x1x2xf32>
    %15 = vector.shape_cast %14 : vector<3x1x2xf32> to vector<1x3x1x2xf32>
    %16 = vector.broadcast %15 : vector<1x3x1x2xf32> to vector<1x3x256x2xf32>
    %17 = arith.mulf %13, %16 : vector<1x3x256x2xf32>
    %c0_12 = arith.constant 0 : index
    %c0_13 = arith.constant 0 : index
    %c0_14 = arith.constant 0 : index
    %c2 = arith.constant 2 : index
    %18 = vector.load %arg5[%c0_12, %c0_13, %c0_14, %c2] : memref<1x3x256x5xf32, #tpu.memory_space<vmem>>, vector<1x3x256x2xf32>
    tpu.vector_store %arg5[%c0_12, %c0_13, %c0_14, %c2], %17 {strides = array<i32>} : memref<1x3x256x5xf32, #tpu.memory_space<vmem>>, vector<1x3x256x2xf32>,
    %19 = vector.extract_strided_slice %5 {offsets = [0, 0, 0, 4], sizes = [1, 3, 256, 1], strides = [1, 1, 1, 1]} : vector<1x3x256x9xf32> to vector<1x3x256x1xf32>
    %c0_15 = arith.constant 0 : index
    %c0_16 = arith.constant 0 : index
    %c0_17 = arith.constant 0 : index
    %c4 = arith.constant 4 : index
    %20 = vector.load %arg5[%c0_15, %c0_16, %c0_17, %c4] : memref<1x3x256x5xf32, #tpu.memory_space<vmem>>, vector<1x3x256x1xf32>
    tpu.vector_store %arg5[%c0_15, %c0_16, %c0_17, %c4], %19 {strides = array<i32>} : memref<1x3x256x5xf32, #tpu.memory_space<vmem>>, vector<1x3x256x1xf32>,
    %21 = vector.extract_strided_slice %5 {offsets = [0, 0, 0, 5], sizes = [1, 3, 256, 4], strides = [1, 1, 1, 1]} : vector<1x3x256x9xf32> to vector<1x3x256x4xf32>
    %c0_18 = arith.constant 0 : index
    %c0_19 = arith.constant 0 : index
    %c0_20 = arith.constant 0 : index
    %c0_21 = arith.constant 0 : index
    %22 = vector.load %arg6[%c0_18, %c0_19, %c0_20, %c0_21] : memref<1x3x256x4xf32, #tpu.memory_space<vmem>>, vector<1x3x256x4xf32>
    tpu.vector_store %arg6[%c0_18, %c0_19, %c0_20, %c0_21], %21 {strides = array<i32>} : memref<1x3x256x4xf32, #tpu.memory_space<vmem>>, vector<1x3x256x4xf32>,
    return
  }
  func.func @transform_0(%arg0: i32, %arg1: i32) -> (i32, i32, i32) {
    %c0_i32 = arith.constant 0 : i32
    %c0_i32_0 = arith.constant 0 : i32
    %c0_i32_1 = arith.constant 0 : i32
    %c0_i32_2 = arith.constant 0 : i32
    return %c0_i32, %c0_i32_0, %c0_i32_1 : i32, i32, i32
  }
  func.func @transform_1(%arg0: i32, %arg1: i32) -> (i32, i32) {
    %c0_i32 = arith.constant 0 : i32
    %c0_i32_0 = arith.constant 0 : i32
    return %arg1, %c0_i32 : i32, i32
  }
  func.func @transform_2(%arg0: i32, %arg1: i32) -> (i32, i32, i32, i32) {
    %c0_i32 = arith.constant 0 : i32
    %c0_i32_0 = arith.constant 0 : i32
    %c0_i32_1 = arith.constant 0 : i32
    return %arg0, %c0_i32, %arg1, %c0_i32_0 : i32, i32, i32, i32
  }
  func.func @transform_3(%arg0: i32, %arg1: i32) -> (i32, i32, i32, i32) {
    %c0_i32 = arith.constant 0 : i32
    %c0_i32_0 = arith.constant 0 : i32
    %c0_i32_1 = arith.constant 0 : i32
    return %arg0, %c0_i32, %arg1, %c0_i32_0 : i32, i32, i32, i32
  }
  func.func @transform_4(%arg0: i32, %arg1: i32) -> (i32, i32, i32, i32) {
    %c0_i32 = arith.constant 0 : i32
    %c0_i32_0 = arith.constant 0 : i32
    %c0_i32_1 = arith.constant 0 : i32
    return %arg0, %c0_i32, %arg1, %c0_i32_0 : i32, i32, i32, i32
  }
}

</mosaic_0001>

<llo_original>
// kernel: yolo_forward.1
$region0: #{yolo_forward.1}
  #allocation0 [shape = 'u32[]', space=smem, size = 0x4, offset = 0x4, fixed_abs, tag = 'smem constant byte address 0x4 - core index']
  #allocation1 [shape = 'u32[72,128]{1,0:T(1,128)}', space=vmem, size = 0x9000, scoped, tag = 'internal scratch']
  %s0 = inlined_call_operand.vmem [shape: f32[3,1,2], index: 0, kind: input, shape index: {}]
  %s1 = inlined_call_operand.vmem [shape: f32[256,2], index: 1, kind: input, shape index: {}]
  %s2 = inlined_call_operand.vmem [shape: f32[2,3,256,9], index: 2, kind: input, shape index: {}]
  %s3 = inlined_call_operand.vmem [shape: f32[2,3,256,5], index: 3, kind: output, shape index: {0}]
  %s4 = inlined_call_operand.vmem [shape: f32[2,3,256,4], index: 4, kind: output, shape index: {1}]
  %5 = xla_tuple %s3, %s4
  %s6 = sld [smem:[#allocation0]]
  $region53: #{yolo_forward.1} parent=0
    _
  %s8 = ssub.s32 1, %s6
  %s9 = scalar_select 0, %s8, %s6
  loop: start=0, step=1, limit=4
  $region2: #{yolo_forward.1} parent=0 // loop_pre_header
    _
  $region3: #{yolo_forward.1} parent=0 // loop_header
    %s11 = sphi 0, %s15
    %p12 = scmp.ge.s32.totalorder %s11, 4
    %s18 = sphi 0, %s30
    %s19 = sphi 0, %s26
    %s20 = sphi 0, %s18
    %s21 = sphi 0, %s19
    %s22 = sphi 0, %s20
    %s23 = sphi 0, %s21
    %s31 = sphi 0, %s31
    %s33 = sphi 0, %s31
    %s34 = sphi 0, %s33
    %s48 = sphi 0, %s34
    %s54 = sphi 0, %s56
    %s57 = sphi 0, %s54
    %s58 = sphi 0, %s57
    %s74 = sphi 0, %s58
    %s82 = sphi 0, %s84
    %s85 = sphi 0, %s82
    %s86 = sphi 0, %s85
    %s102 = sphi 0, %s86
    %s110 = sphi 0, %s112
    %s113 = sphi 0, %s110
    %s114 = sphi 0, %s113
    %s130 = sphi 0, %s114
    %s138 = sphi 0, %s140
    %s141 = sphi 0, %s138
    %s142 = sphi 0, %s141
    %s158 = sphi 0, %s142
  $region4: #{yolo_forward.1} parent=0 // loop_header_branch
    %14 = sbr.rel (%p12) target = $region8
  $region5: #{yolo_forward.1} parent=0 // loop_body
    %s16 = ssub.s32 %s11, 1
    %s17 = ssub.s32 %s11, 2
    %s24 = sadd.s32 1, %s19
    %p25 = scmp.ge.s32.totalorder %s24, 1
    %s26 = scalar_select %p25, 0, %s24
    %s27 = sadd.s32 1, %s18
    %s28 = scalar_select %p25, %s27, %s18
    %p29 = scmp.ge.s32.totalorder %s28, 2
    %s30 = scalar_select %p29, 0, %s28
    %s32 = sadd.s32 %s31, 1
    %p35 = scmp.eq.s32.totalorder %s11, 1
    %p36 = scmp.ne.s32.totalorder %s31, %s33
    %p37 = scmp.eq.s32.totalorder %s11, 0
    %p38 = por %p36, %p37
    %p39 = scmp.ne.s32.totalorder %s31, %s33
    %p40 = scmp.eq.s32.totalorder %s16, 1
    %p41 = por %p39, %p40
    %p42 = scmp.ne.s32.totalorder %s33, %s34
    %p43 = scmp.eq.s32.totalorder %s16, 0
    %p44 = por %p42, %p43
    %p45 = scmp.ne.s32.totalorder %s33, %s34
    %p46 = scmp.eq.s32.totalorder %s17, 1
    %p47 = por %p45, %p46
    %p49 = scmp.ne.s32.totalorder %s34, %s48
    %p50 = scmp.eq.s32.totalorder %s17, 0
    %p51 = por %p49, %p50
    %s52 = ssub.s32 %s19, %s26
    %p53 = scmp.eq.s32.totalorder %s52, 0
    %s55 = sadd.s32 %s54, 1
    %s56 = scalar_select %p53, %s54, %s55
    %p59 = pneg %p53
    %p60 = scmp.eq.s32.totalorder %s11, 1
    %p61 = por %p59, %p60
    %p62 = scmp.ne.s32.totalorder %s54, %s57
    %p63 = scmp.eq.s32.totalorder %s11, 0
    %p64 = por %p62, %p63
    %p65 = scmp.ne.s32.totalorder %s54, %s57
    %p66 = scmp.eq.s32.totalorder %s16, 1
    %p67 = por %p65, %p66
    %p68 = scmp.ne.s32.totalorder %s57, %s58
    %p69 = scmp.eq.s32.totalorder %s16, 0
    %p70 = por %p68, %p69
    %p71 = scmp.ne.s32.totalorder %s57, %s58
    %p72 = scmp.eq.s32.totalorder %s17, 1
    %p73 = por %p71, %p72
    %p75 = scmp.ne.s32.totalorder %s58, %s74
    %p76 = scmp.eq.s32.totalorder %s17, 0
    %p77 = por %p75, %p76
    %s78 = ssub.s32 %s18, %s30
    %s79 = ssub.s32 %s19, %s26
    %s80 = sor.u32 %s78, %s79
    %p81 = scmp.eq.s32.totalorder %s80, 0
    %s83 = sadd.s32 %s82, 1
    %s84 = scalar_select %p81, %s82, %s83
    %p87 = pneg %p81
    %p88 = scmp.eq.s32.totalorder %s11, 1
    %p89 = por %p87, %p88
    %p90 = scmp.ne.s32.totalorder %s82, %s85
    %p91 = scmp.eq.s32.totalorder %s11, 0
    %p92 = por %p90, %p91
    %p93 = scmp.ne.s32.totalorder %s82, %s85
    %p94 = scmp.eq.s32.totalorder %s16, 1
    %p95 = por %p93, %p94
    %p96 = scmp.ne.s32.totalorder %s85, %s86
    %p97 = scmp.eq.s32.totalorder %s16, 0
    %p98 = por %p96, %p97
    %p99 = scmp.ne.s32.totalorder %s85, %s86
    %p100 = scmp.eq.s32.totalorder %s17, 1
    %p101 = por %p99, %p100
    %p103 = scmp.ne.s32.totalorder %s86, %s102
    %p104 = scmp.eq.s32.totalorder %s17, 0
    %p105 = por %p103, %p104
    %s106 = ssub.s32 %s18, %s30
    %s107 = ssub.s32 %s19, %s26
    %s108 = sor.u32 %s106, %s107
    %p109 = scmp.eq.s32.totalorder %s108, 0
    %s111 = sadd.s32 %s110, 1
    %s112 = scalar_select %p109, %s110, %s111
    %p115 = pneg %p109
    %p116 = scmp.eq.s32.totalorder %s11, 1
    %p117 = por %p115, %p116
    %p118 = scmp.ne.s32.totalorder %s110, %s113
    %p119 = scmp.eq.s32.totalorder %s11, 0
    %p120 = por %p118, %p119
    %p121 = scmp.ne.s32.totalorder %s110, %s113
    %p122 = scmp.eq.s32.totalorder %s16, 1
    %p123 = por %p121, %p122
    %p124 = scmp.ne.s32.totalorder %s113, %s114
    %p125 = scmp.eq.s32.totalorder %s16, 0
    %p126 = por %p124, %p125
    %p127 = scmp.ne.s32.totalorder %s113, %s114
    %p128 = scmp.eq.s32.totalorder %s17, 1
    %p129 = por %p127, %p128
    %p131 = scmp.ne.s32.totalorder %s114, %s130
    %p132 = scmp.eq.s32.totalorder %s17, 0
    %p133 = por %p131, %p132
    %s134 = ssub.s32 %s18, %s30
    %s135 = ssub.s32 %s19, %s26
    %s136 = sor.u32 %s134, %s135
    %p137 = scmp.eq.s32.totalorder %s136, 0
    %s139 = sadd.s32 %s138, 1
    %s140 = scalar_select %p137, %s138, %s139
    %p143 = pneg %p137
    %p144 = scmp.eq.s32.totalorder %s11, 1
    %p145 = por %p143, %p144
    %p146 = scmp.ne.s32.totalorder %s138, %s141
    %p147 = scmp.eq.s32.totalorder %s11, 0
    %p148 = por %p146, %p147
    %p149 = scmp.ne.s32.totalorder %s138, %s141
    %p150 = scmp.eq.s32.totalorder %s16, 1
    %p151 = por %p149, %p150
    %p152 = scmp.ne.s32.totalorder %s141, %s142
    %p153 = scmp.eq.s32.totalorder %s16, 0
    %p154 = por %p152, %p153
    %p155 = scmp.ne.s32.totalorder %s141, %s142
    %p156 = scmp.eq.s32.totalorder %s17, 1
    %p157 = por %p155, %p156
    %p159 = scmp.ne.s32.totalorder %s142, %s158
    %p160 = scmp.eq.s32.totalorder %s17, 0
    %p161 = por %p159, %p160
    %p162 = scmp.le.s32.totalorder 1, %s11
    %p163 = scmp.lt.s32.totalorder %s11, 3
    %p164 = pnand %p162, %p163
    %p165 = pneg %p164
    // Predicated region
    $region9: #{yolo_forward.1} parent=5 // pred_check
      _
    $region10: #{yolo_forward.1} parent=5 // pred_check_branch
      %167 = sbr.rel (%p164) target = $region12
    $region11: #{yolo_forward.1} parent=5 // pred_region
      %s168 = ssub.s32 %s11, 1
      // Predicated region
      $region13: #{yolo_forward.1} parent=11 // pred_check
        %p169 = pneg %p44
      $region14: #{yolo_forward.1} parent=11 // pred_check_branch
        %171 = sbr.rel (%p169) target = $region16
      $region15: #{yolo_forward.1} parent=11 // pred_region
        _
      $region16: #{yolo_forward.1} parent=11 // pred_fallthru
        _
      // Predicated region
      $region17: #{yolo_forward.1} parent=11 // pred_check
        %p172 = pneg %p70
      $region18: #{yolo_forward.1} parent=11 // pred_check_branch
        %174 = sbr.rel (%p172) target = $region20
      $region19: #{yolo_forward.1} parent=11 // pred_region
        %s175 = smul.u32 32, %s21
        %p176 = scmp.lt.s32.totalorder %s175, 31
        %s177 = scalar_select %p176, %s175, 31
        %s178 = smul.addr %s177, 8
        %s179 = scalar_lea.vmem %s1, %s178
        %s180 = smul.u32 32, %s21
      $region20: #{yolo_forward.1} parent=11 // pred_fallthru
        _
    $region12: #{yolo_forward.1} parent=5 // pred_fallthru
      _
    %p181 = scmp.lt.s32.totalorder %s11, 2
    // Predicated region
    $region21: #{yolo_forward.1} parent=5 // pred_check
      %p182 = pneg %p181
    $region22: #{yolo_forward.1} parent=5 // pred_check_branch
      %184 = sbr.rel (%p182) target = $region24
    $region23: #{yolo_forward.1} parent=5 // pred_region
      // Predicated region
      $region25: #{yolo_forward.1} parent=23 // pred_check
        %p185 = pneg %p92
      $region26: #{yolo_forward.1} parent=23 // pred_check_branch
        %187 = sbr.rel (%p185) target = $region28
      $region27: #{yolo_forward.1} parent=23 // pred_region
        %s188 = smul.u32 32, %s19
        %p189 = scmp.lt.s32.totalorder %s18, 1
        %s190 = scalar_select %p189, %s18, 1
        %p191 = scmp.lt.s32.totalorder %s188, 31
        %s192 = scalar_select %p191, %s188, 31
        %s193 = smul.addr %s190, 96
        %s194 = sadd.s32 %s192, %s193
        %s195 = smul.addr %s194, 8
        %s196 = scalar_lea.vmem %s2, %s195
        %s197 = smul.u32 32, %s19
      $region28: #{yolo_forward.1} parent=23 // pred_fallthru
        _
    $region24: #{yolo_forward.1} parent=5 // pred_fallthru
      _
    %p198 = scmp.le.s32.totalorder 1, %s11
    %p199 = scmp.lt.s32.totalorder %s11, 3
    %p200 = pnand %p198, %p199
    %p201 = pneg %p200
    // Predicated region
    $region29: #{yolo_forward.1} parent=5 // pred_check
      _
    $region30: #{yolo_forward.1} parent=5 // pred_check_branch
      %203 = sbr.rel (%p200) target = $region32
    $region31: #{yolo_forward.1} parent=5 // pred_region
      %s204 = ssub.s32 %s11, 1
      %p205 = pneg %p44
      %p206 = pneg %p41
      %s207 = smul.u32 32, %s21
      %p208 = scmp.lt.s32.totalorder %s207, 31
      %s209 = scalar_select %p208, %s207, 31
      %s210 = smul.addr %s209, 8
      %s211 = scalar_lea.vmem %s1, %s210
      %p212 = pneg %p70
      %p213 = pneg %p67
      %s214 = smul.u32 32, %s21
      %p215 = scmp.lt.s32.totalorder %s20, 1
      %s216 = scalar_select %p215, %s20, 1
      %p217 = scmp.lt.s32.totalorder %s214, 31
      %s218 = scalar_select %p217, %s214, 31
      %s219 = smul.addr %s216, 96
      %s220 = sadd.s32 %s218, %s219
      %s221 = smul.addr %s220, 8
      %s222 = scalar_lea.vmem %s2, %s221
      %p223 = pneg %p98
      %p224 = pneg %p95
      %p225 = pneg %p126
      %p226 = pneg %p123
      %s227 = smul.u32 32, %s21
      %p228 = scmp.lt.s32.totalorder %s20, 1
      %s229 = scalar_select %p228, %s20, 1
      %p230 = scmp.lt.s32.totalorder %s227, 31
      %s231 = scalar_select %p230, %s227, 31
      %s232 = smul.addr %s229, 96
      %s233 = sadd.s32 %s231, %s232
      %s234 = smul.addr %s233, 8
      %s235 = scalar_lea.vmem %s3, %s234
      %p236 = pneg %p154
      %p237 = pneg %p151
      %s238 = smul.u32 32, %s21
      %p239 = scmp.lt.s32.totalorder %s20, 1
      %s240 = scalar_select %p239, %s20, 1
      %p241 = scmp.lt.s32.totalorder %s238, 31
      %s242 = scalar_select %p241, %s238, 31
      %s243 = smul.addr %s240, 96
      %s244 = sadd.s32 %s242, %s243
      %s245 = smul.addr %s244, 8
      %s246 = scalar_lea.vmem %s4, %s245
      %s247 = smul.u32 32, %s21
      %p248 = scmp.lt.s32.totalorder %s247, 31
      %s249 = scalar_select %p248, %s247, 31
      %s250 = smul.addr %s249, 8
      %s251 = scalar_lea.vmem %s1, %s250
      %s252 = smul.u32 32, %s21
      %s253 = smul.u32 32, %s21
      %p254 = scmp.lt.s32.totalorder %s20, 1
      %s255 = scalar_select %p254, %s20, 1
      %p256 = scmp.lt.s32.totalorder %s253, 31
      %s257 = scalar_select %p256, %s253, 31
      %s258 = smul.addr %s255, 96
      %s259 = sadd.s32 %s257, %s258
      %s260 = smul.addr %s259, 8
      %s261 = scalar_lea.vmem %s2, %s260
      %s262 = smul.u32 32, %s21
      %s263 = smul.u32 32, %s21
      %p264 = scmp.lt.s32.totalorder %s20, 1
      %s265 = scalar_select %p264, %s20, 1
      %p266 = scmp.lt.s32.totalorder %s263, 31
      %s267 = scalar_select %p266, %s263, 31
      %s268 = smul.addr %s265, 96
      %s269 = sadd.s32 %s267, %s268
      %s270 = smul.addr %s269, 8
      %s271 = scalar_lea.vmem %s3, %s270
      %s272 = smul.u32 32, %s21
      %s273 = smul.u32 32, %s21
      %p274 = scmp.lt.s32.totalorder %s20, 1
      %s275 = scalar_select %p274, %s20, 1
      %p276 = scmp.lt.s32.totalorder %s273, 31
      %s277 = scalar_select %p276, %s273, 31
      %s278 = smul.addr %s275, 96
      %s279 = sadd.s32 %s277, %s278
      %s280 = smul.addr %s279, 8
      %s281 = scalar_lea.vmem %s4, %s280
      %s282 = smul.u32 32, %s21
      %v283 = vld [vmem:[%s261] sm:$0xff]
      %v284 = vld [vmem:[%s261 + $0x8] sm:$0xff]
      %v285 = vld [vmem:[%s261 + $0x10] sm:$0xff]
      %v286 = vld [vmem:[%s261 + $0x18] sm:$0xff]
      %v287 = vld [vmem:[%s261 + $0x20] sm:$0xff]
      %v288 = vld [vmem:[%s261 + $0x28] sm:$0xff]
      %v289 = vld [vmem:[%s261 + $0x30] sm:$0xff]
      %v290 = vld [vmem:[%s261 + $0x38] sm:$0xff]
      %v291 = vld [vmem:[%s261 + $0x40] sm:$0xff]
      %v292 = vld [vmem:[%s261 + $0x48] sm:$0xff]
      %v293 = vld [vmem:[%s261 + $0x50] sm:$0xff]
      %v294 = vld [vmem:[%s261 + $0x58] sm:$0xff]
      %v295 = vld [vmem:[%s261 + $0x60] sm:$0xff]
      %v296 = vld [vmem:[%s261 + $0x68] sm:$0xff]
      %v297 = vld [vmem:[%s261 + $0x70] sm:$0xff]
      %v298 = vld [vmem:[%s261 + $0x78] sm:$0xff]
      %v299 = vld [vmem:[%s261 + $0x80] sm:$0xff]
      %v300 = vld [vmem:[%s261 + $0x88] sm:$0xff]
      %v301 = vld [vmem:[%s261 + $0x90] sm:$0xff]
      %v302 = vld [vmem:[%s261 + $0x98] sm:$0xff]
      %v303 = vld [vmem:[%s261 + $0xa0] sm:$0xff]
      %v304 = vld [vmem:[%s261 + $0xa8] sm:$0xff]
      %v305 = vld [vmem:[%s261 + $0xb0] sm:$0xff]
      %v306 = vld [vmem:[%s261 + $0xb8] sm:$0xff]
      %v307 = vld [vmem:[%s261 + $0xc0] sm:$0xff]
      %v308 = vld [vmem:[%s261 + $0xc8] sm:$0xff]
      %v309 = vld [vmem:[%s261 + $0xd0] sm:$0xff]
      %v310 = vld [vmem:[%s261 + $0xd8] sm:$0xff]
      %v311 = vld [vmem:[%s261 + $0xe0] sm:$0xff]
      %v312 = vld [vmem:[%s261 + $0xe8] sm:$0xff]
      %v313 = vld [vmem:[%s261 + $0xf0] sm:$0xff]
      %v314 = vld [vmem:[%s261 + $0xf8] sm:$0xff]
      %v315 = vld [vmem:[%s261 + $0x100] sm:$0xff]
      %v316 = vld [vmem:[%s261 + $0x108] sm:$0xff]
      %v317 = vld [vmem:[%s261 + $0x110] sm:$0xff]
      %v318 = vld [vmem:[%s261 + $0x118] sm:$0xff]
      %v319 = vld [vmem:[%s261 + $0x120] sm:$0xff]
      %v320 = vld [vmem:[%s261 + $0x128] sm:$0xff]
      %v321 = vld [vmem:[%s261 + $0x130] sm:$0xff]
      %v322 = vld [vmem:[%s261 + $0x138] sm:$0xff]
      %v323 = vld [vmem:[%s261 + $0x140] sm:$0xff]
      %v324 = vld [vmem:[%s261 + $0x148] sm:$0xff]
      %v325 = vld [vmem:[%s261 + $0x150] sm:$0xff]
      %v326 = vld [vmem:[%s261 + $0x158] sm:$0xff]
      %v327 = vld [vmem:[%s261 + $0x160] sm:$0xff]
      %v328 = vld [vmem:[%s261 + $0x168] sm:$0xff]
      %v329 = vld [vmem:[%s261 + $0x170] sm:$0xff]
      %v330 = vld [vmem:[%s261 + $0x178] sm:$0xff]
      %v331 = vld [vmem:[%s261 + $0x180] sm:$0xff]
      %v332 = vld [vmem:[%s261 + $0x188] sm:$0xff]
      %v333 = vld [vmem:[%s261 + $0x190] sm:$0xff]
      %v334 = vld [vmem:[%s261 + $0x198] sm:$0xff]
      %v335 = vld [vmem:[%s261 + $0x1a0] sm:$0xff]
      %v336 = vld [vmem:[%s261 + $0x1a8] sm:$0xff]
      %v337 = vld [vmem:[%s261 + $0x1b0] sm:$0xff]
      %v338 = vld [vmem:[%s261 + $0x1b8] sm:$0xff]
      %v339 = vld [vmem:[%s261 + $0x1c0] sm:$0xff]
      %v340 = vld [vmem:[%s261 + $0x1c8] sm:$0xff]
      %v341 = vld [vmem:[%s261 + $0x1d0] sm:$0xff]
      %v342 = vld [vmem:[%s261 + $0x1d8] sm:$0xff]
      %v343 = vld [vmem:[%s261 + $0x1e0] sm:$0xff]
      %v344 = vld [vmem:[%s261 + $0x1e8] sm:$0xff]
      %v345 = vld [vmem:[%s261 + $0x1f0] sm:$0xff]
      %v346 = vld [vmem:[%s261 + $0x1f8] sm:$0xff]
      %v347 = vld [vmem:[%s261 + $0x200] sm:$0xff]
      %v348 = vld [vmem:[%s261 + $0x208] sm:$0xff]
      %v349 = vld [vmem:[%s261 + $0x210] sm:$0xff]
      %v350 = vld [vmem:[%s261 + $0x218] sm:$0xff]
      %v351 = vld [vmem:[%s261 + $0x220] sm:$0xff]
      %v352 = vld [vmem:[%s261 + $0x228] sm:$0xff]
      %v353 = vld [vmem:[%s261 + $0x230] sm:$0xff]
      %v354 = vld [vmem:[%s261 + $0x238] sm:$0xff]
      %v355 = vld [vmem:[%s261 + $0x240] sm:$0xff]
      %v356 = vld [vmem:[%s261 + $0x248] sm:$0xff]
      %v357 = vld [vmem:[%s261 + $0x250] sm:$0xff]
      %v358 = vld [vmem:[%s261 + $0x258] sm:$0xff]
      %v359 = vld [vmem:[%s261 + $0x260] sm:$0xff]
      %v360 = vld [vmem:[%s261 + $0x268] sm:$0xff]
      %v361 = vld [vmem:[%s261 + $0x270] sm:$0xff]
      %v362 = vld [vmem:[%s261 + $0x278] sm:$0xff]
      %v363 = vld [vmem:[%s261 + $0x280] sm:$0xff]
      %v364 = vld [vmem:[%s261 + $0x288] sm:$0xff]
      %v365 = vld [vmem:[%s261 + $0x290] sm:$0xff]
      %v366 = vld [vmem:[%s261 + $0x298] sm:$0xff]
      %v367 = vld [vmem:[%s261 + $0x2a0] sm:$0xff]
      %v368 = vld [vmem:[%s261 + $0x2a8] sm:$0xff]
      %v369 = vld [vmem:[%s261 + $0x2b0] sm:$0xff]
      %v370 = vld [vmem:[%s261 + $0x2b8] sm:$0xff]
      %v371 = vld [vmem:[%s261 + $0x2c0] sm:$0xff]
      %v372 = vld [vmem:[%s261 + $0x2c8] sm:$0xff]
      %v373 = vld [vmem:[%s261 + $0x2d0] sm:$0xff]
      %v374 = vld [vmem:[%s261 + $0x2d8] sm:$0xff]
      %v375 = vld [vmem:[%s261 + $0x2e0] sm:$0xff]
      %v376 = vld [vmem:[%s261 + $0x2e8] sm:$0xff]
      %v377 = vld [vmem:[%s261 + $0x2f0] sm:$0xff]
      %v378 = vld [vmem:[%s261 + $0x2f8] sm:$0xff]
      %v379 = vxor.u32 %v283, 2147483648
      %v380 = vxor.u32 %v284, 2147483648
      %v381 = vxor.u32 %v285, 2147483648
      %v382 = vxor.u32 %v286, 2147483648
      %v383 = vxor.u32 %v287, 2147483648
      %v384 = vxor.u32 %v288, 2147483648
      %v385 = vxor.u32 %v289, 2147483648
      %v386 = vxor.u32 %v290, 2147483648
      %v387 = vxor.u32 %v291, 2147483648
      %v388 = vxor.u32 %v292, 2147483648
      %v389 = vxor.u32 %v293, 2147483648
      %v390 = vxor.u32 %v294, 2147483648
      %v391 = vxor.u32 %v295, 2147483648
      %v392 = vxor.u32 %v296, 2147483648
      %v393 = vxor.u32 %v297, 2147483648
      %v394 = vxor.u32 %v298, 2147483648
      %v395 = vxor.u32 %v299, 2147483648
      %v396 = vxor.u32 %v300, 2147483648
      %v397 = vxor.u32 %v301, 2147483648
      %v398 = vxor.u32 %v302, 2147483648
      %v399 = vxor.u32 %v303, 2147483648
      %v400 = vxor.u32 %v304, 2147483648
      %v401 = vxor.u32 %v305, 2147483648
      %v402 = vxor.u32 %v306, 2147483648
      %v403 = vxor.u32 %v307, 2147483648
      %v404 = vxor.u32 %v308, 2147483648
      %v405 = vxor.u32 %v309, 2147483648
      %v406 = vxor.u32 %v310, 2147483648
      %v407 = vxor.u32 %v311, 2147483648
      %v408 = vxor.u32 %v312, 2147483648
      %v409 = vxor.u32 %v313, 2147483648
      %v410 = vxor.u32 %v314, 2147483648
      %v411 = vxor.u32 %v315, 2147483648
      %v412 = vxor.u32 %v316, 2147483648
      %v413 = vxor.u32 %v317, 2147483648
      %v414 = vxor.u32 %v318, 2147483648
      %v415 = vxor.u32 %v319, 2147483648
      %v416 = vxor.u32 %v320, 2147483648
      %v417 = vxor.u32 %v321, 2147483648
      %v418 = vxor.u32 %v322, 2147483648
      %v419 = vxor.u32 %v323, 2147483648
      %v420 = vxor.u32 %v324, 2147483648
      %v421 = vxor.u32 %v325, 2147483648
      %v422 = vxor.u32 %v326, 2147483648
      %v423 = vxor.u32 %v327, 2147483648
      %v424 = vxor.u32 %v328, 2147483648
      %v425 = vxor.u32 %v329, 2147483648
      %v426 = vxor.u32 %v330, 2147483648
      %v427 = vxor.u32 %v331, 2147483648
      %v428 = vxor.u32 %v332, 2147483648
      %v429 = vxor.u32 %v333, 2147483648
      %v430 = vxor.u32 %v334, 2147483648
      %v431 = vxor.u32 %v335, 2147483648
      %v432 = vxor.u32 %v336, 2147483648
      %v433 = vxor.u32 %v337, 2147483648
      %v434 = vxor.u32 %v338, 2147483648
      %v435 = vxor.u32 %v339, 2147483648
      %v436 = vxor.u32 %v340, 2147483648
      %v437 = vxor.u32 %v341, 2147483648
      %v438 = vxor.u32 %v342, 2147483648
      %v439 = vxor.u32 %v343, 2147483648
      %v440 = vxor.u32 %v344, 2147483648
      %v441 = vxor.u32 %v345, 2147483648
      %v442 = vxor.u32 %v346, 2147483648
      %v443 = vxor.u32 %v347, 2147483648
      %v444 = vxor.u32 %v348, 2147483648
      %v445 = vxor.u32 %v349, 2147483648
      %v446 = vxor.u32 %v350, 2147483648
      %v447 = vxor.u32 %v351, 2147483648
      %v448 = vxor.u32 %v352, 2147483648
      %v449 = vxor.u32 %v353, 2147483648
      %v450 = vxor.u32 %v354, 2147483648
      %v451 = vxor.u32 %v355, 2147483648
      %v452 = vxor.u32 %v356, 2147483648
      %v453 = vxor.u32 %v357, 2147483648
      %v454 = vxor.u32 %v358, 2147483648
      %v455 = vxor.u32 %v359, 2147483648
      %v456 = vxor.u32 %v360, 2147483648
      %v457 = vxor.u32 %v361, 2147483648
      %v458 = vxor.u32 %v362, 2147483648
      %v459 = vxor.u32 %v363, 2147483648
      %v460 = vxor.u32 %v364, 2147483648
      %v461 = vxor.u32 %v365, 2147483648
      %v462 = vxor.u32 %v366, 2147483648
      %v463 = vxor.u32 %v367, 2147483648
      %v464 = vxor.u32 %v368, 2147483648
      %v465 = vxor.u32 %v369, 2147483648
      %v466 = vxor.u32 %v370, 2147483648
      %v467 = vxor.u32 %v371, 2147483648
      %v468 = vxor.u32 %v372, 2147483648
      %v469 = vxor.u32 %v373, 2147483648
      %v470 = vxor.u32 %v374, 2147483648
      %v471 = vxor.u32 %v375, 2147483648
      %v472 = vxor.u32 %v376, 2147483648
      %v473 = vxor.u32 %v377, 2147483648
      %v474 = vxor.u32 %v378, 2147483648
      %v475 = vmul.f32 %v379, 1.442695
      %v476 = vpow.pop %v475
      %v477 = vmul.f32 %v380, 1.442695
      %v478 = vpow.pop %v477
      %v479 = vmul.f32 %v381, 1.442695
      %v480 = vpow.pop %v479
      %v481 = vmul.f32 %v382, 1.442695
      %v482 = vpow.pop %v481
      %v483 = vmul.f32 %v383, 1.442695
      %v484 = vpow.pop %v483
      %v485 = vmul.f32 %v384, 1.442695
      %v486 = vpow.pop %v485
      %v487 = vmul.f32 %v385, 1.442695
      %v488 = vpow.pop %v487
      %v489 = vmul.f32 %v386, 1.442695
      %v490 = vpow.pop %v489
      %v491 = vmul.f32 %v387, 1.442695
      %v492 = vpow.pop %v491
      %v493 = vmul.f32 %v388, 1.442695
      %v494 = vpow.pop %v493
      %v495 = vmul.f32 %v389, 1.442695
      %v496 = vpow.pop %v495
      %v497 = vmul.f32 %v390, 1.442695
      %v498 = vpow.pop %v497
      %v499 = vmul.f32 %v391, 1.442695
      %v500 = vpow.pop %v499
      %v501 = vmul.f32 %v392, 1.442695
      %v502 = vpow.pop %v501
      %v503 = vmul.f32 %v393, 1.442695
      %v504 = vpow.pop %v503
      %v505 = vmul.f32 %v394, 1.442695
      %v506 = vpow.pop %v505
      %v507 = vmul.f32 %v395, 1.442695
      %v508 = vpow.pop %v507
      %v509 = vmul.f32 %v396, 1.442695
      %v510 = vpow.pop %v509
      %v511 = vmul.f32 %v397, 1.442695
      %v512 = vpow.pop %v511
      %v513 = vmul.f32 %v398, 1.442695
      %v514 = vpow.pop %v513
      %v515 = vmul.f32 %v399, 1.442695
      %v516 = vpow.pop %v515
      %v517 = vmul.f32 %v400, 1.442695
      %v518 = vpow.pop %v517
      %v519 = vmul.f32 %v401, 1.442695
      %v520 = vpow.pop %v519
      %v521 = vmul.f32 %v402, 1.442695
      %v522 = vpow.pop %v521
      %v523 = vmul.f32 %v403, 1.442695
      %v524 = vpow.pop %v523
      %v525 = vmul.f32 %v404, 1.442695
      %v526 = vpow.pop %v525
      %v527 = vmul.f32 %v405, 1.442695
      %v528 = vpow.pop %v527
      %v529 = vmul.f32 %v406, 1.442695
      %v530 = vpow.pop %v529
      %v531 = vmul.f32 %v407, 1.442695
      %v532 = vpow.pop %v531
      %v533 = vmul.f32 %v408, 1.442695
      %v534 = vpow.pop %v533
      %v535 = vmul.f32 %v409, 1.442695
      %v536 = vpow.pop %v535
      %v537 = vmul.f32 %v410, 1.442695
      %v538 = vpow.pop %v537
      %v539 = vmul.f32 %v411, 1.442695
      %v540 = vpow.pop %v539
      %v541 = vmul.f32 %v412, 1.442695
      %v542 = vpow.pop %v541
      %v543 = vmul.f32 %v413, 1.442695
      %v544 = vpow.pop %v543
      %v545 = vmul.f32 %v414, 1.442695
      %v546 = vpow.pop %v545
      %v547 = vmul.f32 %v415, 1.442695
      %v548 = vpow.pop %v547
      %v549 = vmul.f32 %v416, 1.442695
      %v550 = vpow.pop %v549
      %v551 = vmul.f32 %v417, 1.442695
      %v552 = vpow.pop %v551
      %v553 = vmul.f32 %v418, 1.442695
      %v554 = vpow.pop %v553
      %v555 = vmul.f32 %v419, 1.442695
      %v556 = vpow.pop %v555
      %v557 = vmul.f32 %v420, 1.442695
      %v558 = vpow.pop %v557
      %v559 = vmul.f32 %v421, 1.442695
      %v560 = vpow.pop %v559
      %v561 = vmul.f32 %v422, 1.442695
      %v562 = vpow.pop %v561
      %v563 = vmul.f32 %v423, 1.442695
      %v564 = vpow.pop %v563
      %v565 = vmul.f32 %v424, 1.442695
      %v566 = vpow.pop %v565
      %v567 = vmul.f32 %v425, 1.442695
      %v568 = vpow.pop %v567
      %v569 = vmul.f32 %v426, 1.442695
      %v570 = vpow.pop %v569
      %v571 = vmul.f32 %v427, 1.442695
      %v572 = vpow.pop %v571
      %v573 = vmul.f32 %v428, 1.442695
      %v574 = vpow.pop %v573
      %v575 = vmul.f32 %v429, 1.442695
      %v576 = vpow.pop %v575
      %v577 = vmul.f32 %v430, 1.442695
      %v578 = vpow.pop %v577
      %v579 = vmul.f32 %v431, 1.442695
      %v580 = vpow.pop %v579
      %v581 = vmul.f32 %v432, 1.442695
      %v582 = vpow.pop %v581
      %v583 = vmul.f32 %v433, 1.442695
      %v584 = vpow.pop %v583
      %v585 = vmul.f32 %v434, 1.442695
      %v586 = vpow.pop %v585
      %v587 = vmul.f32 %v435, 1.442695
      %v588 = vpow.pop %v587
      %v589 = vmul.f32 %v436, 1.442695
      %v590 = vpow.pop %v589
      %v591 = vmul.f32 %v437, 1.442695
      %v592 = vpow.pop %v591
      %v593 = vmul.f32 %v438, 1.442695
      %v594 = vpow.pop %v593
      %v595 = vmul.f32 %v439, 1.442695
      %v596 = vpow.pop %v595
      %v597 = vmul.f32 %v440, 1.442695
      %v598 = vpow.pop %v597
      %v599 = vmul.f32 %v441, 1.442695
      %v600 = vpow.pop %v599
      %v601 = vmul.f32 %v442, 1.442695
      %v602 = vpow.pop %v601
      %v603 = vmul.f32 %v443, 1.442695
      %v604 = vpow.pop %v603
      %v605 = vmul.f32 %v444, 1.442695
      %v606 = vpow.pop %v605
      %v607 = vmul.f32 %v445, 1.442695
      %v608 = vpow.pop %v607
      %v609 = vmul.f32 %v446, 1.442695
      %v610 = vpow.pop %v609
      %v611 = vmul.f32 %v447, 1.442695
      %v612 = vpow.pop %v611
      %v613 = vmul.f32 %v448, 1.442695
      %v614 = vpow.pop %v613
      %v615 = vmul.f32 %v449, 1.442695
      %v616 = vpow.pop %v615
      %v617 = vmul.f32 %v450, 1.442695
      %v618 = vpow.pop %v617
      %v619 = vmul.f32 %v451, 1.442695
      %v620 = vpow.pop %v619
      %v621 = vmul.f32 %v452, 1.442695
      %v622 = vpow.pop %v621
      %v623 = vmul.f32 %v453, 1.442695
      %v624 = vpow.pop %v623
      %v625 = vmul.f32 %v454, 1.442695
      %v626 = vpow.pop %v625
      %v627 = vmul.f32 %v455, 1.442695
      %v628 = vpow.pop %v627
      %v629 = vmul.f32 %v456, 1.442695
      %v630 = vpow.pop %v629
      %v631 = vmul.f32 %v457, 1.442695
      %v632 = vpow.pop %v631
      %v633 = vmul.f32 %v458, 1.442695
      %v634 = vpow.pop %v633
      %v635 = vmul.f32 %v459, 1.442695
      %v636 = vpow.pop %v635
      %v637 = vmul.f32 %v460, 1.442695
      %v638 = vpow.pop %v637
      %v639 = vmul.f32 %v461, 1.442695
      %v640 = vpow.pop %v639
      %v641 = vmul.f32 %v462, 1.442695
      %v642 = vpow.pop %v641
      %v643 = vmul.f32 %v463, 1.442695
      %v644 = vpow.pop %v643
      %v645 = vmul.f32 %v464, 1.442695
      %v646 = vpow.pop %v645
      %v647 = vmul.f32 %v465, 1.442695
      %v648 = vpow.pop %v647
      %v649 = vmul.f32 %v466, 1.442695
      %v650 = vpow.pop %v649
      %v651 = vmul.f32 %v467, 1.442695
      %v652 = vpow.pop %v651
      %v653 = vmul.f32 %v468, 1.442695
      %v654 = vpow.pop %v653
      %v655 = vmul.f32 %v469, 1.442695
      %v656 = vpow.pop %v655
      %v657 = vmul.f32 %v470, 1.442695
      %v658 = vpow.pop %v657
      %v659 = vmul.f32 %v471, 1.442695
      %v660 = vpow.pop %v659
      %v661 = vmul.f32 %v472, 1.442695
      %v662 = vpow.pop %v661
      %v663 = vmul.f32 %v473, 1.442695
      %v664 = vpow.pop %v663
      %v665 = vmul.f32 %v474, 1.442695
      %v666 = vpow.pop %v665
      %v667 = vadd.f32 %v476, 1.0
      %v668 = vadd.f32 %v478, 1.0
      %v669 = vadd.f32 %v480, 1.0
      %v670 = vadd.f32 %v482, 1.0
      %v671 = vadd.f32 %v484, 1.0
      %v672 = vadd.f32 %v486, 1.0
      %v673 = vadd.f32 %v488, 1.0
      %v674 = vadd.f32 %v490, 1.0
      %v675 = vadd.f32 %v492, 1.0
      %v676 = vadd.f32 %v494, 1.0
      %v677 = vadd.f32 %v496, 1.0
      %v678 = vadd.f32 %v498, 1.0
      %v679 = vadd.f32 %v500, 1.0
      %v680 = vadd.f32 %v502, 1.0
      %v681 = vadd.f32 %v504, 1.0
      %v682 = vadd.f32 %v506, 1.0
      %v683 = vadd.f32 %v508, 1.0
      %v684 = vadd.f32 %v510, 1.0
      %v685 = vadd.f32 %v512, 1.0
      %v686 = vadd.f32 %v514, 1.0
      %v687 = vadd.f32 %v516, 1.0
      %v688 = vadd.f32 %v518, 1.0
      %v689 = vadd.f32 %v520, 1.0
      %v690 = vadd.f32 %v522, 1.0
      %v691 = vadd.f32 %v524, 1.0
      %v692 = vadd.f32 %v526, 1.0
      %v693 = vadd.f32 %v528, 1.0
      %v694 = vadd.f32 %v530, 1.0
      %v695 = vadd.f32 %v532, 1.0
      %v696 = vadd.f32 %v534, 1.0
      %v697 = vadd.f32 %v536, 1.0
      %v698 = vadd.f32 %v538, 1.0
      %v699 = vadd.f32 %v540, 1.0
      %v700 = vadd.f32 %v542, 1.0
      %v701 = vadd.f32 %v544, 1.0
      %v702 = vadd.f32 %v546, 1.0
      %v703 = vadd.f32 %v548, 1.0
      %v704 = vadd.f32 %v550, 1.0
      %v705 = vadd.f32 %v552, 1.0
      %v706 = vadd.f32 %v554, 1.0
      %v707 = vadd.f32 %v556, 1.0
      %v708 = vadd.f32 %v558, 1.0
      %v709 = vadd.f32 %v560, 1.0
      %v710 = vadd.f32 %v562, 1.0
      %v711 = vadd.f32 %v564, 1.0
      %v712 = vadd.f32 %v566, 1.0
      %v713 = vadd.f32 %v568, 1.0
      %v714 = vadd.f32 %v570, 1.0
      %v715 = vadd.f32 %v572, 1.0
      %v716 = vadd.f32 %v574, 1.0
      %v717 = vadd.f32 %v576, 1.0
      %v718 = vadd.f32 %v578, 1.0
      %v719 = vadd.f32 %v580, 1.0
      %v720 = vadd.f32 %v582, 1.0
      %v721 = vadd.f32 %v584, 1.0
      %v722 = vadd.f32 %v586, 1.0
      %v723 = vadd.f32 %v588, 1.0
      %v724 = vadd.f32 %v590, 1.0
      %v725 = vadd.f32 %v592, 1.0
      %v726 = vadd.f32 %v594, 1.0
      %v727 = vadd.f32 %v596, 1.0
      %v728 = vadd.f32 %v598, 1.0
      %v729 = vadd.f32 %v600, 1.0
      %v730 = vadd.f32 %v602, 1.0
      %v731 = vadd.f32 %v604, 1.0
      %v732 = vadd.f32 %v606, 1.0
      %v733 = vadd.f32 %v608, 1.0
      %v734 = vadd.f32 %v610, 1.0
      %v735 = vadd.f32 %v612, 1.0
      %v736 = vadd.f32 %v614, 1.0
      %v737 = vadd.f32 %v616, 1.0
      %v738 = vadd.f32 %v618, 1.0
      %v739 = vadd.f32 %v620, 1.0
      %v740 = vadd.f32 %v622, 1.0
      %v741 = vadd.f32 %v624, 1.0
      %v742 = vadd.f32 %v626, 1.0
      %v743 = vadd.f32 %v628, 1.0
      %v744 = vadd.f32 %v630, 1.0
      %v745 = vadd.f32 %v632, 1.0
      %v746 = vadd.f32 %v634, 1.0
      %v747 = vadd.f32 %v636, 1.0
      %v748 = vadd.f32 %v638, 1.0
      %v749 = vadd.f32 %v640, 1.0
      %v750 = vadd.f32 %v642, 1.0
      %v751 = vadd.f32 %v644, 1.0
      %v752 = vadd.f32 %v646, 1.0
      %v753 = vadd.f32 %v648, 1.0
      %v754 = vadd.f32 %v650, 1.0
      %v755 = vadd.f32 %v652, 1.0
      %v756 = vadd.f32 %v654, 1.0
      %v757 = vadd.f32 %v656, 1.0
      %v758 = vadd.f32 %v658, 1.0
      %v759 = vadd.f32 %v660, 1.0
      %v760 = vadd.f32 %v662, 1.0
      %v761 = vadd.f32 %v664, 1.0
      %v762 = vadd.f32 %v666, 1.0
      %v763 = vrcp.pop %v667
      %v764 = vmul.f32 %v667, %v763
      %v765 = vsub.f32 1.0, %v764
      %v766 = vmul.f32 %v763, %v765
      %v767 = vadd.f32 %v763, %v766
      %vm768 = vweird.f32 %v667
      %vm769 = vweird.f32 %v763
      %vm770 = vmor %vm768, %vm769
      %v771 = vsel %vm770, %v763, %v767
      %v772 = vand.u32 2147483647, %v667
      %vm773 = vcmp.eq.f32.partialorder %v772, 8.507059e+37
      %v774 = vand.u32 %v667, 2147483648
      %v775 = vor.u32 1.1754944e-38, %v774
      %v776 = vsel %vm773, %v775, %v771
      %v777 = vmul.f32 1.0, %v776
      %v778 = vrcp.pop %v668
      %v779 = vmul.f32 %v668, %v778
      %v780 = vsub.f32 1.0, %v779
      %v781 = vmul.f32 %v778, %v780
      %v782 = vadd.f32 %v778, %v781
      %vm783 = vweird.f32 %v668
      %vm784 = vweird.f32 %v778
      %vm785 = vmor %vm783, %vm784
      %v786 = vsel %vm785, %v778, %v782
      %v787 = vand.u32 2147483647, %v668
      %vm788 = vcmp.eq.f32.partialorder %v787, 8.507059e+37
      %v789 = vand.u32 %v668, 2147483648
      %v790 = vor.u32 1.1754944e-38, %v789
      %v791 = vsel %vm788, %v790, %v786
      %v792 = vmul.f32 1.0, %v791
      %v793 = vrcp.pop %v669
      %v794 = vmul.f32 %v669, %v793
      %v795 = vsub.f32 1.0, %v794
      %v796 = vmul.f32 %v793, %v795
      %v797 = vadd.f32 %v793, %v796
      %vm798 = vweird.f32 %v669
      %vm799 = vweird.f32 %v793
      %vm800 = vmor %vm798, %vm799
      %v801 = vsel %vm800, %v793, %v797
      %v802 = vand.u32 2147483647, %v669
      %vm803 = vcmp.eq.f32.partialorder %v802, 8.507059e+37
      %v804 = vand.u32 %v669, 2147483648
      %v805 = vor.u32 1.1754944e-38, %v804
      %v806 = vsel %vm803, %v805, %v801
      %v807 = vmul.f32 1.0, %v806
      %v808 = vrcp.pop %v670
      %v809 = vmul.f32 %v670, %v808
      %v810 = vsub.f32 1.0, %v809
      %v811 = vmul.f32 %v808, %v810
      %v812 = vadd.f32 %v808, %v811
      %vm813 = vweird.f32 %v670
      %vm814 = vweird.f32 %v808
      %vm815 = vmor %vm813, %vm814
      %v816 = vsel %vm815, %v808, %v812
      %v817 = vand.u32 2147483647, %v670
      %vm818 = vcmp.eq.f32.partialorder %v817, 8.507059e+37
      %v819 = vand.u32 %v670, 2147483648
      %v820 = vor.u32 1.1754944e-38, %v819
      %v821 = vsel %vm818, %v820, %v816
      %v822 = vmul.f32 1.0, %v821
      %v823 = vrcp.pop %v671
      %v824 = vmul.f32 %v671, %v823
      %v825 = vsub.f32 1.0, %v824
      %v826 = vmul.f32 %v823, %v825
      %v827 = vadd.f32 %v823, %v826
      %vm828 = vweird.f32 %v671
      %vm829 = vweird.f32 %v823
      %vm830 = vmor %vm828, %vm829
      %v831 = vsel %vm830, %v823, %v827
      %v832 = vand.u32 2147483647, %v671
      %vm833 = vcmp.eq.f32.partialorder %v832, 8.507059e+37
      %v834 = vand.u32 %v671, 2147483648
      %v835 = vor.u32 1.1754944e-38, %v834
      %v836 = vsel %vm833, %v835, %v831
      %v837 = vmul.f32 1.0, %v836
      %v838 = vrcp.pop %v672
      %v839 = vmul.f32 %v672, %v838
      %v840 = vsub.f32 1.0, %v839
      %v841 = vmul.f32 %v838, %v840
      %v842 = vadd.f32 %v838, %v841
      %vm843 = vweird.f32 %v672
      %vm844 = vweird.f32 %v838
      %vm845 = vmor %vm843, %vm844
      %v846 = vsel %vm845, %v838, %v842
      %v847 = vand.u32 2147483647, %v672
      %vm848 = vcmp.eq.f32.partialorder %v847, 8.507059e+37
      %v849 = vand.u32 %v672, 2147483648
      %v850 = vor.u32 1.1754944e-38, %v849
      %v851 = vsel %vm848, %v850, %v846
      %v852 = vmul.f32 1.0, %v851
      %v853 = vrcp.pop %v673
      %v854 = vmul.f32 %v673, %v853
      %v855 = vsub.f32 1.0, %v854
      %v856 = vmul.f32 %v853, %v855
      %v857 = vadd.f32 %v853, %v856
      %vm858 = vweird.f32 %v673
      %vm859 = vweird.f32 %v853
      %vm860 = vmor %vm858, %vm859
      %v861 = vsel %vm860, %v853, %v857
      %v862 = vand.u32 2147483647, %v673
      %vm863 = vcmp.eq.f32.partialorder %v862, 8.507059e+37
      %v864 = vand.u32 %v673, 2147483648
      %v865 = vor.u32 1.1754944e-38, %v864
      %v866 = vsel %vm863, %v865, %v861
      %v867 = vmul.f32 1.0, %v866
      %v868 = vrcp.pop %v674
      %v869 = vmul.f32 %v674, %v868
      %v870 = vsub.f32 1.0, %v869
      %v871 = vmul.f32 %v868, %v870
      %v872 = vadd.f32 %v868, %v871
      %vm873 = vweird.f32 %v674
      %vm874 = vweird.f32 %v868
      %vm875 = vmor %vm873, %vm874
      %v876 = vsel %vm875, %v868, %v872
      %v877 = vand.u32 2147483647, %v674
      %vm878 = vcmp.eq.f32.partialorder %v877, 8.507059e+37
      %v879 = vand.u32 %v674, 2147483648
      %v880 = vor.u32 1.1754944e-38, %v879
      %v881 = vsel %vm878, %v880, %v876
      %v882 = vmul.f32 1.0, %v881
      %v883 = vrcp.pop %v675
      %v884 = vmul.f32 %v675, %v883
      %v885 = vsub.f32 1.0, %v884
      %v886 = vmul.f32 %v883, %v885
      %v887 = vadd.f32 %v883, %v886
      %vm888 = vweird.f32 %v675
      %vm889 = vweird.f32 %v883
      %vm890 = vmor %vm888, %vm889
      %v891 = vsel %vm890, %v883, %v887
      %v892 = vand.u32 2147483647, %v675
      %vm893 = vcmp.eq.f32.partialorder %v892, 8.507059e+37
      %v894 = vand.u32 %v675, 2147483648
      %v895 = vor.u32 1.1754944e-38, %v894
      %v896 = vsel %vm893, %v895, %v891
      %v897 = vmul.f32 1.0, %v896
      %v898 = vrcp.pop %v676
      %v899 = vmul.f32 %v676, %v898
      %v900 = vsub.f32 1.0, %v899
      %v901 = vmul.f32 %v898, %v900
      %v902 = vadd.f32 %v898, %v901
      %vm903 = vweird.f32 %v676
      %vm904 = vweird.f32 %v898
      %vm905 = vmor %vm903, %vm904
      %v906 = vsel %vm905, %v898, %v902
      %v907 = vand.u32 2147483647, %v676
      %vm908 = vcmp.eq.f32.partialorder %v907, 8.507059e+37
      %v909 = vand.u32 %v676, 2147483648
      %v910 = vor.u32 1.1754944e-38, %v909
      %v911 = vsel %vm908, %v910, %v906
      %v912 = vmul.f32 1.0, %v911
      %v913 = vrcp.pop %v677
      %v914 = vmul.f32 %v677, %v913
      %v915 = vsub.f32 1.0, %v914
      %v916 = vmul.f32 %v913, %v915
      %v917 = vadd.f32 %v913, %v916
      %vm918 = vweird.f32 %v677
      %vm919 = vweird.f32 %v913
      %vm920 = vmor %vm918, %vm919
      %v921 = vsel %vm920, %v913, %v917
      %v922 = vand.u32 2147483647, %v677
      %vm923 = vcmp.eq.f32.partialorder %v922, 8.507059e+37
      %v924 = vand.u32 %v677, 2147483648
      %v925 = vor.u32 1.1754944e-38, %v924
      %v926 = vsel %vm923, %v925, %v921
      %v927 = vmul.f32 1.0, %v926
      %v928 = vrcp.pop %v678
      %v929 = vmul.f32 %v678, %v928
      %v930 = vsub.f32 1.0, %v929
      %v931 = vmul.f32 %v928, %v930
      %v932 = vadd.f32 %v928, %v931
      %vm933 = vweird.f32 %v678
      %vm934 = vweird.f32 %v928
      %vm935 = vmor %vm933, %vm934
      %v936 = vsel %vm935, %v928, %v932
      %v937 = vand.u32 2147483647, %v678
      %vm938 = vcmp.eq.f32.partialorder %v937, 8.507059e+37
      %v939 = vand.u32 %v678, 2147483648
      %v940 = vor.u32 1.1754944e-38, %v939
      %v941 = vsel %vm938, %v940, %v936
      %v942 = vmul.f32 1.0, %v941
      %v943 = vrcp.pop %v679
      %v944 = vmul.f32 %v679, %v943
      %v945 = vsub.f32 1.0, %v944
      %v946 = vmul.f32 %v943, %v945
      %v947 = vadd.f32 %v943, %v946
      %vm948 = vweird.f32 %v679
      %vm949 = vweird.f32 %v943
      %vm950 = vmor %vm948, %vm949
      %v951 = vsel %vm950, %v943, %v947
      %v952 = vand.u32 2147483647, %v679
      %vm953 = vcmp.eq.f32.partialorder %v952, 8.507059e+37
      %v954 = vand.u32 %v679, 2147483648
      %v955 = vor.u32 1.1754944e-38, %v954
      %v956 = vsel %vm953, %v955, %v951
      %v957 = vmul.f32 1.0, %v956
      %v958 = vrcp.pop %v680
      %v959 = vmul.f32 %v680, %v958
      %v960 = vsub.f32 1.0, %v959
      %v961 = vmul.f32 %v958, %v960
      %v962 = vadd.f32 %v958, %v961
      %vm963 = vweird.f32 %v680
      %vm964 = vweird.f32 %v958
      %vm965 = vmor %vm963, %vm964
      %v966 = vsel %vm965, %v958, %v962
      %v967 = vand.u32 2147483647, %v680
      %vm968 = vcmp.eq.f32.partialorder %v967, 8.507059e+37
      %v969 = vand.u32 %v680, 2147483648
      %v970 = vor.u32 1.1754944e-38, %v969
      %v971 = vsel %vm968, %v970, %v966
      %v972 = vmul.f32 1.0, %v971
      %v973 = vrcp.pop %v681
      %v974 = vmul.f32 %v681, %v973
      %v975 = vsub.f32 1.0, %v974
      %v976 = vmul.f32 %v973, %v975
      %v977 = vadd.f32 %v973, %v976
      %vm978 = vweird.f32 %v681
      %vm979 = vweird.f32 %v973
      %vm980 = vmor %vm978, %vm979
      %v981 = vsel %vm980, %v973, %v977
      %v982 = vand.u32 2147483647, %v681
      %vm983 = vcmp.eq.f32.partialorder %v982, 8.507059e+37
      %v984 = vand.u32 %v681, 2147483648
      %v985 = vor.u32 1.1754944e-38, %v984
      %v986 = vsel %vm983, %v985, %v981
      %v987 = vmul.f32 1.0, %v986
      %v988 = vrcp.pop %v682
      %v989 = vmul.f32 %v682, %v988
      %v990 = vsub.f32 1.0, %v989
      %v991 = vmul.f32 %v988, %v990
      %v992 = vadd.f32 %v988, %v991
      %vm993 = vweird.f32 %v682
      %vm994 = vweird.f32 %v988
      %vm995 = vmor %vm993, %vm994
      %v996 = vsel %vm995, %v988, %v992
      %v997 = vand.u32 2147483647, %v682
      %vm998 = vcmp.eq.f32.partialorder %v997, 8.507059e+37
      %v999 = vand.u32 %v682, 2147483648
      %v1000 = vor.u32 1.1754944e-38, %v999
      %v1001 = vsel %vm998, %v1000, %v996
      %v1002 = vmul.f32 1.0, %v1001
      %v1003 = vrcp.pop %v683
      %v1004 = vmul.f32 %v683, %v1003
      %v1005 = vsub.f32 1.0, %v1004
      %v1006 = vmul.f32 %v1003, %v1005
      %v1007 = vadd.f32 %v1003, %v1006
      %vm1008 = vweird.f32 %v683
      %vm1009 = vweird.f32 %v1003
      %vm1010 = vmor %vm1008, %vm1009
      %v1011 = vsel %vm1010, %v1003, %v1007
      %v1012 = vand.u32 2147483647, %v683
      %vm1013 = vcmp.eq.f32.partialorder %v1012, 8.507059e+37
      %v1014 = vand.u32 %v683, 2147483648
      %v1015 = vor.u32 1.1754944e-38, %v1014
      %v1016 = vsel %vm1013, %v1015, %v1011
      %v1017 = vmul.f32 1.0, %v1016
      %v1018 = vrcp.pop %v684
      %v1019 = vmul.f32 %v684, %v1018
      %v1020 = vsub.f32 1.0, %v1019
      %v1021 = vmul.f32 %v1018, %v1020
      %v1022 = vadd.f32 %v1018, %v1021
      %vm1023 = vweird.f32 %v684
      %vm1024 = vweird.f32 %v1018
      %vm1025 = vmor %vm1023, %vm1024
      %v1026 = vsel %vm1025, %v1018, %v1022
      %v1027 = vand.u32 2147483647, %v684
      %vm1028 = vcmp.eq.f32.partialorder %v1027, 8.507059e+37
      %v1029 = vand.u32 %v684, 2147483648
      %v1030 = vor.u32 1.1754944e-38, %v1029
      %v1031 = vsel %vm1028, %v1030, %v1026
      %v1032 = vmul.f32 1.0, %v1031
      %v1033 = vrcp.pop %v685
      %v1034 = vmul.f32 %v685, %v1033
      %v1035 = vsub.f32 1.0, %v1034
      %v1036 = vmul.f32 %v1033, %v1035
      %v1037 = vadd.f32 %v1033, %v1036
      %vm1038 = vweird.f32 %v685
      %vm1039 = vweird.f32 %v1033
      %vm1040 = vmor %vm1038, %vm1039
      %v1041 = vsel %vm1040, %v1033, %v1037
      %v1042 = vand.u32 2147483647, %v685
      %vm1043 = vcmp.eq.f32.partialorder %v1042, 8.507059e+37
      %v1044 = vand.u32 %v685, 2147483648
      %v1045 = vor.u32 1.1754944e-38, %v1044
      %v1046 = vsel %vm1043, %v1045, %v1041
      %v1047 = vmul.f32 1.0, %v1046
      %v1048 = vrcp.pop %v686
      %v1049 = vmul.f32 %v686, %v1048
      %v1050 = vsub.f32 1.0, %v1049
      %v1051 = vmul.f32 %v1048, %v1050
      %v1052 = vadd.f32 %v1048, %v1051
      %vm1053 = vweird.f32 %v686
      %vm1054 = vweird.f32 %v1048
      %vm1055 = vmor %vm1053, %vm1054
      %v1056 = vsel %vm1055, %v1048, %v1052
      %v1057 = vand.u32 2147483647, %v686
      %vm1058 = vcmp.eq.f32.partialorder %v1057, 8.507059e+37
      %v1059 = vand.u32 %v686, 2147483648
      %v1060 = vor.u32 1.1754944e-38, %v1059
      %v1061 = vsel %vm1058, %v1060, %v1056
      %v1062 = vmul.f32 1.0, %v1061
      %v1063 = vrcp.pop %v687
      %v1064 = vmul.f32 %v687, %v1063
      %v1065 = vsub.f32 1.0, %v1064
      %v1066 = vmul.f32 %v1063, %v1065
      %v1067 = vadd.f32 %v1063, %v1066
      %vm1068 = vweird.f32 %v687
      %vm1069 = vweird.f32 %v1063
      %vm1070 = vmor %vm1068, %vm1069
      %v1071 = vsel %vm1070, %v1063, %v1067
      %v1072 = vand.u32 2147483647, %v687
      %vm1073 = vcmp.eq.f32.partialorder %v1072, 8.507059e+37
      %v1074 = vand.u32 %v687, 2147483648
      %v1075 = vor.u32 1.1754944e-38, %v1074
      %v1076 = vsel %vm1073, %v1075, %v1071
      %v1077 = vmul.f32 1.0, %v1076
      %v1078 = vrcp.pop %v688
      %v1079 = vmul.f32 %v688, %v1078
      %v1080 = vsub.f32 1.0, %v1079
      %v1081 = vmul.f32 %v1078, %v1080
      %v1082 = vadd.f32 %v1078, %v1081
      %vm1083 = vweird.f32 %v688
      %vm1084 = vweird.f32 %v1078
      %vm1085 = vmor %vm1083, %vm1084
      %v1086 = vsel %vm1085, %v1078, %v1082
      %v1087 = vand.u32 2147483647, %v688
      %vm1088 = vcmp.eq.f32.partialorder %v1087, 8.507059e+37
      %v1089 = vand.u32 %v688, 2147483648
      %v1090 = vor.u32 1.1754944e-38, %v1089
      %v1091 = vsel %vm1088, %v1090, %v1086
      %v1092 = vmul.f32 1.0, %v1091
      %v1093 = vrcp.pop %v689
      %v1094 = vmul.f32 %v689, %v1093
      %v1095 = vsub.f32 1.0, %v1094
      %v1096 = vmul.f32 %v1093, %v1095
      %v1097 = vadd.f32 %v1093, %v1096
      %vm1098 = vweird.f32 %v689
      %vm1099 = vweird.f32 %v1093
      %vm1100 = vmor %vm1098, %vm1099
      %v1101 = vsel %vm1100, %v1093, %v1097
      %v1102 = vand.u32 2147483647, %v689
      %vm1103 = vcmp.eq.f32.partialorder %v1102, 8.507059e+37
      %v1104 = vand.u32 %v689, 2147483648
      %v1105 = vor.u32 1.1754944e-38, %v1104
      %v1106 = vsel %vm1103, %v1105, %v1101
      %v1107 = vmul.f32 1.0, %v1106
      %v1108 = vrcp.pop %v690
      %v1109 = vmul.f32 %v690, %v1108
      %v1110 = vsub.f32 1.0, %v1109
      %v1111 = vmul.f32 %v1108, %v1110
      %v1112 = vadd.f32 %v1108, %v1111
      %vm1113 = vweird.f32 %v690
      %vm1114 = vweird.f32 %v1108
      %vm1115 = vmor %vm1113, %vm1114
      %v1116 = vsel %vm1115, %v1108, %v1112
      %v1117 = vand.u32 2147483647, %v690
      %vm1118 = vcmp.eq.f32.partialorder %v1117, 8.507059e+37
      %v1119 = vand.u32 %v690, 2147483648
      %v1120 = vor.u32 1.1754944e-38, %v1119
      %v1121 = vsel %vm1118, %v1120, %v1116
      %v1122 = vmul.f32 1.0, %v1121
      %v1123 = vrcp.pop %v691
      %v1124 = vmul.f32 %v691, %v1123
      %v1125 = vsub.f32 1.0, %v1124
      %v1126 = vmul.f32 %v1123, %v1125
      %v1127 = vadd.f32 %v1123, %v1126
      %vm1128 = vweird.f32 %v691
      %vm1129 = vweird.f32 %v1123
      %vm1130 = vmor %vm1128, %vm1129
      %v1131 = vsel %vm1130, %v1123, %v1127
      %v1132 = vand.u32 2147483647, %v691
      %vm1133 = vcmp.eq.f32.partialorder %v1132, 8.507059e+37
      %v1134 = vand.u32 %v691, 2147483648
      %v1135 = vor.u32 1.1754944e-38, %v1134
      %v1136 = vsel %vm1133, %v1135, %v1131
      %v1137 = vmul.f32 1.0, %v1136
      %v1138 = vrcp.pop %v692
      %v1139 = vmul.f32 %v692, %v1138
      %v1140 = vsub.f32 1.0, %v1139
      %v1141 = vmul.f32 %v1138, %v1140
      %v1142 = vadd.f32 %v1138, %v1141
      %vm1143 = vweird.f32 %v692
      %vm1144 = vweird.f32 %v1138
      %vm1145 = vmor %vm1143, %vm1144
      %v1146 = vsel %vm1145, %v1138, %v1142
      %v1147 = vand.u32 2147483647, %v692
      %vm1148 = vcmp.eq.f32.partialorder %v1147, 8.507059e+37
      %v1149 = vand.u32 %v692, 2147483648
      %v1150 = vor.u32 1.1754944e-38, %v1149
      %v1151 = vsel %vm1148, %v1150, %v1146
      %v1152 = vmul.f32 1.0, %v1151
      %v1153 = vrcp.pop %v693
      %v1154 = vmul.f32 %v693, %v1153
      %v1155 = vsub.f32 1.0, %v1154
      %v1156 = vmul.f32 %v1153, %v1155
      %v1157 = vadd.f32 %v1153, %v1156
      %vm1158 = vweird.f32 %v693
      %vm1159 = vweird.f32 %v1153
      %vm1160 = vmor %vm1158, %vm1159
      %v1161 = vsel %vm1160, %v1153, %v1157
      %v1162 = vand.u32 2147483647, %v693
      %vm1163 = vcmp.eq.f32.partialorder %v1162, 8.507059e+37
      %v1164 = vand.u32 %v693, 2147483648
      %v1165 = vor.u32 1.1754944e-38, %v1164
      %v1166 = vsel %vm1163, %v1165, %v1161
      %v1167 = vmul.f32 1.0, %v1166
      %v1168 = vrcp.pop %v694
      %v1169 = vmul.f32 %v694, %v1168
      %v1170 = vsub.f32 1.0, %v1169
      %v1171 = vmul.f32 %v1168, %v1170
      %v1172 = vadd.f32 %v1168, %v1171
      %vm1173 = vweird.f32 %v694
      %vm1174 = vweird.f32 %v1168
      %vm1175 = vmor %vm1173, %vm1174
      %v1176 = vsel %vm1175, %v1168, %v1172
      %v1177 = vand.u32 2147483647, %v694
      %vm1178 = vcmp.eq.f32.partialorder %v1177, 8.507059e+37
      %v1179 = vand.u32 %v694, 2147483648
      %v1180 = vor.u32 1.1754944e-38, %v1179
      %v1181 = vsel %vm1178, %v1180, %v1176
      %v1182 = vmul.f32 1.0, %v1181
      %v1183 = vrcp.pop %v695
      %v1184 = vmul.f32 %v695, %v1183
      %v1185 = vsub.f32 1.0, %v1184
      %v1186 = vmul.f32 %v1183, %v1185
      %v1187 = vadd.f32 %v1183, %v1186
      %vm1188 = vweird.f32 %v695
      %vm1189 = vweird.f32 %v1183
      %vm1190 = vmor %vm1188, %vm1189
      %v1191 = vsel %vm1190, %v1183, %v1187
      %v1192 = vand.u32 2147483647, %v695
      %vm1193 = vcmp.eq.f32.partialorder %v1192, 8.507059e+37
      %v1194 = vand.u32 %v695, 2147483648
      %v1195 = vor.u32 1.1754944e-38, %v1194
      %v1196 = vsel %vm1193, %v1195, %v1191
      %v1197 = vmul.f32 1.0, %v1196
      %v1198 = vrcp.pop %v696
      %v1199 = vmul.f32 %v696, %v1198
      %v1200 = vsub.f32 1.0, %v1199
      %v1201 = vmul.f32 %v1198, %v1200
      %v1202 = vadd.f32 %v1198, %v1201
      %vm1203 = vweird.f32 %v696
      %vm1204 = vweird.f32 %v1198
      %vm1205 = vmor %vm1203, %vm1204
      %v1206 = vsel %vm1205, %v1198, %v1202
      %v1207 = vand.u32 2147483647, %v696
      %vm1208 = vcmp.eq.f32.partialorder %v1207, 8.507059e+37
      %v1209 = vand.u32 %v696, 2147483648
      %v1210 = vor.u32 1.1754944e-38, %v1209
      %v1211 = vsel %vm1208, %v1210, %v1206
      %v1212 = vmul.f32 1.0, %v1211
      %v1213 = vrcp.pop %v697
      %v1214 = vmul.f32 %v697, %v1213
      %v1215 = vsub.f32 1.0, %v1214
      %v1216 = vmul.f32 %v1213, %v1215
      %v1217 = vadd.f32 %v1213, %v1216
      %vm1218 = vweird.f32 %v697
      %vm1219 = vweird.f32 %v1213
      %vm1220 = vmor %vm1218, %vm1219
      %v1221 = vsel %vm1220, %v1213, %v1217
      %v1222 = vand.u32 2147483647, %v697
      %vm1223 = vcmp.eq.f32.partialorder %v1222, 8.507059e+37
      %v1224 = vand.u32 %v697, 2147483648
      %v1225 = vor.u32 1.1754944e-38, %v1224
      %v1226 = vsel %vm1223, %v1225, %v1221
      %v1227 = vmul.f32 1.0, %v1226
      %v1228 = vrcp.pop %v698
      %v1229 = vmul.f32 %v698, %v1228
      %v1230 = vsub.f32 1.0, %v1229
      %v1231 = vmul.f32 %v1228, %v1230
      %v1232 = vadd.f32 %v1228, %v1231
      %vm1233 = vweird.f32 %v698
      %vm1234 = vweird.f32 %v1228
      %vm1235 = vmor %vm1233, %vm1234
      %v1236 = vsel %vm1235, %v1228, %v1232
      %v1237 = vand.u32 2147483647, %v698
      %vm1238 = vcmp.eq.f32.partialorder %v1237, 8.507059e+37
      %v1239 = vand.u32 %v698, 2147483648
      %v1240 = vor.u32 1.1754944e-38, %v1239
      %v1241 = vsel %vm1238, %v1240, %v1236
      %v1242 = vmul.f32 1.0, %v1241
      %v1243 = vrcp.pop %v699
      %v1244 = vmul.f32 %v699, %v1243
      %v1245 = vsub.f32 1.0, %v1244
      %v1246 = vmul.f32 %v1243, %v1245
      %v1247 = vadd.f32 %v1243, %v1246
      %vm1248 = vweird.f32 %v699
      %vm1249 = vweird.f32 %v1243
      %vm1250 = vmor %vm1248, %vm1249
      %v1251 = vsel %vm1250, %v1243, %v1247
      %v1252 = vand.u32 2147483647, %v699
      %vm1253 = vcmp.eq.f32.partialorder %v1252, 8.507059e+37
      %v1254 = vand.u32 %v699, 2147483648
      %v1255 = vor.u32 1.1754944e-38, %v1254
      %v1256 = vsel %vm1253, %v1255, %v1251
      %v1257 = vmul.f32 1.0, %v1256
      %v1258 = vrcp.pop %v700
      %v1259 = vmul.f32 %v700, %v1258
      %v1260 = vsub.f32 1.0, %v1259
      %v1261 = vmul.f32 %v1258, %v1260
      %v1262 = vadd.f32 %v1258, %v1261
      %vm1263 = vweird.f32 %v700
      %vm1264 = vweird.f32 %v1258
      %vm1265 = vmor %vm1263, %vm1264
      %v1266 = vsel %vm1265, %v1258, %v1262
      %v1267 = vand.u32 2147483647, %v700
      %vm1268 = vcmp.eq.f32.partialorder %v1267, 8.507059e+37
      %v1269 = vand.u32 %v700, 2147483648
      %v1270 = vor.u32 1.1754944e-38, %v1269
      %v1271 = vsel %vm1268, %v1270, %v1266
      %v1272 = vmul.f32 1.0, %v1271
      %v1273 = vrcp.pop %v701
      %v1274 = vmul.f32 %v701, %v1273
      %v1275 = vsub.f32 1.0, %v1274
      %v1276 = vmul.f32 %v1273, %v1275
      %v1277 = vadd.f32 %v1273, %v1276
      %vm1278 = vweird.f32 %v701
      %vm1279 = vweird.f32 %v1273
      %vm1280 = vmor %vm1278, %vm1279
      %v1281 = vsel %vm1280, %v1273, %v1277
      %v1282 = vand.u32 2147483647, %v701
      %vm1283 = vcmp.eq.f32.partialorder %v1282, 8.507059e+37
      %v1284 = vand.u32 %v701, 2147483648
      %v1285 = vor.u32 1.1754944e-38, %v1284
      %v1286 = vsel %vm1283, %v1285, %v1281
      %v1287 = vmul.f32 1.0, %v1286
      %v1288 = vrcp.pop %v702
      %v1289 = vmul.f32 %v702, %v1288
      %v1290 = vsub.f32 1.0, %v1289
      %v1291 = vmul.f32 %v1288, %v1290
      %v1292 = vadd.f32 %v1288, %v1291
      %vm1293 = vweird.f32 %v702
      %vm1294 = vweird.f32 %v1288
      %vm1295 = vmor %vm1293, %vm1294
      %v1296 = vsel %vm1295, %v1288, %v1292
      %v1297 = vand.u32 2147483647, %v702
      %vm1298 = vcmp.eq.f32.partialorder %v1297, 8.507059e+37
      %v1299 = vand.u32 %v702, 2147483648
      %v1300 = vor.u32 1.1754944e-38, %v1299
      %v1301 = vsel %vm1298, %v1300, %v1296
      %v1302 = vmul.f32 1.0, %v1301
      %v1303 = vrcp.pop %v703
      %v1304 = vmul.f32 %v703, %v1303
      %v1305 = vsub.f32 1.0, %v1304
      %v1306 = vmul.f32 %v1303, %v1305
      %v1307 = vadd.f32 %v1303, %v1306
      %vm1308 = vweird.f32 %v703
      %vm1309 = vweird.f32 %v1303
      %vm1310 = vmor %vm1308, %vm1309
      %v1311 = vsel %vm1310, %v1303, %v1307
      %v1312 = vand.u32 2147483647, %v703
      %vm1313 = vcmp.eq.f32.partialorder %v1312, 8.507059e+37
      %v1314 = vand.u32 %v703, 2147483648
      %v1315 = vor.u32 1.1754944e-38, %v1314
      %v1316 = vsel %vm1313, %v1315, %v1311
      %v1317 = vmul.f32 1.0, %v1316
      %v1318 = vrcp.pop %v704
      %v1319 = vmul.f32 %v704, %v1318
      %v1320 = vsub.f32 1.0, %v1319
      %v1321 = vmul.f32 %v1318, %v1320
      %v1322 = vadd.f32 %v1318, %v1321
      %vm1323 = vweird.f32 %v704
      %vm1324 = vweird.f32 %v1318
      %vm1325 = vmor %vm1323, %vm1324
      %v1326 = vsel %vm1325, %v1318, %v1322
      %v1327 = vand.u32 2147483647, %v704
      %vm1328 = vcmp.eq.f32.partialorder %v1327, 8.507059e+37
      %v1329 = vand.u32 %v704, 2147483648
      %v1330 = vor.u32 1.1754944e-38, %v1329
      %v1331 = vsel %vm1328, %v1330, %v1326
      %v1332 = vmul.f32 1.0, %v1331
      %v1333 = vrcp.pop %v705
      %v1334 = vmul.f32 %v705, %v1333
      %v1335 = vsub.f32 1.0, %v1334
      %v1336 = vmul.f32 %v1333, %v1335
      %v1337 = vadd.f32 %v1333, %v1336
      %vm1338 = vweird.f32 %v705
      %vm1339 = vweird.f32 %v1333
      %vm1340 = vmor %vm1338, %vm1339
      %v1341 = vsel %vm1340, %v1333, %v1337
      %v1342 = vand.u32 2147483647, %v705
      %vm1343 = vcmp.eq.f32.partialorder %v1342, 8.507059e+37
      %v1344 = vand.u32 %v705, 2147483648
      %v1345 = vor.u32 1.1754944e-38, %v1344
      %v1346 = vsel %vm1343, %v1345, %v1341
      %v1347 = vmul.f32 1.0, %v1346
      %v1348 = vrcp.pop %v706
      %v1349 = vmul.f32 %v706, %v1348
      %v1350 = vsub.f32 1.0, %v1349
      %v1351 = vmul.f32 %v1348, %v1350
      %v1352 = vadd.f32 %v1348, %v1351
      %vm1353 = vweird.f32 %v706
      %vm1354 = vweird.f32 %v1348
      %vm1355 = vmor %vm1353, %vm1354
      %v1356 = vsel %vm1355, %v1348, %v1352
      %v1357 = vand.u32 2147483647, %v706
      %vm1358 = vcmp.eq.f32.partialorder %v1357, 8.507059e+37
      %v1359 = vand.u32 %v706, 2147483648
      %v1360 = vor.u32 1.1754944e-38, %v1359
      %v1361 = vsel %vm1358, %v1360, %v1356
      %v1362 = vmul.f32 1.0, %v1361
      %v1363 = vrcp.pop %v707
      %v1364 = vmul.f32 %v707, %v1363
      %v1365 = vsub.f32 1.0, %v1364
      %v1366 = vmul.f32 %v1363, %v1365
      %v1367 = vadd.f32 %v1363, %v1366
      %vm1368 = vweird.f32 %v707
      %vm1369 = vweird.f32 %v1363
      %vm1370 = vmor %vm1368, %vm1369
      %v1371 = vsel %vm1370, %v1363, %v1367
      %v1372 = vand.u32 2147483647, %v707
      %vm1373 = vcmp.eq.f32.partialorder %v1372, 8.507059e+37
      %v1374 = vand.u32 %v707, 2147483648
      %v1375 = vor.u32 1.1754944e-38, %v1374
      %v1376 = vsel %vm1373, %v1375, %v1371
      %v1377 = vmul.f32 1.0, %v1376
      %v1378 = vrcp.pop %v708
      %v1379 = vmul.f32 %v708, %v1378
      %v1380 = vsub.f32 1.0, %v1379
      %v1381 = vmul.f32 %v1378, %v1380
      %v1382 = vadd.f32 %v1378, %v1381
      %vm1383 = vweird.f32 %v708
      %vm1384 = vweird.f32 %v1378
      %vm1385 = vmor %vm1383, %vm1384
      %v1386 = vsel %vm1385, %v1378, %v1382
      %v1387 = vand.u32 2147483647, %v708
      %vm1388 = vcmp.eq.f32.partialorder %v1387, 8.507059e+37
      %v1389 = vand.u32 %v708, 2147483648
      %v1390 = vor.u32 1.1754944e-38, %v1389
      %v1391 = vsel %vm1388, %v1390, %v1386
      %v1392 = vmul.f32 1.0, %v1391
      %v1393 = vrcp.pop %v709
      %v1394 = vmul.f32 %v709, %v1393
      %v1395 = vsub.f32 1.0, %v1394
      %v1396 = vmul.f32 %v1393, %v1395
      %v1397 = vadd.f32 %v1393, %v1396
      %vm1398 = vweird.f32 %v709
      %vm1399 = vweird.f32 %v1393
      %vm1400 = vmor %vm1398, %vm1399
      %v1401 = vsel %vm1400, %v1393, %v1397
      %v1402 = vand.u32 2147483647, %v709
      %vm1403 = vcmp.eq.f32.partialorder %v1402, 8.507059e+37
      %v1404 = vand.u32 %v709, 2147483648
      %v1405 = vor.u32 1.1754944e-38, %v1404
      %v1406 = vsel %vm1403, %v1405, %v1401
      %v1407 = vmul.f32 1.0, %v1406
      %v1408 = vrcp.pop %v710
      %v1409 = vmul.f32 %v710, %v1408
      %v1410 = vsub.f32 1.0, %v1409
      %v1411 = vmul.f32 %v1408, %v1410
      %v1412 = vadd.f32 %v1408, %v1411
      %vm1413 = vweird.f32 %v710
      %vm1414 = vweird.f32 %v1408
      %vm1415 = vmor %vm1413, %vm1414
      %v1416 = vsel %vm1415, %v1408, %v1412
      %v1417 = vand.u32 2147483647, %v710
      %vm1418 = vcmp.eq.f32.partialorder %v1417, 8.507059e+37
      %v1419 = vand.u32 %v710, 2147483648
      %v1420 = vor.u32 1.1754944e-38, %v1419
      %v1421 = vsel %vm1418, %v1420, %v1416
      %v1422 = vmul.f32 1.0, %v1421
      %v1423 = vrcp.pop %v711
      %v1424 = vmul.f32 %v711, %v1423
      %v1425 = vsub.f32 1.0, %v1424
      %v1426 = vmul.f32 %v1423, %v1425
      %v1427 = vadd.f32 %v1423, %v1426
      %vm1428 = vweird.f32 %v711
      %vm1429 = vweird.f32 %v1423
      %vm1430 = vmor %vm1428, %vm1429
      %v1431 = vsel %vm1430, %v1423, %v1427
      %v1432 = vand.u32 2147483647, %v711
      %vm1433 = vcmp.eq.f32.partialorder %v1432, 8.507059e+37
      %v1434 = vand.u32 %v711, 2147483648
      %v1435 = vor.u32 1.1754944e-38, %v1434
      %v1436 = vsel %vm1433, %v1435, %v1431
      %v1437 = vmul.f32 1.0, %v1436
      %v1438 = vrcp.pop %v712
      %v1439 = vmul.f32 %v712, %v1438
      %v1440 = vsub.f32 1.0, %v1439
      %v1441 = vmul.f32 %v1438, %v1440
      %v1442 = vadd.f32 %v1438, %v1441
      %vm1443 = vweird.f32 %v712
      %vm1444 = vweird.f32 %v1438
      %vm1445 = vmor %vm1443, %vm1444
      %v1446 = vsel %vm1445, %v1438, %v1442
      %v1447 = vand.u32 2147483647, %v712
      %vm1448 = vcmp.eq.f32.partialorder %v1447, 8.507059e+37
      %v1449 = vand.u32 %v712, 2147483648
      %v1450 = vor.u32 1.1754944e-38, %v1449
      %v1451 = vsel %vm1448, %v1450, %v1446
      %v1452 = vmul.f32 1.0, %v1451
      %v1453 = vrcp.pop %v713
      %v1454 = vmul.f32 %v713, %v1453
      %v1455 = vsub.f32 1.0, %v1454
      %v1456 = vmul.f32 %v1453, %v1455
      %v1457 = vadd.f32 %v1453, %v1456
      %vm1458 = vweird.f32 %v713
      %vm1459 = vweird.f32 %v1453
      %vm1460 = vmor %vm1458, %vm1459
      %v1461 = vsel %vm1460, %v1453, %v1457
      %v1462 = vand.u32 2147483647, %v713
      %vm1463 = vcmp.eq.f32.partialorder %v1462, 8.507059e+37
      %v1464 = vand.u32 %v713, 2147483648
      %v1465 = vor.u32 1.1754944e-38, %v1464
      %v1466 = vsel %vm1463, %v1465, %v1461
      %v1467 = vmul.f32 1.0, %v1466
      %v1468 = vrcp.pop %v714
      %v1469 = vmul.f32 %v714, %v1468
      %v1470 = vsub.f32 1.0, %v1469
      %v1471 = vmul.f32 %v1468, %v1470
      %v1472 = vadd.f32 %v1468, %v1471
      %vm1473 = vweird.f32 %v714
      %vm1474 = vweird.f32 %v1468
      %vm1475 = vmor %vm1473, %vm1474
      %v1476 = vsel %vm1475, %v1468, %v1472
      %v1477 = vand.u32 2147483647, %v714
      %vm1478 = vcmp.eq.f32.partialorder %v1477, 8.507059e+37
      %v1479 = vand.u32 %v714, 2147483648
      %v1480 = vor.u32 1.1754944e-38, %v1479
      %v1481 = vsel %vm1478, %v1480, %v1476
      %v1482 = vmul.f32 1.0, %v1481
      %v1483 = vrcp.pop %v715
      %v1484 = vmul.f32 %v715, %v1483
      %v1485 = vsub.f32 1.0, %v1484
      %v1486 = vmul.f32 %v1483, %v1485
      %v1487 = vadd.f32 %v1483, %v1486
      %vm1488 = vweird.f32 %v715
      %vm1489 = vweird.f32 %v1483
      %vm1490 = vmor %vm1488, %vm1489
      %v1491 = vsel %vm1490, %v1483, %v1487
      %v1492 = vand.u32 2147483647, %v715
      %vm1493 = vcmp.eq.f32.partialorder %v1492, 8.507059e+37
      %v1494 = vand.u32 %v715, 2147483648
      %v1495 = vor.u32 1.1754944e-38, %v1494
      %v1496 = vsel %vm1493, %v1495, %v1491
      %v1497 = vmul.f32 1.0, %v1496
      %v1498 = vrcp.pop %v716
      %v1499 = vmul.f32 %v716, %v1498
      %v1500 = vsub.f32 1.0, %v1499
      %v1501 = vmul.f32 %v1498, %v1500
      %v1502 = vadd.f32 %v1498, %v1501
      %vm1503 = vweird.f32 %v716
      %vm1504 = vweird.f32 %v1498
      %vm1505 = vmor %vm1503, %vm1504
      %v1506 = vsel %vm1505, %v1498, %v1502
      %v1507 = vand.u32 2147483647, %v716
      %vm1508 = vcmp.eq.f32.partialorder %v1507, 8.507059e+37
      %v1509 = vand.u32 %v716, 2147483648
      %v1510 = vor.u32 1.1754944e-38, %v1509
      %v1511 = vsel %vm1508, %v1510, %v1506
      %v1512 = vmul.f32 1.0, %v1511
      %v1513 = vrcp.pop %v717
      %v1514 = vmul.f32 %v717, %v1513
      %v1515 = vsub.f32 1.0, %v1514
      %v1516 = vmul.f32 %v1513, %v1515
      %v1517 = vadd.f32 %v1513, %v1516
      %vm1518 = vweird.f32 %v717
      %vm1519 = vweird.f32 %v1513
      %vm1520 = vmor %vm1518, %vm1519
      %v1521 = vsel %vm1520, %v1513, %v1517
      %v1522 = vand.u32 2147483647, %v717
      %vm1523 = vcmp.eq.f32.partialorder %v1522, 8.507059e+37
      %v1524 = vand.u32 %v717, 2147483648
      %v1525 = vor.u32 1.1754944e-38, %v1524
      %v1526 = vsel %vm1523, %v1525, %v1521
      %v1527 = vmul.f32 1.0, %v1526
      %v1528 = vrcp.pop %v718
      %v1529 = vmul.f32 %v718, %v1528
      %v1530 = vsub.f32 1.0, %v1529
      %v1531 = vmul.f32 %v1528, %v1530
      %v1532 = vadd.f32 %v1528, %v1531
      %vm1533 = vweird.f32 %v718
      %vm1534 = vweird.f32 %v1528
      %vm1535 = vmor %vm1533, %vm1534
      %v1536 = vsel %vm1535, %v1528, %v1532
      %v1537 = vand.u32 2147483647, %v718
      %vm1538 = vcmp.eq.f32.partialorder %v1537, 8.507059e+37
      %v1539 = vand.u32 %v718, 2147483648
      %v1540 = vor.u32 1.1754944e-38, %v1539
      %v1541 = vsel %vm1538, %v1540, %v1536
      %v1542 = vmul.f32 1.0, %v1541
      %v1543 = vrcp.pop %v719
      %v1544 = vmul.f32 %v719, %v1543
      %v1545 = vsub.f32 1.0, %v1544
      %v1546 = vmul.f32 %v1543, %v1545
      %v1547 = vadd.f32 %v1543, %v1546
      %vm1548 = vweird.f32 %v719
      %vm1549 = vweird.f32 %v1543
      %vm1550 = vmor %vm1548, %vm1549
      %v1551 = vsel %vm1550, %v1543, %v1547
      %v1552 = vand.u32 2147483647, %v719
      %vm1553 = vcmp.eq.f32.partialorder %v1552, 8.507059e+37
      %v1554 = vand.u32 %v719, 2147483648
      %v1555 = vor.u32 1.1754944e-38, %v1554
      %v1556 = vsel %vm1553, %v1555, %v1551
      %v1557 = vmul.f32 1.0, %v1556
      %v1558 = vrcp.pop %v720
      %v1559 = vmul.f32 %v720, %v1558
      %v1560 = vsub.f32 1.0, %v1559
      %v1561 = vmul.f32 %v1558, %v1560
      %v1562 = vadd.f32 %v1558, %v1561
      %vm1563 = vweird.f32 %v720
      %vm1564 = vweird.f32 %v1558
      %vm1565 = vmor %vm1563, %vm1564
      %v1566 = vsel %vm1565, %v1558, %v1562
      %v1567 = vand.u32 2147483647, %v720
      %vm1568 = vcmp.eq.f32.partialorder %v1567, 8.507059e+37
      %v1569 = vand.u32 %v720, 2147483648
      %v1570 = vor.u32 1.1754944e-38, %v1569
      %v1571 = vsel %vm1568, %v1570, %v1566
      %v1572 = vmul.f32 1.0, %v1571
      %v1573 = vrcp.pop %v721
      %v1574 = vmul.f32 %v721, %v1573
      %v1575 = vsub.f32 1.0, %v1574
      %v1576 = vmul.f32 %v1573, %v1575
      %v1577 = vadd.f32 %v1573, %v1576
      %vm1578 = vweird.f32 %v721
      %vm1579 = vweird.f32 %v1573
      %vm1580 = vmor %vm1578, %vm1579
      %v1581 = vsel %vm1580, %v1573, %v1577
      %v1582 = vand.u32 2147483647, %v721
      %vm1583 = vcmp.eq.f32.partialorder %v1582, 8.507059e+37
      %v1584 = vand.u32 %v721, 2147483648
      %v1585 = vor.u32 1.1754944e-38, %v1584
      %v1586 = vsel %vm1583, %v1585, %v1581
      %v1587 = vmul.f32 1.0, %v1586
      %v1588 = vrcp.pop %v722
      %v1589 = vmul.f32 %v722, %v1588
      %v1590 = vsub.f32 1.0, %v1589
      %v1591 = vmul.f32 %v1588, %v1590
      %v1592 = vadd.f32 %v1588, %v1591
      %vm1593 = vweird.f32 %v722
      %vm1594 = vweird.f32 %v1588
      %vm1595 = vmor %vm1593, %vm1594
      %v1596 = vsel %vm1595, %v1588, %v1592
      %v1597 = vand.u32 2147483647, %v722
      %vm1598 = vcmp.eq.f32.partialorder %v1597, 8.507059e+37
      %v1599 = vand.u32 %v722, 2147483648
      %v1600 = vor.u32 1.1754944e-38, %v1599
      %v1601 = vsel %vm1598, %v1600, %v1596
      %v1602 = vmul.f32 1.0, %v1601
      %v1603 = vrcp.pop %v723
      %v1604 = vmul.f32 %v723, %v1603
      %v1605 = vsub.f32 1.0, %v1604
      %v1606 = vmul.f32 %v1603, %v1605
      %v1607 = vadd.f32 %v1603, %v1606
      %vm1608 = vweird.f32 %v723
      %vm1609 = vweird.f32 %v1603
      %vm1610 = vmor %vm1608, %vm1609
      %v1611 = vsel %vm1610, %v1603, %v1607
      %v1612 = vand.u32 2147483647, %v723
      %vm1613 = vcmp.eq.f32.partialorder %v1612, 8.507059e+37
      %v1614 = vand.u32 %v723, 2147483648
      %v1615 = vor.u32 1.1754944e-38, %v1614
      %v1616 = vsel %vm1613, %v1615, %v1611
      %v1617 = vmul.f32 1.0, %v1616
      %v1618 = vrcp.pop %v724
      %v1619 = vmul.f32 %v724, %v1618
      %v1620 = vsub.f32 1.0, %v1619
      %v1621 = vmul.f32 %v1618, %v1620
      %v1622 = vadd.f32 %v1618, %v1621
      %vm1623 = vweird.f32 %v724
      %vm1624 = vweird.f32 %v1618
      %vm1625 = vmor %vm1623, %vm1624
      %v1626 = vsel %vm1625, %v1618, %v1622
      %v1627 = vand.u32 2147483647, %v724
      %vm1628 = vcmp.eq.f32.partialorder %v1627, 8.507059e+37
      %v1629 = vand.u32 %v724, 2147483648
      %v1630 = vor.u32 1.1754944e-38, %v1629
      %v1631 = vsel %vm1628, %v1630, %v1626
      %v1632 = vmul.f32 1.0, %v1631
      %v1633 = vrcp.pop %v725
      %v1634 = vmul.f32 %v725, %v1633
      %v1635 = vsub.f32 1.0, %v1634
      %v1636 = vmul.f32 %v1633, %v1635
      %v1637 = vadd.f32 %v1633, %v1636
      %vm1638 = vweird.f32 %v725
      %vm1639 = vweird.f32 %v1633
      %vm1640 = vmor %vm1638, %vm1639
      %v1641 = vsel %vm1640, %v1633, %v1637
      %v1642 = vand.u32 2147483647, %v725
      %vm1643 = vcmp.eq.f32.partialorder %v1642, 8.507059e+37
      %v1644 = vand.u32 %v725, 2147483648
      %v1645 = vor.u32 1.1754944e-38, %v1644
      %v1646 = vsel %vm1643, %v1645, %v1641
      %v1647 = vmul.f32 1.0, %v1646
      %v1648 = vrcp.pop %v726
      %v1649 = vmul.f32 %v726, %v1648
      %v1650 = vsub.f32 1.0, %v1649
      %v1651 = vmul.f32 %v1648, %v1650
      %v1652 = vadd.f32 %v1648, %v1651
      %vm1653 = vweird.f32 %v726
      %vm1654 = vweird.f32 %v1648
      %vm1655 = vmor %vm1653, %vm1654
      %v1656 = vsel %vm1655, %v1648, %v1652
      %v1657 = vand.u32 2147483647, %v726
      %vm1658 = vcmp.eq.f32.partialorder %v1657, 8.507059e+37
      %v1659 = vand.u32 %v726, 2147483648
      %v1660 = vor.u32 1.1754944e-38, %v1659
      %v1661 = vsel %vm1658, %v1660, %v1656
      %v1662 = vmul.f32 1.0, %v1661
      %v1663 = vrcp.pop %v727
      %v1664 = vmul.f32 %v727, %v1663
      %v1665 = vsub.f32 1.0, %v1664
      %v1666 = vmul.f32 %v1663, %v1665
      %v1667 = vadd.f32 %v1663, %v1666
      %vm1668 = vweird.f32 %v727
      %vm1669 = vweird.f32 %v1663
      %vm1670 = vmor %vm1668, %vm1669
      %v1671 = vsel %vm1670, %v1663, %v1667
      %v1672 = vand.u32 2147483647, %v727
      %vm1673 = vcmp.eq.f32.partialorder %v1672, 8.507059e+37
      %v1674 = vand.u32 %v727, 2147483648
      %v1675 = vor.u32 1.1754944e-38, %v1674
      %v1676 = vsel %vm1673, %v1675, %v1671
      %v1677 = vmul.f32 1.0, %v1676
      %v1678 = vrcp.pop %v728
      %v1679 = vmul.f32 %v728, %v1678
      %v1680 = vsub.f32 1.0, %v1679
      %v1681 = vmul.f32 %v1678, %v1680
      %v1682 = vadd.f32 %v1678, %v1681
      %vm1683 = vweird.f32 %v728
      %vm1684 = vweird.f32 %v1678
      %vm1685 = vmor %vm1683, %vm1684
      %v1686 = vsel %vm1685, %v1678, %v1682
      %v1687 = vand.u32 2147483647, %v728
      %vm1688 = vcmp.eq.f32.partialorder %v1687, 8.507059e+37
      %v1689 = vand.u32 %v728, 2147483648
      %v1690 = vor.u32 1.1754944e-38, %v1689
      %v1691 = vsel %vm1688, %v1690, %v1686
      %v1692 = vmul.f32 1.0, %v1691
      %v1693 = vrcp.pop %v729
      %v1694 = vmul.f32 %v729, %v1693
      %v1695 = vsub.f32 1.0, %v1694
      %v1696 = vmul.f32 %v1693, %v1695
      %v1697 = vadd.f32 %v1693, %v1696
      %vm1698 = vweird.f32 %v729
      %vm1699 = vweird.f32 %v1693
      %vm1700 = vmor %vm1698, %vm1699
      %v1701 = vsel %vm1700, %v1693, %v1697
      %v1702 = vand.u32 2147483647, %v729
      %vm1703 = vcmp.eq.f32.partialorder %v1702, 8.507059e+37
      %v1704 = vand.u32 %v729, 2147483648
      %v1705 = vor.u32 1.1754944e-38, %v1704
      %v1706 = vsel %vm1703, %v1705, %v1701
      %v1707 = vmul.f32 1.0, %v1706
      %v1708 = vrcp.pop %v730
      %v1709 = vmul.f32 %v730, %v1708
      %v1710 = vsub.f32 1.0, %v1709
      %v1711 = vmul.f32 %v1708, %v1710
      %v1712 = vadd.f32 %v1708, %v1711
      %vm1713 = vweird.f32 %v730
      %vm1714 = vweird.f32 %v1708
      %vm1715 = vmor %vm1713, %vm1714
      %v1716 = vsel %vm1715, %v1708, %v1712
      %v1717 = vand.u32 2147483647, %v730
      %vm1718 = vcmp.eq.f32.partialorder %v1717, 8.507059e+37
      %v1719 = vand.u32 %v730, 2147483648
      %v1720 = vor.u32 1.1754944e-38, %v1719
      %v1721 = vsel %vm1718, %v1720, %v1716
      %v1722 = vmul.f32 1.0, %v1721
      %v1723 = vrcp.pop %v731
      %v1724 = vmul.f32 %v731, %v1723
      %v1725 = vsub.f32 1.0, %v1724
      %v1726 = vmul.f32 %v1723, %v1725
      %v1727 = vadd.f32 %v1723, %v1726
      %vm1728 = vweird.f32 %v731
      %vm1729 = vweird.f32 %v1723
      %vm1730 = vmor %vm1728, %vm1729
      %v1731 = vsel %vm1730, %v1723, %v1727
      %v1732 = vand.u32 2147483647, %v731
      %vm1733 = vcmp.eq.f32.partialorder %v1732, 8.507059e+37
      %v1734 = vand.u32 %v731, 2147483648
      %v1735 = vor.u32 1.1754944e-38, %v1734
      %v1736 = vsel %vm1733, %v1735, %v1731
      %v1737 = vmul.f32 1.0, %v1736
      %v1738 = vrcp.pop %v732
      %v1739 = vmul.f32 %v732, %v1738
      %v1740 = vsub.f32 1.0, %v1739
      %v1741 = vmul.f32 %v1738, %v1740
      %v1742 = vadd.f32 %v1738, %v1741
      %vm1743 = vweird.f32 %v732
      %vm1744 = vweird.f32 %v1738
      %vm1745 = vmor %vm1743, %vm1744
      %v1746 = vsel %vm1745, %v1738, %v1742
      %v1747 = vand.u32 2147483647, %v732
      %vm1748 = vcmp.eq.f32.partialorder %v1747, 8.507059e+37
      %v1749 = vand.u32 %v732, 2147483648
      %v1750 = vor.u32 1.1754944e-38, %v1749
      %v1751 = vsel %vm1748, %v1750, %v1746
      %v1752 = vmul.f32 1.0, %v1751
      %v1753 = vrcp.pop %v733
      %v1754 = vmul.f32 %v733, %v1753
      %v1755 = vsub.f32 1.0, %v1754
      %v1756 = vmul.f32 %v1753, %v1755
      %v1757 = vadd.f32 %v1753, %v1756
      %vm1758 = vweird.f32 %v733
      %vm1759 = vweird.f32 %v1753
      %vm1760 = vmor %vm1758, %vm1759
      %v1761 = vsel %vm1760, %v1753, %v1757
      %v1762 = vand.u32 2147483647, %v733
      %vm1763 = vcmp.eq.f32.partialorder %v1762, 8.507059e+37
      %v1764 = vand.u32 %v733, 2147483648
      %v1765 = vor.u32 1.1754944e-38, %v1764
      %v1766 = vsel %vm1763, %v1765, %v1761
      %v1767 = vmul.f32 1.0, %v1766
      %v1768 = vrcp.pop %v734
      %v1769 = vmul.f32 %v734, %v1768
      %v1770 = vsub.f32 1.0, %v1769
      %v1771 = vmul.f32 %v1768, %v1770
      %v1772 = vadd.f32 %v1768, %v1771
      %vm1773 = vweird.f32 %v734
      %vm1774 = vweird.f32 %v1768
      %vm1775 = vmor %vm1773, %vm1774
      %v1776 = vsel %vm1775, %v1768, %v1772
      %v1777 = vand.u32 2147483647, %v734
      %vm1778 = vcmp.eq.f32.partialorder %v1777, 8.507059e+37
      %v1779 = vand.u32 %v734, 2147483648
      %v1780 = vor.u32 1.1754944e-38, %v1779
      %v1781 = vsel %vm1778, %v1780, %v1776
      %v1782 = vmul.f32 1.0, %v1781
      %v1783 = vrcp.pop %v735
      %v1784 = vmul.f32 %v735, %v1783
      %v1785 = vsub.f32 1.0, %v1784
      %v1786 = vmul.f32 %v1783, %v1785
      %v1787 = vadd.f32 %v1783, %v1786
      %vm1788 = vweird.f32 %v735
      %vm1789 = vweird.f32 %v1783
      %vm1790 = vmor %vm1788, %vm1789
      %v1791 = vsel %vm1790, %v1783, %v1787
      %v1792 = vand.u32 2147483647, %v735
      %vm1793 = vcmp.eq.f32.partialorder %v1792, 8.507059e+37
      %v1794 = vand.u32 %v735, 2147483648
      %v1795 = vor.u32 1.1754944e-38, %v1794
      %v1796 = vsel %vm1793, %v1795, %v1791
      %v1797 = vmul.f32 1.0, %v1796
      %v1798 = vrcp.pop %v736
      %v1799 = vmul.f32 %v736, %v1798
      %v1800 = vsub.f32 1.0, %v1799
      %v1801 = vmul.f32 %v1798, %v1800
      %v1802 = vadd.f32 %v1798, %v1801
      %vm1803 = vweird.f32 %v736
      %vm1804 = vweird.f32 %v1798
      %vm1805 = vmor %vm1803, %vm1804
      %v1806 = vsel %vm1805, %v1798, %v1802
      %v1807 = vand.u32 2147483647, %v736
      %vm1808 = vcmp.eq.f32.partialorder %v1807, 8.507059e+37
      %v1809 = vand.u32 %v736, 2147483648
      %v1810 = vor.u32 1.1754944e-38, %v1809
      %v1811 = vsel %vm1808, %v1810, %v1806
      %v1812 = vmul.f32 1.0, %v1811
      %v1813 = vrcp.pop %v737
      %v1814 = vmul.f32 %v737, %v1813
      %v1815 = vsub.f32 1.0, %v1814
      %v1816 = vmul.f32 %v1813, %v1815
      %v1817 = vadd.f32 %v1813, %v1816
      %vm1818 = vweird.f32 %v737
      %vm1819 = vweird.f32 %v1813
      %vm1820 = vmor %vm1818, %vm1819
      %v1821 = vsel %vm1820, %v1813, %v1817
      %v1822 = vand.u32 2147483647, %v737
      %vm1823 = vcmp.eq.f32.partialorder %v1822, 8.507059e+37
      %v1824 = vand.u32 %v737, 2147483648
      %v1825 = vor.u32 1.1754944e-38, %v1824
      %v1826 = vsel %vm1823, %v1825, %v1821
      %v1827 = vmul.f32 1.0, %v1826
      %v1828 = vrcp.pop %v738
      %v1829 = vmul.f32 %v738, %v1828
      %v1830 = vsub.f32 1.0, %v1829
      %v1831 = vmul.f32 %v1828, %v1830
      %v1832 = vadd.f32 %v1828, %v1831
      %vm1833 = vweird.f32 %v738
      %vm1834 = vweird.f32 %v1828
      %vm1835 = vmor %vm1833, %vm1834
      %v1836 = vsel %vm1835, %v1828, %v1832
      %v1837 = vand.u32 2147483647, %v738
      %vm1838 = vcmp.eq.f32.partialorder %v1837, 8.507059e+37
      %v1839 = vand.u32 %v738, 2147483648
      %v1840 = vor.u32 1.1754944e-38, %v1839
      %v1841 = vsel %vm1838, %v1840, %v1836
      %v1842 = vmul.f32 1.0, %v1841
      %v1843 = vrcp.pop %v739
      %v1844 = vmul.f32 %v739, %v1843
      %v1845 = vsub.f32 1.0, %v1844
      %v1846 = vmul.f32 %v1843, %v1845
      %v1847 = vadd.f32 %v1843, %v1846
      %vm1848 = vweird.f32 %v739
      %vm1849 = vweird.f32 %v1843
      %vm1850 = vmor %vm1848, %vm1849
      %v1851 = vsel %vm1850, %v1843, %v1847
      %v1852 = vand.u32 2147483647, %v739
      %vm1853 = vcmp.eq.f32.partialorder %v1852, 8.507059e+37
      %v1854 = vand.u32 %v739, 2147483648
      %v1855 = vor.u32 1.1754944e-38, %v1854
      %v1856 = vsel %vm1853, %v1855, %v1851
      %v1857 = vmul.f32 1.0, %v1856
      %v1858 = vrcp.pop %v740
      %v1859 = vmul.f32 %v740, %v1858
      %v1860 = vsub.f32 1.0, %v1859
      %v1861 = vmul.f32 %v1858, %v1860
      %v1862 = vadd.f32 %v1858, %v1861
      %vm1863 = vweird.f32 %v740
      %vm1864 = vweird.f32 %v1858
      %vm1865 = vmor %vm1863, %vm1864
      %v1866 = vsel %vm1865, %v1858, %v1862
      %v1867 = vand.u32 2147483647, %v740
      %vm1868 = vcmp.eq.f32.partialorder %v1867, 8.507059e+37
      %v1869 = vand.u32 %v740, 2147483648
      %v1870 = vor.u32 1.1754944e-38, %v1869
      %v1871 = vsel %vm1868, %v1870, %v1866
      %v1872 = vmul.f32 1.0, %v1871
      %v1873 = vrcp.pop %v741
      %v1874 = vmul.f32 %v741, %v1873
      %v1875 = vsub.f32 1.0, %v1874
      %v1876 = vmul.f32 %v1873, %v1875
      %v1877 = vadd.f32 %v1873, %v1876
      %vm1878 = vweird.f32 %v741
      %vm1879 = vweird.f32 %v1873
      %vm1880 = vmor %vm1878, %vm1879
      %v1881 = vsel %vm1880, %v1873, %v1877
      %v1882 = vand.u32 2147483647, %v741
      %vm1883 = vcmp.eq.f32.partialorder %v1882, 8.507059e+37
      %v1884 = vand.u32 %v741, 2147483648
      %v1885 = vor.u32 1.1754944e-38, %v1884
      %v1886 = vsel %vm1883, %v1885, %v1881
      %v1887 = vmul.f32 1.0, %v1886
      %v1888 = vrcp.pop %v742
      %v1889 = vmul.f32 %v742, %v1888
      %v1890 = vsub.f32 1.0, %v1889
      %v1891 = vmul.f32 %v1888, %v1890
      %v1892 = vadd.f32 %v1888, %v1891
      %vm1893 = vweird.f32 %v742
      %vm1894 = vweird.f32 %v1888
      %vm1895 = vmor %vm1893, %vm1894
      %v1896 = vsel %vm1895, %v1888, %v1892
      %v1897 = vand.u32 2147483647, %v742
      %vm1898 = vcmp.eq.f32.partialorder %v1897, 8.507059e+37
      %v1899 = vand.u32 %v742, 2147483648
      %v1900 = vor.u32 1.1754944e-38, %v1899
      %v1901 = vsel %vm1898, %v1900, %v1896
      %v1902 = vmul.f32 1.0, %v1901
      %v1903 = vrcp.pop %v743
      %v1904 = vmul.f32 %v743, %v1903
      %v1905 = vsub.f32 1.0, %v1904
      %v1906 = vmul.f32 %v1903, %v1905
      %v1907 = vadd.f32 %v1903, %v1906
      %vm1908 = vweird.f32 %v743
      %vm1909 = vweird.f32 %v1903
      %vm1910 = vmor %vm1908, %vm1909
      %v1911 = vsel %vm1910, %v1903, %v1907
      %v1912 = vand.u32 2147483647, %v743
      %vm1913 = vcmp.eq.f32.partialorder %v1912, 8.507059e+37
      %v1914 = vand.u32 %v743, 2147483648
      %v1915 = vor.u32 1.1754944e-38, %v1914
      %v1916 = vsel %vm1913, %v1915, %v1911
      %v1917 = vmul.f32 1.0, %v1916
      %v1918 = vrcp.pop %v744
      %v1919 = vmul.f32 %v744, %v1918
      %v1920 = vsub.f32 1.0, %v1919
      %v1921 = vmul.f32 %v1918, %v1920
      %v1922 = vadd.f32 %v1918, %v1921
      %vm1923 = vweird.f32 %v744
      %vm1924 = vweird.f32 %v1918
      %vm1925 = vmor %vm1923, %vm1924
      %v1926 = vsel %vm1925, %v1918, %v1922
      %v1927 = vand.u32 2147483647, %v744
      %vm1928 = vcmp.eq.f32.partialorder %v1927, 8.507059e+37
      %v1929 = vand.u32 %v744, 2147483648
      %v1930 = vor.u32 1.1754944e-38, %v1929
      %v1931 = vsel %vm1928, %v1930, %v1926
      %v1932 = vmul.f32 1.0, %v1931
      %v1933 = vrcp.pop %v745
      %v1934 = vmul.f32 %v745, %v1933
      %v1935 = vsub.f32 1.0, %v1934
      %v1936 = vmul.f32 %v1933, %v1935
      %v1937 = vadd.f32 %v1933, %v1936
      %vm1938 = vweird.f32 %v745
      %vm1939 = vweird.f32 %v1933
      %vm1940 = vmor %vm1938, %vm1939
      %v1941 = vsel %vm1940, %v1933, %v1937
      %v1942 = vand.u32 2147483647, %v745
      %vm1943 = vcmp.eq.f32.partialorder %v1942, 8.507059e+37
      %v1944 = vand.u32 %v745, 2147483648
      %v1945 = vor.u32 1.1754944e-38, %v1944
      %v1946 = vsel %vm1943, %v1945, %v1941
      %v1947 = vmul.f32 1.0, %v1946
      %v1948 = vrcp.pop %v746
      %v1949 = vmul.f32 %v746, %v1948
      %v1950 = vsub.f32 1.0, %v1949
      %v1951 = vmul.f32 %v1948, %v1950
      %v1952 = vadd.f32 %v1948, %v1951
      %vm1953 = vweird.f32 %v746
      %vm1954 = vweird.f32 %v1948
      %vm1955 = vmor %vm1953, %vm1954
      %v1956 = vsel %vm1955, %v1948, %v1952
      %v1957 = vand.u32 2147483647, %v746
      %vm1958 = vcmp.eq.f32.partialorder %v1957, 8.507059e+37
      %v1959 = vand.u32 %v746, 2147483648
      %v1960 = vor.u32 1.1754944e-38, %v1959
      %v1961 = vsel %vm1958, %v1960, %v1956
      %v1962 = vmul.f32 1.0, %v1961
      %v1963 = vrcp.pop %v747
      %v1964 = vmul.f32 %v747, %v1963
      %v1965 = vsub.f32 1.0, %v1964
      %v1966 = vmul.f32 %v1963, %v1965
      %v1967 = vadd.f32 %v1963, %v1966
      %vm1968 = vweird.f32 %v747
      %vm1969 = vweird.f32 %v1963
      %vm1970 = vmor %vm1968, %vm1969
      %v1971 = vsel %vm1970, %v1963, %v1967
      %v1972 = vand.u32 2147483647, %v747
      %vm1973 = vcmp.eq.f32.partialorder %v1972, 8.507059e+37
      %v1974 = vand.u32 %v747, 2147483648
      %v1975 = vor.u32 1.1754944e-38, %v1974
      %v1976 = vsel %vm1973, %v1975, %v1971
      %v1977 = vmul.f32 1.0, %v1976
      %v1978 = vrcp.pop %v748
      %v1979 = vmul.f32 %v748, %v1978
      %v1980 = vsub.f32 1.0, %v1979
      %v1981 = vmul.f32 %v1978, %v1980
      %v1982 = vadd.f32 %v1978, %v1981
      %vm1983 = vweird.f32 %v748
      %vm1984 = vweird.f32 %v1978
      %vm1985 = vmor %vm1983, %vm1984
      %v1986 = vsel %vm1985, %v1978, %v1982
      %v1987 = vand.u32 2147483647, %v748
      %vm1988 = vcmp.eq.f32.partialorder %v1987, 8.507059e+37
      %v1989 = vand.u32 %v748, 2147483648
      %v1990 = vor.u32 1.1754944e-38, %v1989
      %v1991 = vsel %vm1988, %v1990, %v1986
      %v1992 = vmul.f32 1.0, %v1991
      %v1993 = vrcp.pop %v749
      %v1994 = vmul.f32 %v749, %v1993
      %v1995 = vsub.f32 1.0, %v1994
      %v1996 = vmul.f32 %v1993, %v1995
      %v1997 = vadd.f32 %v1993, %v1996
      %vm1998 = vweird.f32 %v749
      %vm1999 = vweird.f32 %v1993
      %vm2000 = vmor %vm1998, %vm1999
      %v2001 = vsel %vm2000, %v1993, %v1997
      %v2002 = vand.u32 2147483647, %v749
      %vm2003 = vcmp.eq.f32.partialorder %v2002, 8.507059e+37
      %v2004 = vand.u32 %v749, 2147483648
      %v2005 = vor.u32 1.1754944e-38, %v2004
      %v2006 = vsel %vm2003, %v2005, %v2001
      %v2007 = vmul.f32 1.0, %v2006
      %v2008 = vrcp.pop %v750
      %v2009 = vmul.f32 %v750, %v2008
      %v2010 = vsub.f32 1.0, %v2009
      %v2011 = vmul.f32 %v2008, %v2010
      %v2012 = vadd.f32 %v2008, %v2011
      %vm2013 = vweird.f32 %v750
      %vm2014 = vweird.f32 %v2008
      %vm2015 = vmor %vm2013, %vm2014
      %v2016 = vsel %vm2015, %v2008, %v2012
      %v2017 = vand.u32 2147483647, %v750
      %vm2018 = vcmp.eq.f32.partialorder %v2017, 8.507059e+37
      %v2019 = vand.u32 %v750, 2147483648
      %v2020 = vor.u32 1.1754944e-38, %v2019
      %v2021 = vsel %vm2018, %v2020, %v2016
      %v2022 = vmul.f32 1.0, %v2021
      %v2023 = vrcp.pop %v751
      %v2024 = vmul.f32 %v751, %v2023
      %v2025 = vsub.f32 1.0, %v2024
      %v2026 = vmul.f32 %v2023, %v2025
      %v2027 = vadd.f32 %v2023, %v2026
      %vm2028 = vweird.f32 %v751
      %vm2029 = vweird.f32 %v2023
      %vm2030 = vmor %vm2028, %vm2029
      %v2031 = vsel %vm2030, %v2023, %v2027
      %v2032 = vand.u32 2147483647, %v751
      %vm2033 = vcmp.eq.f32.partialorder %v2032, 8.507059e+37
      %v2034 = vand.u32 %v751, 2147483648
      %v2035 = vor.u32 1.1754944e-38, %v2034
      %v2036 = vsel %vm2033, %v2035, %v2031
      %v2037 = vmul.f32 1.0, %v2036
      %v2038 = vrcp.pop %v752
      %v2039 = vmul.f32 %v752, %v2038
      %v2040 = vsub.f32 1.0, %v2039
      %v2041 = vmul.f32 %v2038, %v2040
      %v2042 = vadd.f32 %v2038, %v2041
      %vm2043 = vweird.f32 %v752
      %vm2044 = vweird.f32 %v2038
      %vm2045 = vmor %vm2043, %vm2044
      %v2046 = vsel %vm2045, %v2038, %v2042
      %v2047 = vand.u32 2147483647, %v752
      %vm2048 = vcmp.eq.f32.partialorder %v2047, 8.507059e+37
      %v2049 = vand.u32 %v752, 2147483648
      %v2050 = vor.u32 1.1754944e-38, %v2049
      %v2051 = vsel %vm2048, %v2050, %v2046
      %v2052 = vmul.f32 1.0, %v2051
      %v2053 = vrcp.pop %v753
      %v2054 = vmul.f32 %v753, %v2053
      %v2055 = vsub.f32 1.0, %v2054
      %v2056 = vmul.f32 %v2053, %v2055
      %v2057 = vadd.f32 %v2053, %v2056
      %vm2058 = vweird.f32 %v753
      %vm2059 = vweird.f32 %v2053
      %vm2060 = vmor %vm2058, %vm2059
      %v2061 = vsel %vm2060, %v2053, %v2057
      %v2062 = vand.u32 2147483647, %v753
      %vm2063 = vcmp.eq.f32.partialorder %v2062, 8.507059e+37
      %v2064 = vand.u32 %v753, 2147483648
      %v2065 = vor.u32 1.1754944e-38, %v2064
      %v2066 = vsel %vm2063, %v2065, %v2061
      %v2067 = vmul.f32 1.0, %v2066
      %v2068 = vrcp.pop %v754
      %v2069 = vmul.f32 %v754, %v2068
      %v2070 = vsub.f32 1.0, %v2069
      %v2071 = vmul.f32 %v2068, %v2070
      %v2072 = vadd.f32 %v2068, %v2071
      %vm2073 = vweird.f32 %v754
      %vm2074 = vweird.f32 %v2068
      %vm2075 = vmor %vm2073, %vm2074
      %v2076 = vsel %vm2075, %v2068, %v2072
      %v2077 = vand.u32 2147483647, %v754
      %vm2078 = vcmp.eq.f32.partialorder %v2077, 8.507059e+37
      %v2079 = vand.u32 %v754, 2147483648
      %v2080 = vor.u32 1.1754944e-38, %v2079
      %v2081 = vsel %vm2078, %v2080, %v2076
      %v2082 = vmul.f32 1.0, %v2081
      %v2083 = vrcp.pop %v755
      %v2084 = vmul.f32 %v755, %v2083
      %v2085 = vsub.f32 1.0, %v2084
      %v2086 = vmul.f32 %v2083, %v2085
      %v2087 = vadd.f32 %v2083, %v2086
      %vm2088 = vweird.f32 %v755
      %vm2089 = vweird.f32 %v2083
      %vm2090 = vmor %vm2088, %vm2089
      %v2091 = vsel %vm2090, %v2083, %v2087
      %v2092 = vand.u32 2147483647, %v755
      %vm2093 = vcmp.eq.f32.partialorder %v2092, 8.507059e+37
      %v2094 = vand.u32 %v755, 2147483648
      %v2095 = vor.u32 1.1754944e-38, %v2094
      %v2096 = vsel %vm2093, %v2095, %v2091
      %v2097 = vmul.f32 1.0, %v2096
      %v2098 = vrcp.pop %v756
      %v2099 = vmul.f32 %v756, %v2098
      %v2100 = vsub.f32 1.0, %v2099
      %v2101 = vmul.f32 %v2098, %v2100
      %v2102 = vadd.f32 %v2098, %v2101
      %vm2103 = vweird.f32 %v756
      %vm2104 = vweird.f32 %v2098
      %vm2105 = vmor %vm2103, %vm2104
      %v2106 = vsel %vm2105, %v2098, %v2102
      %v2107 = vand.u32 2147483647, %v756
      %vm2108 = vcmp.eq.f32.partialorder %v2107, 8.507059e+37
      %v2109 = vand.u32 %v756, 2147483648
      %v2110 = vor.u32 1.1754944e-38, %v2109
      %v2111 = vsel %vm2108, %v2110, %v2106
      %v2112 = vmul.f32 1.0, %v2111
      %v2113 = vrcp.pop %v757
      %v2114 = vmul.f32 %v757, %v2113
      %v2115 = vsub.f32 1.0, %v2114
      %v2116 = vmul.f32 %v2113, %v2115
      %v2117 = vadd.f32 %v2113, %v2116
      %vm2118 = vweird.f32 %v757
      %vm2119 = vweird.f32 %v2113
      %vm2120 = vmor %vm2118, %vm2119
      %v2121 = vsel %vm2120, %v2113, %v2117
      %v2122 = vand.u32 2147483647, %v757
      %vm2123 = vcmp.eq.f32.partialorder %v2122, 8.507059e+37
      %v2124 = vand.u32 %v757, 2147483648
      %v2125 = vor.u32 1.1754944e-38, %v2124
      %v2126 = vsel %vm2123, %v2125, %v2121
      %v2127 = vmul.f32 1.0, %v2126
      %v2128 = vrcp.pop %v758
      %v2129 = vmul.f32 %v758, %v2128
      %v2130 = vsub.f32 1.0, %v2129
      %v2131 = vmul.f32 %v2128, %v2130
      %v2132 = vadd.f32 %v2128, %v2131
      %vm2133 = vweird.f32 %v758
      %vm2134 = vweird.f32 %v2128
      %vm2135 = vmor %vm2133, %vm2134
      %v2136 = vsel %vm2135, %v2128, %v2132
      %v2137 = vand.u32 2147483647, %v758
      %vm2138 = vcmp.eq.f32.partialorder %v2137, 8.507059e+37
      %v2139 = vand.u32 %v758, 2147483648
      %v2140 = vor.u32 1.1754944e-38, %v2139
      %v2141 = vsel %vm2138, %v2140, %v2136
      %v2142 = vmul.f32 1.0, %v2141
      %v2143 = vrcp.pop %v759
      %v2144 = vmul.f32 %v759, %v2143
      %v2145 = vsub.f32 1.0, %v2144
      %v2146 = vmul.f32 %v2143, %v2145
      %v2147 = vadd.f32 %v2143, %v2146
      %vm2148 = vweird.f32 %v759
      %vm2149 = vweird.f32 %v2143
      %vm2150 = vmor %vm2148, %vm2149
      %v2151 = vsel %vm2150, %v2143, %v2147
      %v2152 = vand.u32 2147483647, %v759
      %vm2153 = vcmp.eq.f32.partialorder %v2152, 8.507059e+37
      %v2154 = vand.u32 %v759, 2147483648
      %v2155 = vor.u32 1.1754944e-38, %v2154
      %v2156 = vsel %vm2153, %v2155, %v2151
      %v2157 = vmul.f32 1.0, %v2156
      %v2158 = vrcp.pop %v760
      %v2159 = vmul.f32 %v760, %v2158
      %v2160 = vsub.f32 1.0, %v2159
      %v2161 = vmul.f32 %v2158, %v2160
      %v2162 = vadd.f32 %v2158, %v2161
      %vm2163 = vweird.f32 %v760
      %vm2164 = vweird.f32 %v2158
      %vm2165 = vmor %vm2163, %vm2164
      %v2166 = vsel %vm2165, %v2158, %v2162
      %v2167 = vand.u32 2147483647, %v760
      %vm2168 = vcmp.eq.f32.partialorder %v2167, 8.507059e+37
      %v2169 = vand.u32 %v760, 2147483648
      %v2170 = vor.u32 1.1754944e-38, %v2169
      %v2171 = vsel %vm2168, %v2170, %v2166
      %v2172 = vmul.f32 1.0, %v2171
      %v2173 = vrcp.pop %v761
      %v2174 = vmul.f32 %v761, %v2173
      %v2175 = vsub.f32 1.0, %v2174
      %v2176 = vmul.f32 %v2173, %v2175
      %v2177 = vadd.f32 %v2173, %v2176
      %vm2178 = vweird.f32 %v761
      %vm2179 = vweird.f32 %v2173
      %vm2180 = vmor %vm2178, %vm2179
      %v2181 = vsel %vm2180, %v2173, %v2177
      %v2182 = vand.u32 2147483647, %v761
      %vm2183 = vcmp.eq.f32.partialorder %v2182, 8.507059e+37
      %v2184 = vand.u32 %v761, 2147483648
      %v2185 = vor.u32 1.1754944e-38, %v2184
      %v2186 = vsel %vm2183, %v2185, %v2181
      %v2187 = vmul.f32 1.0, %v2186
      %v2188 = vrcp.pop %v762
      %v2189 = vmul.f32 %v762, %v2188
      %v2190 = vsub.f32 1.0, %v2189
      %v2191 = vmul.f32 %v2188, %v2190
      %v2192 = vadd.f32 %v2188, %v2191
      %vm2193 = vweird.f32 %v762
      %vm2194 = vweird.f32 %v2188
      %vm2195 = vmor %vm2193, %vm2194
      %v2196 = vsel %vm2195, %v2188, %v2192
      %v2197 = vand.u32 2147483647, %v762
      %vm2198 = vcmp.eq.f32.partialorder %v2197, 8.507059e+37
      %v2199 = vand.u32 %v762, 2147483648
      %v2200 = vor.u32 1.1754944e-38, %v2199
      %v2201 = vsel %vm2198, %v2200, %v2196
      %v2202 = vmul.f32 1.0, %v2201
      %v2203 = vld [vmem:[%s251] sm:$0xff]
      %v2204 = vld [vmem:[%s251 + $0x8] sm:$0xff]
      %v2205 = vld [vmem:[%s251 + $0x10] sm:$0xff]
      %v2206 = vld [vmem:[%s251 + $0x18] sm:$0xff]
      %v2207 = vld [vmem:[%s251 + $0x20] sm:$0xff]
      %v2208 = vld [vmem:[%s251 + $0x28] sm:$0xff]
      %v2209 = vld [vmem:[%s251 + $0x30] sm:$0xff]
      %v2210 = vld [vmem:[%s251 + $0x38] sm:$0xff]
      %v2211 = vld [vmem:[%s251 + $0x40] sm:$0xff]
      %v2212 = vld [vmem:[%s251 + $0x48] sm:$0xff]
      %v2213 = vld [vmem:[%s251 + $0x50] sm:$0xff]
      %v2214 = vld [vmem:[%s251 + $0x58] sm:$0xff]
      %v2215 = vld [vmem:[%s251 + $0x60] sm:$0xff]
      %v2216 = vld [vmem:[%s251 + $0x68] sm:$0xff]
      %v2217 = vld [vmem:[%s251 + $0x70] sm:$0xff]
      %v2218 = vld [vmem:[%s251 + $0x78] sm:$0xff]
      %v2219 = vld [vmem:[%s251 + $0x80] sm:$0xff]
      %v2220 = vld [vmem:[%s251 + $0x88] sm:$0xff]
      %v2221 = vld [vmem:[%s251 + $0x90] sm:$0xff]
      %v2222 = vld [vmem:[%s251 + $0x98] sm:$0xff]
      %v2223 = vld [vmem:[%s251 + $0xa0] sm:$0xff]
      %v2224 = vld [vmem:[%s251 + $0xa8] sm:$0xff]
      %v2225 = vld [vmem:[%s251 + $0xb0] sm:$0xff]
      %v2226 = vld [vmem:[%s251 + $0xb8] sm:$0xff]
      %v2227 = vld [vmem:[%s251 + $0xc0] sm:$0xff]
      %v2228 = vld [vmem:[%s251 + $0xc8] sm:$0xff]
      %v2229 = vld [vmem:[%s251 + $0xd0] sm:$0xff]
      %v2230 = vld [vmem:[%s251 + $0xd8] sm:$0xff]
      %v2231 = vld [vmem:[%s251 + $0xe0] sm:$0xff]
      %v2232 = vld [vmem:[%s251 + $0xe8] sm:$0xff]
      %v2233 = vld [vmem:[%s251 + $0xf0] sm:$0xff]
      %v2234 = vld [vmem:[%s251 + $0xf8] sm:$0xff]
      %v2235 = vadd.f32 %v777, %v2203
      %v2236 = vadd.f32 %v792, %v2204
      %v2237 = vadd.f32 %v807, %v2205
      %v2238 = vadd.f32 %v822, %v2206
      %v2239 = vadd.f32 %v837, %v2207
      %v2240 = vadd.f32 %v852, %v2208
      %v2241 = vadd.f32 %v867, %v2209
      %v2242 = vadd.f32 %v882, %v2210
      %v2243 = vadd.f32 %v897, %v2211
      %v2244 = vadd.f32 %v912, %v2212
      %v2245 = vadd.f32 %v927, %v2213
      %v2246 = vadd.f32 %v942, %v2214
      %v2247 = vadd.f32 %v957, %v2215
      %v2248 = vadd.f32 %v972, %v2216
      %v2249 = vadd.f32 %v987, %v2217
      %v2250 = vadd.f32 %v1002, %v2218
      %v2251 = vadd.f32 %v1017, %v2219
      %v2252 = vadd.f32 %v1032, %v2220
      %v2253 = vadd.f32 %v1047, %v2221
      %v2254 = vadd.f32 %v1062, %v2222
      %v2255 = vadd.f32 %v1077, %v2223
      %v2256 = vadd.f32 %v1092, %v2224
      %v2257 = vadd.f32 %v1107, %v2225
      %v2258 = vadd.f32 %v1122, %v2226
      %v2259 = vadd.f32 %v1137, %v2227
      %v2260 = vadd.f32 %v1152, %v2228
      %v2261 = vadd.f32 %v1167, %v2229
      %v2262 = vadd.f32 %v1182, %v2230
      %v2263 = vadd.f32 %v1197, %v2231
      %v2264 = vadd.f32 %v1212, %v2232
      %v2265 = vadd.f32 %v1227, %v2233
      %v2266 = vadd.f32 %v1242, %v2234
      %v2267 = vadd.f32 %v1257, %v2203
      %v2268 = vadd.f32 %v1272, %v2204
      %v2269 = vadd.f32 %v1287, %v2205
      %v2270 = vadd.f32 %v1302, %v2206
      %v2271 = vadd.f32 %v1317, %v2207
      %v2272 = vadd.f32 %v1332, %v2208
      %v2273 = vadd.f32 %v1347, %v2209
      %v2274 = vadd.f32 %v1362, %v2210
      %v2275 = vadd.f32 %v1377, %v2211
      %v2276 = vadd.f32 %v1392, %v2212
      %v2277 = vadd.f32 %v1407, %v2213
      %v2278 = vadd.f32 %v1422, %v2214
      %v2279 = vadd.f32 %v1437, %v2215
      %v2280 = vadd.f32 %v1452, %v2216
      %v2281 = vadd.f32 %v1467, %v2217
      %v2282 = vadd.f32 %v1482, %v2218
      %v2283 = vadd.f32 %v1497, %v2219
      %v2284 = vadd.f32 %v1512, %v2220
      %v2285 = vadd.f32 %v1527, %v2221
      %v2286 = vadd.f32 %v1542, %v2222
      %v2287 = vadd.f32 %v1557, %v2223
      %v2288 = vadd.f32 %v1572, %v2224
      %v2289 = vadd.f32 %v1587, %v2225
      %v2290 = vadd.f32 %v1602, %v2226
      %v2291 = vadd.f32 %v1617, %v2227
      %v2292 = vadd.f32 %v1632, %v2228
      %v2293 = vadd.f32 %v1647, %v2229
      %v2294 = vadd.f32 %v1662, %v2230
      %v2295 = vadd.f32 %v1677, %v2231
      %v2296 = vadd.f32 %v1692, %v2232
      %v2297 = vadd.f32 %v1707, %v2233
      %v2298 = vadd.f32 %v1722, %v2234
      %v2299 = vadd.f32 %v1737, %v2203
      %v2300 = vadd.f32 %v1752, %v2204
      %v2301 = vadd.f32 %v1767, %v2205
      %v2302 = vadd.f32 %v1782, %v2206
      %v2303 = vadd.f32 %v1797, %v2207
      %v2304 = vadd.f32 %v1812, %v2208
      %v2305 = vadd.f32 %v1827, %v2209
      %v2306 = vadd.f32 %v1842, %v2210
      %v2307 = vadd.f32 %v1857, %v2211
      %v2308 = vadd.f32 %v1872, %v2212
      %v2309 = vadd.f32 %v1887, %v2213
      %v2310 = vadd.f32 %v1902, %v2214
      %v2311 = vadd.f32 %v1917, %v2215
      %v2312 = vadd.f32 %v1932, %v2216
      %v2313 = vadd.f32 %v1947, %v2217
      %v2314 = vadd.f32 %v1962, %v2218
      %v2315 = vadd.f32 %v1977, %v2219
      %v2316 = vadd.f32 %v1992, %v2220
      %v2317 = vadd.f32 %v2007, %v2221
      %v2318 = vadd.f32 %v2022, %v2222
      %v2319 = vadd.f32 %v2037, %v2223
      %v2320 = vadd.f32 %v2052, %v2224
      %v2321 = vadd.f32 %v2067, %v2225
      %v2322 = vadd.f32 %v2082, %v2226
      %v2323 = vadd.f32 %v2097, %v2227
      %v2324 = vadd.f32 %v2112, %v2228
      %v2325 = vadd.f32 %v2127, %v2229
      %v2326 = vadd.f32 %v2142, %v2230
      %v2327 = vadd.f32 %v2157, %v2231
      %v2328 = vadd.f32 %v2172, %v2232
      %v2329 = vadd.f32 %v2187, %v2233
      %v2330 = vadd.f32 %v2202, %v2234
      %vm2331 = vcmask 15360
      %2332 = vst.msk [vmem:[%s271] sm:$0xff] %vm2331, %v2235
      %2333 = vst.msk [vmem:[%s271 + $0x8] sm:$0xff] %vm2331, %v2236
      %2334 = vst.msk [vmem:[%s271 + $0x10] sm:$0xff] %vm2331, %v2237
      %2335 = vst.msk [vmem:[%s271 + $0x18] sm:$0xff] %vm2331, %v2238
      %2336 = vst.msk [vmem:[%s271 + $0x20] sm:$0xff] %vm2331, %v2239
      %2337 = vst.msk [vmem:[%s271 + $0x28] sm:$0xff] %vm2331, %v2240
      %2338 = vst.msk [vmem:[%s271 + $0x30] sm:$0xff] %vm2331, %v2241
      %2339 = vst.msk [vmem:[%s271 + $0x38] sm:$0xff] %vm2331, %v2242
      %2340 = vst.msk [vmem:[%s271 + $0x40] sm:$0xff] %vm2331, %v2243
      %2341 = vst.msk [vmem:[%s271 + $0x48] sm:$0xff] %vm2331, %v2244
      %2342 = vst.msk [vmem:[%s271 + $0x50] sm:$0xff] %vm2331, %v2245
      %2343 = vst.msk [vmem:[%s271 + $0x58] sm:$0xff] %vm2331, %v2246
      %2344 = vst.msk [vmem:[%s271 + $0x60] sm:$0xff] %vm2331, %v2247
      %2345 = vst.msk [vmem:[%s271 + $0x68] sm:$0xff] %vm2331, %v2248
      %2346 = vst.msk [vmem:[%s271 + $0x70] sm:$0xff] %vm2331, %v2249
      %2347 = vst.msk [vmem:[%s271 + $0x78] sm:$0xff] %vm2331, %v2250
      %2348 = vst.msk [vmem:[%s271 + $0x80] sm:$0xff] %vm2331, %v2251
      %2349 = vst.msk [vmem:[%s271 + $0x88] sm:$0xff] %vm2331, %v2252
      %2350 = vst.msk [vmem:[%s271 + $0x90] sm:$0xff] %vm2331, %v2253
      %2351 = vst.msk [vmem:[%s271 + $0x98] sm:$0xff] %vm2331, %v2254
      %2352 = vst.msk [vmem:[%s271 + $0xa0] sm:$0xff] %vm2331, %v2255
      %2353 = vst.msk [vmem:[%s271 + $0xa8] sm:$0xff] %vm2331, %v2256
      %2354 = vst.msk [vmem:[%s271 + $0xb0] sm:$0xff] %vm2331, %v2257
      %2355 = vst.msk [vmem:[%s271 + $0xb8] sm:$0xff] %vm2331, %v2258
      %2356 = vst.msk [vmem:[%s271 + $0xc0] sm:$0xff] %vm2331, %v2259
      %2357 = vst.msk [vmem:[%s271 + $0xc8] sm:$0xff] %vm2331, %v2260
      %2358 = vst.msk [vmem:[%s271 + $0xd0] sm:$0xff] %vm2331, %v2261
      %2359 = vst.msk [vmem:[%s271 + $0xd8] sm:$0xff] %vm2331, %v2262
      %2360 = vst.msk [vmem:[%s271 + $0xe0] sm:$0xff] %vm2331, %v2263
      %2361 = vst.msk [vmem:[%s271 + $0xe8] sm:$0xff] %vm2331, %v2264
      %2362 = vst.msk [vmem:[%s271 + $0xf0] sm:$0xff] %vm2331, %v2265
      %2363 = vst.msk [vmem:[%s271 + $0xf8] sm:$0xff] %vm2331, %v2266
      %2364 = vst.msk [vmem:[%s271 + $0x100] sm:$0xff] %vm2331, %v2267
      %2365 = vst.msk [vmem:[%s271 + $0x108] sm:$0xff] %vm2331, %v2268
      %2366 = vst.msk [vmem:[%s271 + $0x110] sm:$0xff] %vm2331, %v2269
      %2367 = vst.msk [vmem:[%s271 + $0x118] sm:$0xff] %vm2331, %v2270
      %2368 = vst.msk [vmem:[%s271 + $0x120] sm:$0xff] %vm2331, %v2271
      %2369 = vst.msk [vmem:[%s271 + $0x128] sm:$0xff] %vm2331, %v2272
      %2370 = vst.msk [vmem:[%s271 + $0x130] sm:$0xff] %vm2331, %v2273
      %2371 = vst.msk [vmem:[%s271 + $0x138] sm:$0xff] %vm2331, %v2274
      %2372 = vst.msk [vmem:[%s271 + $0x140] sm:$0xff] %vm2331, %v2275
      %2373 = vst.msk [vmem:[%s271 + $0x148] sm:$0xff] %vm2331, %v2276
      %2374 = vst.msk [vmem:[%s271 + $0x150] sm:$0xff] %vm2331, %v2277
      %2375 = vst.msk [vmem:[%s271 + $0x158] sm:$0xff] %vm2331, %v2278
      %2376 = vst.msk [vmem:[%s271 + $0x160] sm:$0xff] %vm2331, %v2279
      %2377 = vst.msk [vmem:[%s271 + $0x168] sm:$0xff] %vm2331, %v2280
      %2378 = vst.msk [vmem:[%s271 + $0x170] sm:$0xff] %vm2331, %v2281
      %2379 = vst.msk [vmem:[%s271 + $0x178] sm:$0xff] %vm2331, %v2282
      %2380 = vst.msk [vmem:[%s271 + $0x180] sm:$0xff] %vm2331, %v2283
      %2381 = vst.msk [vmem:[%s271 + $0x188] sm:$0xff] %vm2331, %v2284
      %2382 = vst.msk [vmem:[%s271 + $0x190] sm:$0xff] %vm2331, %v2285
      %2383 = vst.msk [vmem:[%s271 + $0x198] sm:$0xff] %vm2331, %v2286
      %2384 = vst.msk [vmem:[%s271 + $0x1a0] sm:$0xff] %vm2331, %v2287
      %2385 = vst.msk [vmem:[%s271 + $0x1a8] sm:$0xff] %vm2331, %v2288
      %2386 = vst.msk [vmem:[%s271 + $0x1b0] sm:$0xff] %vm2331, %v2289
      %2387 = vst.msk [vmem:[%s271 + $0x1b8] sm:$0xff] %vm2331, %v2290
      %2388 = vst.msk [vmem:[%s271 + $0x1c0] sm:$0xff] %vm2331, %v2291
      %2389 = vst.msk [vmem:[%s271 + $0x1c8] sm:$0xff] %vm2331, %v2292
      %2390 = vst.msk [vmem:[%s271 + $0x1d0] sm:$0xff] %vm2331, %v2293
      %2391 = vst.msk [vmem:[%s271 + $0x1d8] sm:$0xff] %vm2331, %v2294
      %2392 = vst.msk [vmem:[%s271 + $0x1e0] sm:$0xff] %vm2331, %v2295
      %2393 = vst.msk [vmem:[%s271 + $0x1e8] sm:$0xff] %vm2331, %v2296
      %2394 = vst.msk [vmem:[%s271 + $0x1f0] sm:$0xff] %vm2331, %v2297
      %2395 = vst.msk [vmem:[%s271 + $0x1f8] sm:$0xff] %vm2331, %v2298
      %2396 = vst.msk [vmem:[%s271 + $0x200] sm:$0xff] %vm2331, %v2299
      %2397 = vst.msk [vmem:[%s271 + $0x208] sm:$0xff] %vm2331, %v2300
      %2398 = vst.msk [vmem:[%s271 + $0x210] sm:$0xff] %vm2331, %v2301
      %2399 = vst.msk [vmem:[%s271 + $0x218] sm:$0xff] %vm2331, %v2302
      %2400 = vst.msk [vmem:[%s271 + $0x220] sm:$0xff] %vm2331, %v2303
      %2401 = vst.msk [vmem:[%s271 + $0x228] sm:$0xff] %vm2331, %v2304
      %2402 = vst.msk [vmem:[%s271 + $0x230] sm:$0xff] %vm2331, %v2305
      %2403 = vst.msk [vmem:[%s271 + $0x238] sm:$0xff] %vm2331, %v2306
      %2404 = vst.msk [vmem:[%s271 + $0x240] sm:$0xff] %vm2331, %v2307
      %2405 = vst.msk [vmem:[%s271 + $0x248] sm:$0xff] %vm2331, %v2308
      %2406 = vst.msk [vmem:[%s271 + $0x250] sm:$0xff] %vm2331, %v2309
      %2407 = vst.msk [vmem:[%s271 + $0x258] sm:$0xff] %vm2331, %v2310
      %2408 = vst.msk [vmem:[%s271 + $0x260] sm:$0xff] %vm2331, %v2311
      %2409 = vst.msk [vmem:[%s271 + $0x268] sm:$0xff] %vm2331, %v2312
      %2410 = vst.msk [vmem:[%s271 + $0x270] sm:$0xff] %vm2331, %v2313
      %2411 = vst.msk [vmem:[%s271 + $0x278] sm:$0xff] %vm2331, %v2314
      %2412 = vst.msk [vmem:[%s271 + $0x280] sm:$0xff] %vm2331, %v2315
      %2413 = vst.msk [vmem:[%s271 + $0x288] sm:$0xff] %vm2331, %v2316
      %2414 = vst.msk [vmem:[%s271 + $0x290] sm:$0xff] %vm2331, %v2317
      %2415 = vst.msk [vmem:[%s271 + $0x298] sm:$0xff] %vm2331, %v2318
      %2416 = vst.msk [vmem:[%s271 + $0x2a0] sm:$0xff] %vm2331, %v2319
      %2417 = vst.msk [vmem:[%s271 + $0x2a8] sm:$0xff] %vm2331, %v2320
      %2418 = vst.msk [vmem:[%s271 + $0x2b0] sm:$0xff] %vm2331, %v2321
      %2419 = vst.msk [vmem:[%s271 + $0x2b8] sm:$0xff] %vm2331, %v2322
      %2420 = vst.msk [vmem:[%s271 + $0x2c0] sm:$0xff] %vm2331, %v2323
      %2421 = vst.msk [vmem:[%s271 + $0x2c8] sm:$0xff] %vm2331, %v2324
      %2422 = vst.msk [vmem:[%s271 + $0x2d0] sm:$0xff] %vm2331, %v2325
      %2423 = vst.msk [vmem:[%s271 + $0x2d8] sm:$0xff] %vm2331, %v2326
      %2424 = vst.msk [vmem:[%s271 + $0x2e0] sm:$0xff] %vm2331, %v2327
      %2425 = vst.msk [vmem:[%s271 + $0x2e8] sm:$0xff] %vm2331, %v2328
      %2426 = vst.msk [vmem:[%s271 + $0x2f0] sm:$0xff] %vm2331, %v2329
      %2427 = vst.msk [vmem:[%s271 + $0x2f8] sm:$0xff] %vm2331, %v2330
      %v2428 = vmul.f32 %v283, 1.442695
      %v2429 = vpow.pop %v2428
      %v2430 = vmul.f32 %v284, 1.442695
      %v2431 = vpow.pop %v2430
      %v2432 = vmul.f32 %v285, 1.442695
      %v2433 = vpow.pop %v2432
      %v2434 = vmul.f32 %v286, 1.442695
      %v2435 = vpow.pop %v2434
      %v2436 = vmul.f32 %v287, 1.442695
      %v2437 = vpow.pop %v2436
      %v2438 = vmul.f32 %v288, 1.442695
      %v2439 = vpow.pop %v2438
      %v2440 = vmul.f32 %v289, 1.442695
      %v2441 = vpow.pop %v2440
      %v2442 = vmul.f32 %v290, 1.442695
      %v2443 = vpow.pop %v2442
      %v2444 = vmul.f32 %v291, 1.442695
      %v2445 = vpow.pop %v2444
      %v2446 = vmul.f32 %v292, 1.442695
      %v2447 = vpow.pop %v2446
      %v2448 = vmul.f32 %v293, 1.442695
      %v2449 = vpow.pop %v2448
      %v2450 = vmul.f32 %v294, 1.442695
      %v2451 = vpow.pop %v2450
      %v2452 = vmul.f32 %v295, 1.442695
      %v2453 = vpow.pop %v2452
      %v2454 = vmul.f32 %v296, 1.442695
      %v2455 = vpow.pop %v2454
      %v2456 = vmul.f32 %v297, 1.442695
      %v2457 = vpow.pop %v2456
      %v2458 = vmul.f32 %v298, 1.442695
      %v2459 = vpow.pop %v2458
      %v2460 = vmul.f32 %v299, 1.442695
      %v2461 = vpow.pop %v2460
      %v2462 = vmul.f32 %v300, 1.442695
      %v2463 = vpow.pop %v2462
      %v2464 = vmul.f32 %v301, 1.442695
      %v2465 = vpow.pop %v2464
      %v2466 = vmul.f32 %v302, 1.442695
      %v2467 = vpow.pop %v2466
      %v2468 = vmul.f32 %v303, 1.442695
      %v2469 = vpow.pop %v2468
      %v2470 = vmul.f32 %v304, 1.442695
      %v2471 = vpow.pop %v2470
      %v2472 = vmul.f32 %v305, 1.442695
      %v2473 = vpow.pop %v2472
      %v2474 = vmul.f32 %v306, 1.442695
      %v2475 = vpow.pop %v2474
      %v2476 = vmul.f32 %v307, 1.442695
      %v2477 = vpow.pop %v2476
      %v2478 = vmul.f32 %v308, 1.442695
      %v2479 = vpow.pop %v2478
      %v2480 = vmul.f32 %v309, 1.442695
      %v2481 = vpow.pop %v2480
      %v2482 = vmul.f32 %v310, 1.442695
      %v2483 = vpow.pop %v2482
      %v2484 = vmul.f32 %v311, 1.442695
      %v2485 = vpow.pop %v2484
      %v2486 = vmul.f32 %v312, 1.442695
      %v2487 = vpow.pop %v2486
      %v2488 = vmul.f32 %v313, 1.442695
      %v2489 = vpow.pop %v2488
      %v2490 = vmul.f32 %v314, 1.442695
      %v2491 = vpow.pop %v2490
      %v2492 = vmul.f32 %v315, 1.442695
      %v2493 = vpow.pop %v2492
      %v2494 = vmul.f32 %v316, 1.442695
      %v2495 = vpow.pop %v2494
      %v2496 = vmul.f32 %v317, 1.442695
      %v2497 = vpow.pop %v2496
      %v2498 = vmul.f32 %v318, 1.442695
      %v2499 = vpow.pop %v2498
      %v2500 = vmul.f32 %v319, 1.442695
      %v2501 = vpow.pop %v2500
      %v2502 = vmul.f32 %v320, 1.442695
      %v2503 = vpow.pop %v2502
      %v2504 = vmul.f32 %v321, 1.442695
      %v2505 = vpow.pop %v2504
      %v2506 = vmul.f32 %v322, 1.442695
      %v2507 = vpow.pop %v2506
      %v2508 = vmul.f32 %v323, 1.442695
      %v2509 = vpow.pop %v2508
      %v2510 = vmul.f32 %v324, 1.442695
      %v2511 = vpow.pop %v2510
      %v2512 = vmul.f32 %v325, 1.442695
      %v2513 = vpow.pop %v2512
      %v2514 = vmul.f32 %v326, 1.442695
      %v2515 = vpow.pop %v2514
      %v2516 = vmul.f32 %v327, 1.442695
      %v2517 = vpow.pop %v2516
      %v2518 = vmul.f32 %v328, 1.442695
      %v2519 = vpow.pop %v2518
      %v2520 = vmul.f32 %v329, 1.442695
      %v2521 = vpow.pop %v2520
      %v2522 = vmul.f32 %v330, 1.442695
      %v2523 = vpow.pop %v2522
      %v2524 = vmul.f32 %v331, 1.442695
      %v2525 = vpow.pop %v2524
      %v2526 = vmul.f32 %v332, 1.442695
      %v2527 = vpow.pop %v2526
      %v2528 = vmul.f32 %v333, 1.442695
      %v2529 = vpow.pop %v2528
      %v2530 = vmul.f32 %v334, 1.442695
      %v2531 = vpow.pop %v2530
      %v2532 = vmul.f32 %v335, 1.442695
      %v2533 = vpow.pop %v2532
      %v2534 = vmul.f32 %v336, 1.442695
      %v2535 = vpow.pop %v2534
      %v2536 = vmul.f32 %v337, 1.442695
      %v2537 = vpow.pop %v2536
      %v2538 = vmul.f32 %v338, 1.442695
      %v2539 = vpow.pop %v2538
      %v2540 = vmul.f32 %v339, 1.442695
      %v2541 = vpow.pop %v2540
      %v2542 = vmul.f32 %v340, 1.442695
      %v2543 = vpow.pop %v2542
      %v2544 = vmul.f32 %v341, 1.442695
      %v2545 = vpow.pop %v2544
      %v2546 = vmul.f32 %v342, 1.442695
      %v2547 = vpow.pop %v2546
      %v2548 = vmul.f32 %v343, 1.442695
      %v2549 = vpow.pop %v2548
      %v2550 = vmul.f32 %v344, 1.442695
      %v2551 = vpow.pop %v2550
      %v2552 = vmul.f32 %v345, 1.442695
      %v2553 = vpow.pop %v2552
      %v2554 = vmul.f32 %v346, 1.442695
      %v2555 = vpow.pop %v2554
      %v2556 = vmul.f32 %v347, 1.442695
      %v2557 = vpow.pop %v2556
      %v2558 = vmul.f32 %v348, 1.442695
      %v2559 = vpow.pop %v2558
      %v2560 = vmul.f32 %v349, 1.442695
      %v2561 = vpow.pop %v2560
      %v2562 = vmul.f32 %v350, 1.442695
      %v2563 = vpow.pop %v2562
      %v2564 = vmul.f32 %v351, 1.442695
      %v2565 = vpow.pop %v2564
      %v2566 = vmul.f32 %v352, 1.442695
      %v2567 = vpow.pop %v2566
      %v2568 = vmul.f32 %v353, 1.442695
      %v2569 = vpow.pop %v2568
      %v2570 = vmul.f32 %v354, 1.442695
      %v2571 = vpow.pop %v2570
      %v2572 = vmul.f32 %v355, 1.442695
      %v2573 = vpow.pop %v2572
      %v2574 = vmul.f32 %v356, 1.442695
      %v2575 = vpow.pop %v2574
      %v2576 = vmul.f32 %v357, 1.442695
      %v2577 = vpow.pop %v2576
      %v2578 = vmul.f32 %v358, 1.442695
      %v2579 = vpow.pop %v2578
      %v2580 = vmul.f32 %v359, 1.442695
      %v2581 = vpow.pop %v2580
      %v2582 = vmul.f32 %v360, 1.442695
      %v2583 = vpow.pop %v2582
      %v2584 = vmul.f32 %v361, 1.442695
      %v2585 = vpow.pop %v2584
      %v2586 = vmul.f32 %v362, 1.442695
      %v2587 = vpow.pop %v2586
      %v2588 = vmul.f32 %v363, 1.442695
      %v2589 = vpow.pop %v2588
      %v2590 = vmul.f32 %v364, 1.442695
      %v2591 = vpow.pop %v2590
      %v2592 = vmul.f32 %v365, 1.442695
      %v2593 = vpow.pop %v2592
      %v2594 = vmul.f32 %v366, 1.442695
      %v2595 = vpow.pop %v2594
      %v2596 = vmul.f32 %v367, 1.442695
      %v2597 = vpow.pop %v2596
      %v2598 = vmul.f32 %v368, 1.442695
      %v2599 = vpow.pop %v2598
      %v2600 = vmul.f32 %v369, 1.442695
      %v2601 = vpow.pop %v2600
      %v2602 = vmul.f32 %v370, 1.442695
      %v2603 = vpow.pop %v2602
      %v2604 = vmul.f32 %v371, 1.442695
      %v2605 = vpow.pop %v2604
      %v2606 = vmul.f32 %v372, 1.442695
      %v2607 = vpow.pop %v2606
      %v2608 = vmul.f32 %v373, 1.442695
      %v2609 = vpow.pop %v2608
      %v2610 = vmul.f32 %v374, 1.442695
      %v2611 = vpow.pop %v2610
      %v2612 = vmul.f32 %v375, 1.442695
      %v2613 = vpow.pop %v2612
      %v2614 = vmul.f32 %v376, 1.442695
      %v2615 = vpow.pop %v2614
      %v2616 = vmul.f32 %v377, 1.442695
      %v2617 = vpow.pop %v2616
      %v2618 = vmul.f32 %v378, 1.442695
      %v2619 = vpow.pop %v2618
      %v2620 = vld [vmem:[%s0] sm:$0x1]
      %v2621 = vld [vmem:[%s0 + $0x1] sm:$0x1]
      %v2622 = vld [vmem:[%s0 + $0x2] sm:$0x1]
      %v2626 = vperm.slane %v2620, 0
      %v2627 = vperm.slane %v2621, 0
      %v2628 = vperm.slane %v2622, 0
      %2629 = vrot.lane.b32.xlu0 %v2626, 2
      %v2630 = vpop.permute.xlu0 %2629
      %2631 = vrot.lane.b32.xlu0 %v2627, 2
      %v2632 = vpop.permute.xlu0 %2631
      %2633 = vrot.lane.b32.xlu0 %v2628, 2
      %v2634 = vpop.permute.xlu0 %2633
      %v2638 = vmul.f32 %v2429, %v2630
      %v2639 = vmul.f32 %v2431, %v2630
      %v2640 = vmul.f32 %v2433, %v2630
      %v2641 = vmul.f32 %v2435, %v2630
      %v2642 = vmul.f32 %v2437, %v2630
      %v2643 = vmul.f32 %v2439, %v2630
      %v2644 = vmul.f32 %v2441, %v2630
      %v2645 = vmul.f32 %v2443, %v2630
      %v2646 = vmul.f32 %v2445, %v2630
      %v2647 = vmul.f32 %v2447, %v2630
      %v2648 = vmul.f32 %v2449, %v2630
      %v2649 = vmul.f32 %v2451, %v2630
      %v2650 = vmul.f32 %v2453, %v2630
      %v2651 = vmul.f32 %v2455, %v2630
      %v2652 = vmul.f32 %v2457, %v2630
      %v2653 = vmul.f32 %v2459, %v2630
      %v2654 = vmul.f32 %v2461, %v2630
      %v2655 = vmul.f32 %v2463, %v2630
      %v2656 = vmul.f32 %v2465, %v2630
      %v2657 = vmul.f32 %v2467, %v2630
      %v2658 = vmul.f32 %v2469, %v2630
      %v2659 = vmul.f32 %v2471, %v2630
      %v2660 = vmul.f32 %v2473, %v2630
      %v2661 = vmul.f32 %v2475, %v2630
      %v2662 = vmul.f32 %v2477, %v2630
      %v2663 = vmul.f32 %v2479, %v2630
      %v2664 = vmul.f32 %v2481, %v2630
      %v2665 = vmul.f32 %v2483, %v2630
      %v2666 = vmul.f32 %v2485, %v2630
      %v2667 = vmul.f32 %v2487, %v2630
      %v2668 = vmul.f32 %v2489, %v2630
      %v2669 = vmul.f32 %v2491, %v2630
      %v2670 = vmul.f32 %v2493, %v2632
      %v2671 = vmul.f32 %v2495, %v2632
      %v2672 = vmul.f32 %v2497, %v2632
      %v2673 = vmul.f32 %v2499, %v2632
      %v2674 = vmul.f32 %v2501, %v2632
      %v2675 = vmul.f32 %v2503, %v2632
      %v2676 = vmul.f32 %v2505, %v2632
      %v2677 = vmul.f32 %v2507, %v2632
      %v2678 = vmul.f32 %v2509, %v2632
      %v2679 = vmul.f32 %v2511, %v2632
      %v2680 = vmul.f32 %v2513, %v2632
      %v2681 = vmul.f32 %v2515, %v2632
      %v2682 = vmul.f32 %v2517, %v2632
      %v2683 = vmul.f32 %v2519, %v2632
      %v2684 = vmul.f32 %v2521, %v2632
      %v2685 = vmul.f32 %v2523, %v2632
      %v2686 = vmul.f32 %v2525, %v2632
      %v2687 = vmul.f32 %v2527, %v2632
      %v2688 = vmul.f32 %v2529, %v2632
      %v2689 = vmul.f32 %v2531, %v2632
      %v2690 = vmul.f32 %v2533, %v2632
      %v2691 = vmul.f32 %v2535, %v2632
      %v2692 = vmul.f32 %v2537, %v2632
      %v2693 = vmul.f32 %v2539, %v2632
      %v2694 = vmul.f32 %v2541, %v2632
      %v2695 = vmul.f32 %v2543, %v2632
      %v2696 = vmul.f32 %v2545, %v2632
      %v2697 = vmul.f32 %v2547, %v2632
      %v2698 = vmul.f32 %v2549, %v2632
      %v2699 = vmul.f32 %v2551, %v2632
      %v2700 = vmul.f32 %v2553, %v2632
      %v2701 = vmul.f32 %v2555, %v2632
      %v2702 = vmul.f32 %v2557, %v2634
      %v2703 = vmul.f32 %v2559, %v2634
      %v2704 = vmul.f32 %v2561, %v2634
      %v2705 = vmul.f32 %v2563, %v2634
      %v2706 = vmul.f32 %v2565, %v2634
      %v2707 = vmul.f32 %v2567, %v2634
      %v2708 = vmul.f32 %v2569, %v2634
      %v2709 = vmul.f32 %v2571, %v2634
      %v2710 = vmul.f32 %v2573, %v2634
      %v2711 = vmul.f32 %v2575, %v2634
      %v2712 = vmul.f32 %v2577, %v2634
      %v2713 = vmul.f32 %v2579, %v2634
      %v2714 = vmul.f32 %v2581, %v2634
      %v2715 = vmul.f32 %v2583, %v2634
      %v2716 = vmul.f32 %v2585, %v2634
      %v2717 = vmul.f32 %v2587, %v2634
      %v2718 = vmul.f32 %v2589, %v2634
      %v2719 = vmul.f32 %v2591, %v2634
      %v2720 = vmul.f32 %v2593, %v2634
      %v2721 = vmul.f32 %v2595, %v2634
      %v2722 = vmul.f32 %v2597, %v2634
      %v2723 = vmul.f32 %v2599, %v2634
      %v2724 = vmul.f32 %v2601, %v2634
      %v2725 = vmul.f32 %v2603, %v2634
      %v2726 = vmul.f32 %v2605, %v2634
      %v2727 = vmul.f32 %v2607, %v2634
      %v2728 = vmul.f32 %v2609, %v2634
      %v2729 = vmul.f32 %v2611, %v2634
      %v2730 = vmul.f32 %v2613, %v2634
      %v2731 = vmul.f32 %v2615, %v2634
      %v2732 = vmul.f32 %v2617, %v2634
      %v2733 = vmul.f32 %v2619, %v2634
      %vm2734 = vcmask 31760
      %2735 = vst.msk [vmem:[%s271] sm:$0xff] %vm2734, %v2638
      %2736 = vst.msk [vmem:[%s271 + $0x8] sm:$0xff] %vm2734, %v2639
      %2737 = vst.msk [vmem:[%s271 + $0x10] sm:$0xff] %vm2734, %v2640
      %2738 = vst.msk [vmem:[%s271 + $0x18] sm:$0xff] %vm2734, %v2641
      %2739 = vst.msk [vmem:[%s271 + $0x20] sm:$0xff] %vm2734, %v2642
      %2740 = vst.msk [vmem:[%s271 + $0x28] sm:$0xff] %vm2734, %v2643
      %2741 = vst.msk [vmem:[%s271 + $0x30] sm:$0xff] %vm2734, %v2644
      %2742 = vst.msk [vmem:[%s271 + $0x38] sm:$0xff] %vm2734, %v2645
      %2743 = vst.msk [vmem:[%s271 + $0x40] sm:$0xff] %vm2734, %v2646
      %2744 = vst.msk [vmem:[%s271 + $0x48] sm:$0xff] %vm2734, %v2647
      %2745 = vst.msk [vmem:[%s271 + $0x50] sm:$0xff] %vm2734, %v2648
      %2746 = vst.msk [vmem:[%s271 + $0x58] sm:$0xff] %vm2734, %v2649
      %2747 = vst.msk [vmem:[%s271 + $0x60] sm:$0xff] %vm2734, %v2650
      %2748 = vst.msk [vmem:[%s271 + $0x68] sm:$0xff] %vm2734, %v2651
      %2749 = vst.msk [vmem:[%s271 + $0x70] sm:$0xff] %vm2734, %v2652
      %2750 = vst.msk [vmem:[%s271 + $0x78] sm:$0xff] %vm2734, %v2653
      %2751 = vst.msk [vmem:[%s271 + $0x80] sm:$0xff] %vm2734, %v2654
      %2752 = vst.msk [vmem:[%s271 + $0x88] sm:$0xff] %vm2734, %v2655
      %2753 = vst.msk [vmem:[%s271 + $0x90] sm:$0xff] %vm2734, %v2656
      %2754 = vst.msk [vmem:[%s271 + $0x98] sm:$0xff] %vm2734, %v2657
      %2755 = vst.msk [vmem:[%s271 + $0xa0] sm:$0xff] %vm2734, %v2658
      %2756 = vst.msk [vmem:[%s271 + $0xa8] sm:$0xff] %vm2734, %v2659
      %2757 = vst.msk [vmem:[%s271 + $0xb0] sm:$0xff] %vm2734, %v2660
      %2758 = vst.msk [vmem:[%s271 + $0xb8] sm:$0xff] %vm2734, %v2661
      %2759 = vst.msk [vmem:[%s271 + $0xc0] sm:$0xff] %vm2734, %v2662
      %2760 = vst.msk [vmem:[%s271 + $0xc8] sm:$0xff] %vm2734, %v2663
      %2761 = vst.msk [vmem:[%s271 + $0xd0] sm:$0xff] %vm2734, %v2664
      %2762 = vst.msk [vmem:[%s271 + $0xd8] sm:$0xff] %vm2734, %v2665
      %2763 = vst.msk [vmem:[%s271 + $0xe0] sm:$0xff] %vm2734, %v2666
      %2764 = vst.msk [vmem:[%s271 + $0xe8] sm:$0xff] %vm2734, %v2667
      %2765 = vst.msk [vmem:[%s271 + $0xf0] sm:$0xff] %vm2734, %v2668
      %2766 = vst.msk [vmem:[%s271 + $0xf8] sm:$0xff] %vm2734, %v2669
      %2767 = vst.msk [vmem:[%s271 + $0x100] sm:$0xff] %vm2734, %v2670
      %2768 = vst.msk [vmem:[%s271 + $0x108] sm:$0xff] %vm2734, %v2671
      %2769 = vst.msk [vmem:[%s271 + $0x110] sm:$0xff] %vm2734, %v2672
      %2770 = vst.msk [vmem:[%s271 + $0x118] sm:$0xff] %vm2734, %v2673
      %2771 = vst.msk [vmem:[%s271 + $0x120] sm:$0xff] %vm2734, %v2674
      %2772 = vst.msk [vmem:[%s271 + $0x128] sm:$0xff] %vm2734, %v2675
      %2773 = vst.msk [vmem:[%s271 + $0x130] sm:$0xff] %vm2734, %v2676
      %2774 = vst.msk [vmem:[%s271 + $0x138] sm:$0xff] %vm2734, %v2677
      %2775 = vst.msk [vmem:[%s271 + $0x140] sm:$0xff] %vm2734, %v2678
      %2776 = vst.msk [vmem:[%s271 + $0x148] sm:$0xff] %vm2734, %v2679
      %2777 = vst.msk [vmem:[%s271 + $0x150] sm:$0xff] %vm2734, %v2680
      %2778 = vst.msk [vmem:[%s271 + $0x158] sm:$0xff] %vm2734, %v2681
      %2779 = vst.msk [vmem:[%s271 + $0x160] sm:$0xff] %vm2734, %v2682
      %2780 = vst.msk [vmem:[%s271 + $0x168] sm:$0xff] %vm2734, %v2683
      %2781 = vst.msk [vmem:[%s271 + $0x170] sm:$0xff] %vm2734, %v2684
      %2782 = vst.msk [vmem:[%s271 + $0x178] sm:$0xff] %vm2734, %v2685
      %2783 = vst.msk [vmem:[%s271 + $0x180] sm:$0xff] %vm2734, %v2686
      %2784 = vst.msk [vmem:[%s271 + $0x188] sm:$0xff] %vm2734, %v2687
      %2785 = vst.msk [vmem:[%s271 + $0x190] sm:$0xff] %vm2734, %v2688
      %2786 = vst.msk [vmem:[%s271 + $0x198] sm:$0xff] %vm2734, %v2689
      %2787 = vst.msk [vmem:[%s271 + $0x1a0] sm:$0xff] %vm2734, %v2690
      %2788 = vst.msk [vmem:[%s271 + $0x1a8] sm:$0xff] %vm2734, %v2691
      %2789 = vst.msk [vmem:[%s271 + $0x1b0] sm:$0xff] %vm2734, %v2692
      %2790 = vst.msk [vmem:[%s271 + $0x1b8] sm:$0xff] %vm2734, %v2693
      %2791 = vst.msk [vmem:[%s271 + $0x1c0] sm:$0xff] %vm2734, %v2694
      %2792 = vst.msk [vmem:[%s271 + $0x1c8] sm:$0xff] %vm2734, %v2695
      %2793 = vst.msk [vmem:[%s271 + $0x1d0] sm:$0xff] %vm2734, %v2696
      %2794 = vst.msk [vmem:[%s271 + $0x1d8] sm:$0xff] %vm2734, %v2697
      %2795 = vst.msk [vmem:[%s271 + $0x1e0] sm:$0xff] %vm2734, %v2698
      %2796 = vst.msk [vmem:[%s271 + $0x1e8] sm:$0xff] %vm2734, %v2699
      %2797 = vst.msk [vmem:[%s271 + $0x1f0] sm:$0xff] %vm2734, %v2700
      %2798 = vst.msk [vmem:[%s271 + $0x1f8] sm:$0xff] %vm2734, %v2701
      %2799 = vst.msk [vmem:[%s271 + $0x200] sm:$0xff] %vm2734, %v2702
      %2800 = vst.msk [vmem:[%s271 + $0x208] sm:$0xff] %vm2734, %v2703
      %2801 = vst.msk [vmem:[%s271 + $0x210] sm:$0xff] %vm2734, %v2704
      %2802 = vst.msk [vmem:[%s271 + $0x218] sm:$0xff] %vm2734, %v2705
      %2803 = vst.msk [vmem:[%s271 + $0x220] sm:$0xff] %vm2734, %v2706
      %2804 = vst.msk [vmem:[%s271 + $0x228] sm:$0xff] %vm2734, %v2707
      %2805 = vst.msk [vmem:[%s271 + $0x230] sm:$0xff] %vm2734, %v2708
      %2806 = vst.msk [vmem:[%s271 + $0x238] sm:$0xff] %vm2734, %v2709
      %2807 = vst.msk [vmem:[%s271 + $0x240] sm:$0xff] %vm2734, %v2710
      %2808 = vst.msk [vmem:[%s271 + $0x248] sm:$0xff] %vm2734, %v2711
      %2809 = vst.msk [vmem:[%s271 + $0x250] sm:$0xff] %vm2734, %v2712
      %2810 = vst.msk [vmem:[%s271 + $0x258] sm:$0xff] %vm2734, %v2713
      %2811 = vst.msk [vmem:[%s271 + $0x260] sm:$0xff] %vm2734, %v2714
      %2812 = vst.msk [vmem:[%s271 + $0x268] sm:$0xff] %vm2734, %v2715
      %2813 = vst.msk [vmem:[%s271 + $0x270] sm:$0xff] %vm2734, %v2716
      %2814 = vst.msk [vmem:[%s271 + $0x278] sm:$0xff] %vm2734, %v2717
      %2815 = vst.msk [vmem:[%s271 + $0x280] sm:$0xff] %vm2734, %v2718
      %2816 = vst.msk [vmem:[%s271 + $0x288] sm:$0xff] %vm2734, %v2719
      %2817 = vst.msk [vmem:[%s271 + $0x290] sm:$0xff] %vm2734, %v2720
      %2818 = vst.msk [vmem:[%s271 + $0x298] sm:$0xff] %vm2734, %v2721
      %2819 = vst.msk [vmem:[%s271 + $0x2a0] sm:$0xff] %vm2734, %v2722
      %2820 = vst.msk [vmem:[%s271 + $0x2a8] sm:$0xff] %vm2734, %v2723
      %2821 = vst.msk [vmem:[%s271 + $0x2b0] sm:$0xff] %vm2734, %v2724
      %2822 = vst.msk [vmem:[%s271 + $0x2b8] sm:$0xff] %vm2734, %v2725
      %2823 = vst.msk [vmem:[%s271 + $0x2c0] sm:$0xff] %vm2734, %v2726
      %2824 = vst.msk [vmem:[%s271 + $0x2c8] sm:$0xff] %vm2734, %v2727
      %2825 = vst.msk [vmem:[%s271 + $0x2d0] sm:$0xff] %vm2734, %v2728
      %2826 = vst.msk [vmem:[%s271 + $0x2d8] sm:$0xff] %vm2734, %v2729
      %2827 = vst.msk [vmem:[%s271 + $0x2e0] sm:$0xff] %vm2734, %v2730
      %2828 = vst.msk [vmem:[%s271 + $0x2e8] sm:$0xff] %vm2734, %v2731
      %2829 = vst.msk [vmem:[%s271 + $0x2f0] sm:$0xff] %vm2734, %v2732
      %2830 = vst.msk [vmem:[%s271 + $0x2f8] sm:$0xff] %vm2734, %v2733
      %vm2831 = vcmask 39968
      %2832 = vst.msk [vmem:[%s271] sm:$0xff] %vm2831, %v777
      %2833 = vst.msk [vmem:[%s271 + $0x8] sm:$0xff] %vm2831, %v792
      %2834 = vst.msk [vmem:[%s271 + $0x10] sm:$0xff] %vm2831, %v807
      %2835 = vst.msk [vmem:[%s271 + $0x18] sm:$0xff] %vm2831, %v822
      %2836 = vst.msk [vmem:[%s271 + $0x20] sm:$0xff] %vm2831, %v837
      %2837 = vst.msk [vmem:[%s271 + $0x28] sm:$0xff] %vm2831, %v852
      %2838 = vst.msk [vmem:[%s271 + $0x30] sm:$0xff] %vm2831, %v867
      %2839 = vst.msk [vmem:[%s271 + $0x38] sm:$0xff] %vm2831, %v882
      %2840 = vst.msk [vmem:[%s271 + $0x40] sm:$0xff] %vm2831, %v897
      %2841 = vst.msk [vmem:[%s271 + $0x48] sm:$0xff] %vm2831, %v912
      %2842 = vst.msk [vmem:[%s271 + $0x50] sm:$0xff] %vm2831, %v927
      %2843 = vst.msk [vmem:[%s271 + $0x58] sm:$0xff] %vm2831, %v942
      %2844 = vst.msk [vmem:[%s271 + $0x60] sm:$0xff] %vm2831, %v957
      %2845 = vst.msk [vmem:[%s271 + $0x68] sm:$0xff] %vm2831, %v972
      %2846 = vst.msk [vmem:[%s271 + $0x70] sm:$0xff] %vm2831, %v987
      %2847 = vst.msk [vmem:[%s271 + $0x78] sm:$0xff] %vm2831, %v1002
      %2848 = vst.msk [vmem:[%s271 + $0x80] sm:$0xff] %vm2831, %v1017
      %2849 = vst.msk [vmem:[%s271 + $0x88] sm:$0xff] %vm2831, %v1032
      %2850 = vst.msk [vmem:[%s271 + $0x90] sm:$0xff] %vm2831, %v1047
      %2851 = vst.msk [vmem:[%s271 + $0x98] sm:$0xff] %vm2831, %v1062
      %2852 = vst.msk [vmem:[%s271 + $0xa0] sm:$0xff] %vm2831, %v1077
      %2853 = vst.msk [vmem:[%s271 + $0xa8] sm:$0xff] %vm2831, %v1092
      %2854 = vst.msk [vmem:[%s271 + $0xb0] sm:$0xff] %vm2831, %v1107
      %2855 = vst.msk [vmem:[%s271 + $0xb8] sm:$0xff] %vm2831, %v1122
      %2856 = vst.msk [vmem:[%s271 + $0xc0] sm:$0xff] %vm2831, %v1137
      %2857 = vst.msk [vmem:[%s271 + $0xc8] sm:$0xff] %vm2831, %v1152
      %2858 = vst.msk [vmem:[%s271 + $0xd0] sm:$0xff] %vm2831, %v1167
      %2859 = vst.msk [vmem:[%s271 + $0xd8] sm:$0xff] %vm2831, %v1182
      %2860 = vst.msk [vmem:[%s271 + $0xe0] sm:$0xff] %vm2831, %v1197
      %2861 = vst.msk [vmem:[%s271 + $0xe8] sm:$0xff] %vm2831, %v1212
      %2862 = vst.msk [vmem:[%s271 + $0xf0] sm:$0xff] %vm2831, %v1227
      %2863 = vst.msk [vmem:[%s271 + $0xf8] sm:$0xff] %vm2831, %v1242
      %2864 = vst.msk [vmem:[%s271 + $0x100] sm:$0xff] %vm2831, %v1257
      %2865 = vst.msk [vmem:[%s271 + $0x108] sm:$0xff] %vm2831, %v1272
      %2866 = vst.msk [vmem:[%s271 + $0x110] sm:$0xff] %vm2831, %v1287
      %2867 = vst.msk [vmem:[%s271 + $0x118] sm:$0xff] %vm2831, %v1302
      %2868 = vst.msk [vmem:[%s271 + $0x120] sm:$0xff] %vm2831, %v1317
      %2869 = vst.msk [vmem:[%s271 + $0x128] sm:$0xff] %vm2831, %v1332
      %2870 = vst.msk [vmem:[%s271 + $0x130] sm:$0xff] %vm2831, %v1347
      %2871 = vst.msk [vmem:[%s271 + $0x138] sm:$0xff] %vm2831, %v1362
      %2872 = vst.msk [vmem:[%s271 + $0x140] sm:$0xff] %vm2831, %v1377
      %2873 = vst.msk [vmem:[%s271 + $0x148] sm:$0xff] %vm2831, %v1392
      %2874 = vst.msk [vmem:[%s271 + $0x150] sm:$0xff] %vm2831, %v1407
      %2875 = vst.msk [vmem:[%s271 + $0x158] sm:$0xff] %vm2831, %v1422
      %2876 = vst.msk [vmem:[%s271 + $0x160] sm:$0xff] %vm2831, %v1437
      %2877 = vst.msk [vmem:[%s271 + $0x168] sm:$0xff] %vm2831, %v1452
      %2878 = vst.msk [vmem:[%s271 + $0x170] sm:$0xff] %vm2831, %v1467
      %2879 = vst.msk [vmem:[%s271 + $0x178] sm:$0xff] %vm2831, %v1482
      %2880 = vst.msk [vmem:[%s271 + $0x180] sm:$0xff] %vm2831, %v1497
      %2881 = vst.msk [vmem:[%s271 + $0x188] sm:$0xff] %vm2831, %v1512
      %2882 = vst.msk [vmem:[%s271 + $0x190] sm:$0xff] %vm2831, %v1527
      %2883 = vst.msk [vmem:[%s271 + $0x198] sm:$0xff] %vm2831, %v1542
      %2884 = vst.msk [vmem:[%s271 + $0x1a0] sm:$0xff] %vm2831, %v1557
      %2885 = vst.msk [vmem:[%s271 + $0x1a8] sm:$0xff] %vm2831, %v1572
      %2886 = vst.msk [vmem:[%s271 + $0x1b0] sm:$0xff] %vm2831, %v1587
      %2887 = vst.msk [vmem:[%s271 + $0x1b8] sm:$0xff] %vm2831, %v1602
      %2888 = vst.msk [vmem:[%s271 + $0x1c0] sm:$0xff] %vm2831, %v1617
      %2889 = vst.msk [vmem:[%s271 + $0x1c8] sm:$0xff] %vm2831, %v1632
      %2890 = vst.msk [vmem:[%s271 + $0x1d0] sm:$0xff] %vm2831, %v1647
      %2891 = vst.msk [vmem:[%s271 + $0x1d8] sm:$0xff] %vm2831, %v1662
      %2892 = vst.msk [vmem:[%s271 + $0x1e0] sm:$0xff] %vm2831, %v1677
      %2893 = vst.msk [vmem:[%s271 + $0x1e8] sm:$0xff] %vm2831, %v1692
      %2894 = vst.msk [vmem:[%s271 + $0x1f0] sm:$0xff] %vm2831, %v1707
      %2895 = vst.msk [vmem:[%s271 + $0x1f8] sm:$0xff] %vm2831, %v1722
      %2896 = vst.msk [vmem:[%s271 + $0x200] sm:$0xff] %vm2831, %v1737
      %2897 = vst.msk [vmem:[%s271 + $0x208] sm:$0xff] %vm2831, %v1752
      %2898 = vst.msk [vmem:[%s271 + $0x210] sm:$0xff] %vm2831, %v1767
      %2899 = vst.msk [vmem:[%s271 + $0x218] sm:$0xff] %vm2831, %v1782
      %2900 = vst.msk [vmem:[%s271 + $0x220] sm:$0xff] %vm2831, %v1797
      %2901 = vst.msk [vmem:[%s271 + $0x228] sm:$0xff] %vm2831, %v1812
      %2902 = vst.msk [vmem:[%s271 + $0x230] sm:$0xff] %vm2831, %v1827
      %2903 = vst.msk [vmem:[%s271 + $0x238] sm:$0xff] %vm2831, %v1842
      %2904 = vst.msk [vmem:[%s271 + $0x240] sm:$0xff] %vm2831, %v1857
      %2905 = vst.msk [vmem:[%s271 + $0x248] sm:$0xff] %vm2831, %v1872
      %2906 = vst.msk [vmem:[%s271 + $0x250] sm:$0xff] %vm2831, %v1887
      %2907 = vst.msk [vmem:[%s271 + $0x258] sm:$0xff] %vm2831, %v1902
      %2908 = vst.msk [vmem:[%s271 + $0x260] sm:$0xff] %vm2831, %v1917
      %2909 = vst.msk [vmem:[%s271 + $0x268] sm:$0xff] %vm2831, %v1932
      %2910 = vst.msk [vmem:[%s271 + $0x270] sm:$0xff] %vm2831, %v1947
      %2911 = vst.msk [vmem:[%s271 + $0x278] sm:$0xff] %vm2831, %v1962
      %2912 = vst.msk [vmem:[%s271 + $0x280] sm:$0xff] %vm2831, %v1977
      %2913 = vst.msk [vmem:[%s271 + $0x288] sm:$0xff] %vm2831, %v1992
      %2914 = vst.msk [vmem:[%s271 + $0x290] sm:$0xff] %vm2831, %v2007
      %2915 = vst.msk [vmem:[%s271 + $0x298] sm:$0xff] %vm2831, %v2022
      %2916 = vst.msk [vmem:[%s271 + $0x2a0] sm:$0xff] %vm2831, %v2037
      %2917 = vst.msk [vmem:[%s271 + $0x2a8] sm:$0xff] %vm2831, %v2052
      %2918 = vst.msk [vmem:[%s271 + $0x2b0] sm:$0xff] %vm2831, %v2067
      %2919 = vst.msk [vmem:[%s271 + $0x2b8] sm:$0xff] %vm2831, %v2082
      %2920 = vst.msk [vmem:[%s271 + $0x2c0] sm:$0xff] %vm2831, %v2097
      %2921 = vst.msk [vmem:[%s271 + $0x2c8] sm:$0xff] %vm2831, %v2112
      %2922 = vst.msk [vmem:[%s271 + $0x2d0] sm:$0xff] %vm2831, %v2127
      %2923 = vst.msk [vmem:[%s271 + $0x2d8] sm:$0xff] %vm2831, %v2142
      %2924 = vst.msk [vmem:[%s271 + $0x2e0] sm:$0xff] %vm2831, %v2157
      %2925 = vst.msk [vmem:[%s271 + $0x2e8] sm:$0xff] %vm2831, %v2172
      %2926 = vst.msk [vmem:[%s271 + $0x2f0] sm:$0xff] %vm2831, %v2187
      %2927 = vst.msk [vmem:[%s271 + $0x2f8] sm:$0xff] %vm2831, %v2202
      %3024 = vrot.lane.b32.xlu0 %v777, 123
      %v3025 = vpop.permute.xlu0 %3024
      %3026 = vrot.lane.b32.xlu0 %v792, 123
      %v3027 = vpop.permute.xlu0 %3026
      %3028 = vrot.lane.b32.xlu0 %v807, 123
      %v3029 = vpop.permute.xlu0 %3028
      %3030 = vrot.lane.b32.xlu0 %v822, 123
      %v3031 = vpop.permute.xlu0 %3030
      %3032 = vrot.lane.b32.xlu0 %v837, 123
      %v3033 = vpop.permute.xlu0 %3032
      %3034 = vrot.lane.b32.xlu0 %v852, 123
      %v3035 = vpop.permute.xlu0 %3034
      %3036 = vrot.lane.b32.xlu0 %v867, 123
      %v3037 = vpop.permute.xlu0 %3036
      %3038 = vrot.lane.b32.xlu0 %v882, 123
      %v3039 = vpop.permute.xlu0 %3038
      %3040 = vrot.lane.b32.xlu0 %v897, 123
      %v3041 = vpop.permute.xlu0 %3040
      %3042 = vrot.lane.b32.xlu0 %v912, 123
      %v3043 = vpop.permute.xlu0 %3042
      %3044 = vrot.lane.b32.xlu0 %v927, 123
      %v3045 = vpop.permute.xlu0 %3044
      %3046 = vrot.lane.b32.xlu0 %v942, 123
      %v3047 = vpop.permute.xlu0 %3046
      %3048 = vrot.lane.b32.xlu0 %v957, 123
      %v3049 = vpop.permute.xlu0 %3048
      %3050 = vrot.lane.b32.xlu0 %v972, 123
      %v3051 = vpop.permute.xlu0 %3050
      %3052 = vrot.lane.b32.xlu0 %v987, 123
      %v3053 = vpop.permute.xlu0 %3052
      %3054 = vrot.lane.b32.xlu0 %v1002, 123
      %v3055 = vpop.permute.xlu0 %3054
      %3056 = vrot.lane.b32.xlu0 %v1017, 123
      %v3057 = vpop.permute.xlu0 %3056
      %3058 = vrot.lane.b32.xlu0 %v1032, 123
      %v3059 = vpop.permute.xlu0 %3058
      %3060 = vrot.lane.b32.xlu0 %v1047, 123
      %v3061 = vpop.permute.xlu0 %3060
      %3062 = vrot.lane.b32.xlu0 %v1062, 123
      %v3063 = vpop.permute.xlu0 %3062
      %3064 = vrot.lane.b32.xlu0 %v1077, 123
      %v3065 = vpop.permute.xlu0 %3064
      %3066 = vrot.lane.b32.xlu0 %v1092, 123
      %v3067 = vpop.permute.xlu0 %3066
      %3068 = vrot.lane.b32.xlu0 %v1107, 123
      %v3069 = vpop.permute.xlu0 %3068
      %3070 = vrot.lane.b32.xlu0 %v1122, 123
      %v3071 = vpop.permute.xlu0 %3070
      %3072 = vrot.lane.b32.xlu0 %v1137, 123
      %v3073 = vpop.permute.xlu0 %3072
      %3074 = vrot.lane.b32.xlu0 %v1152, 123
      %v3075 = vpop.permute.xlu0 %3074
      %3076 = vrot.lane.b32.xlu0 %v1167, 123
      %v3077 = vpop.permute.xlu0 %3076
      %3078 = vrot.lane.b32.xlu0 %v1182, 123
      %v3079 = vpop.permute.xlu0 %3078
      %3080 = vrot.lane.b32.xlu0 %v1197, 123
      %v3081 = vpop.permute.xlu0 %3080
      %3082 = vrot.lane.b32.xlu0 %v1212, 123
      %v3083 = vpop.permute.xlu0 %3082
      %3084 = vrot.lane.b32.xlu0 %v1227, 123
      %v3085 = vpop.permute.xlu0 %3084
      %3086 = vrot.lane.b32.xlu0 %v1242, 123
      %v3087 = vpop.permute.xlu0 %3086
      %3088 = vrot.lane.b32.xlu0 %v1257, 123
      %v3089 = vpop.permute.xlu0 %3088
      %3090 = vrot.lane.b32.xlu0 %v1272, 123
      %v3091 = vpop.permute.xlu0 %3090
      %3092 = vrot.lane.b32.xlu0 %v1287, 123
      %v3093 = vpop.permute.xlu0 %3092
      %3094 = vrot.lane.b32.xlu0 %v1302, 123
      %v3095 = vpop.permute.xlu0 %3094
      %3096 = vrot.lane.b32.xlu0 %v1317, 123
      %v3097 = vpop.permute.xlu0 %3096
      %3098 = vrot.lane.b32.xlu0 %v1332, 123
      %v3099 = vpop.permute.xlu0 %3098
      %3100 = vrot.lane.b32.xlu0 %v1347, 123
      %v3101 = vpop.permute.xlu0 %3100
      %3102 = vrot.lane.b32.xlu0 %v1362, 123
      %v3103 = vpop.permute.xlu0 %3102
      %3104 = vrot.lane.b32.xlu0 %v1377, 123
      %v3105 = vpop.permute.xlu0 %3104
      %3106 = vrot.lane.b32.xlu0 %v1392, 123
      %v3107 = vpop.permute.xlu0 %3106
      %3108 = vrot.lane.b32.xlu0 %v1407, 123
      %v3109 = vpop.permute.xlu0 %3108
      %3110 = vrot.lane.b32.xlu0 %v1422, 123
      %v3111 = vpop.permute.xlu0 %3110
      %3112 = vrot.lane.b32.xlu0 %v1437, 123
      %v3113 = vpop.permute.xlu0 %3112
      %3114 = vrot.lane.b32.xlu0 %v1452, 123
      %v3115 = vpop.permute.xlu0 %3114
      %3116 = vrot.lane.b32.xlu0 %v1467, 123
      %v3117 = vpop.permute.xlu0 %3116
      %3118 = vrot.lane.b32.xlu0 %v1482, 123
      %v3119 = vpop.permute.xlu0 %3118
      %3120 = vrot.lane.b32.xlu0 %v1497, 123
      %v3121 = vpop.permute.xlu0 %3120
      %3122 = vrot.lane.b32.xlu0 %v1512, 123
      %v3123 = vpop.permute.xlu0 %3122
      %3124 = vrot.lane.b32.xlu0 %v1527, 123
      %v3125 = vpop.permute.xlu0 %3124
      %3126 = vrot.lane.b32.xlu0 %v1542, 123
      %v3127 = vpop.permute.xlu0 %3126
      %3128 = vrot.lane.b32.xlu0 %v1557, 123
      %v3129 = vpop.permute.xlu0 %3128
      %3130 = vrot.lane.b32.xlu0 %v1572, 123
      %v3131 = vpop.permute.xlu0 %3130
      %3132 = vrot.lane.b32.xlu0 %v1587, 123
      %v3133 = vpop.permute.xlu0 %3132
      %3134 = vrot.lane.b32.xlu0 %v1602, 123
      %v3135 = vpop.permute.xlu0 %3134
      %3136 = vrot.lane.b32.xlu0 %v1617, 123
      %v3137 = vpop.permute.xlu0 %3136
      %3138 = vrot.lane.b32.xlu0 %v1632, 123
      %v3139 = vpop.permute.xlu0 %3138
      %3140 = vrot.lane.b32.xlu0 %v1647, 123
      %v3141 = vpop.permute.xlu0 %3140
      %3142 = vrot.lane.b32.xlu0 %v1662, 123
      %v3143 = vpop.permute.xlu0 %3142
      %3144 = vrot.lane.b32.xlu0 %v1677, 123
      %v3145 = vpop.permute.xlu0 %3144
      %3146 = vrot.lane.b32.xlu0 %v1692, 123
      %v3147 = vpop.permute.xlu0 %3146
      %3148 = vrot.lane.b32.xlu0 %v1707, 123
      %v3149 = vpop.permute.xlu0 %3148
      %3150 = vrot.lane.b32.xlu0 %v1722, 123
      %v3151 = vpop.permute.xlu0 %3150
      %3152 = vrot.lane.b32.xlu0 %v1737, 123
      %v3153 = vpop.permute.xlu0 %3152
      %3154 = vrot.lane.b32.xlu0 %v1752, 123
      %v3155 = vpop.permute.xlu0 %3154
      %3156 = vrot.lane.b32.xlu0 %v1767, 123
      %v3157 = vpop.permute.xlu0 %3156
      %3158 = vrot.lane.b32.xlu0 %v1782, 123
      %v3159 = vpop.permute.xlu0 %3158
      %3160 = vrot.lane.b32.xlu0 %v1797, 123
      %v3161 = vpop.permute.xlu0 %3160
      %3162 = vrot.lane.b32.xlu0 %v1812, 123
      %v3163 = vpop.permute.xlu0 %3162
      %3164 = vrot.lane.b32.xlu0 %v1827, 123
      %v3165 = vpop.permute.xlu0 %3164
      %3166 = vrot.lane.b32.xlu0 %v1842, 123
      %v3167 = vpop.permute.xlu0 %3166
      %3168 = vrot.lane.b32.xlu0 %v1857, 123
      %v3169 = vpop.permute.xlu0 %3168
      %3170 = vrot.lane.b32.xlu0 %v1872, 123
      %v3171 = vpop.permute.xlu0 %3170
      %3172 = vrot.lane.b32.xlu0 %v1887, 123
      %v3173 = vpop.permute.xlu0 %3172
      %3174 = vrot.lane.b32.xlu0 %v1902, 123
      %v3175 = vpop.permute.xlu0 %3174
      %3176 = vrot.lane.b32.xlu0 %v1917, 123
      %v3177 = vpop.permute.xlu0 %3176
      %3178 = vrot.lane.b32.xlu0 %v1932, 123
      %v3179 = vpop.permute.xlu0 %3178
      %3180 = vrot.lane.b32.xlu0 %v1947, 123
      %v3181 = vpop.permute.xlu0 %3180
      %3182 = vrot.lane.b32.xlu0 %v1962, 123
      %v3183 = vpop.permute.xlu0 %3182
      %3184 = vrot.lane.b32.xlu0 %v1977, 123
      %v3185 = vpop.permute.xlu0 %3184
      %3186 = vrot.lane.b32.xlu0 %v1992, 123
      %v3187 = vpop.permute.xlu0 %3186
      %3188 = vrot.lane.b32.xlu0 %v2007, 123
      %v3189 = vpop.permute.xlu0 %3188
      %3190 = vrot.lane.b32.xlu0 %v2022, 123
      %v3191 = vpop.permute.xlu0 %3190
      %3192 = vrot.lane.b32.xlu0 %v2037, 123
      %v3193 = vpop.permute.xlu0 %3192
      %3194 = vrot.lane.b32.xlu0 %v2052, 123
      %v3195 = vpop.permute.xlu0 %3194
      %3196 = vrot.lane.b32.xlu0 %v2067, 123
      %v3197 = vpop.permute.xlu0 %3196
      %3198 = vrot.lane.b32.xlu0 %v2082, 123
      %v3199 = vpop.permute.xlu0 %3198
      %3200 = vrot.lane.b32.xlu0 %v2097, 123
      %v3201 = vpop.permute.xlu0 %3200
      %3202 = vrot.lane.b32.xlu0 %v2112, 123
      %v3203 = vpop.permute.xlu0 %3202
      %3204 = vrot.lane.b32.xlu0 %v2127, 123
      %v3205 = vpop.permute.xlu0 %3204
      %3206 = vrot.lane.b32.xlu0 %v2142, 123
      %v3207 = vpop.permute.xlu0 %3206
      %3208 = vrot.lane.b32.xlu0 %v2157, 123
      %v3209 = vpop.permute.xlu0 %3208
      %3210 = vrot.lane.b32.xlu0 %v2172, 123
      %v3211 = vpop.permute.xlu0 %3210
      %3212 = vrot.lane.b32.xlu0 %v2187, 123
      %v3213 = vpop.permute.xlu0 %3212
      %3214 = vrot.lane.b32.xlu0 %v2202, 123
      %v3215 = vpop.permute.xlu0 %3214
      %vm3312 = vcmask 31744
      %3313 = vst.msk [vmem:[%s281] sm:$0xff] %vm3312, %v3025
      %3314 = vst.msk [vmem:[%s281 + $0x8] sm:$0xff] %vm3312, %v3027
      %3315 = vst.msk [vmem:[%s281 + $0x10] sm:$0xff] %vm3312, %v3029
      %3316 = vst.msk [vmem:[%s281 + $0x18] sm:$0xff] %vm3312, %v3031
      %3317 = vst.msk [vmem:[%s281 + $0x20] sm:$0xff] %vm3312, %v3033
      %3318 = vst.msk [vmem:[%s281 + $0x28] sm:$0xff] %vm3312, %v3035
      %3319 = vst.msk [vmem:[%s281 + $0x30] sm:$0xff] %vm3312, %v3037
      %3320 = vst.msk [vmem:[%s281 + $0x38] sm:$0xff] %vm3312, %v3039
      %3321 = vst.msk [vmem:[%s281 + $0x40] sm:$0xff] %vm3312, %v3041
      %3322 = vst.msk [vmem:[%s281 + $0x48] sm:$0xff] %vm3312, %v3043
      %3323 = vst.msk [vmem:[%s281 + $0x50] sm:$0xff] %vm3312, %v3045
      %3324 = vst.msk [vmem:[%s281 + $0x58] sm:$0xff] %vm3312, %v3047
      %3325 = vst.msk [vmem:[%s281 + $0x60] sm:$0xff] %vm3312, %v3049
      %3326 = vst.msk [vmem:[%s281 + $0x68] sm:$0xff] %vm3312, %v3051
      %3327 = vst.msk [vmem:[%s281 + $0x70] sm:$0xff] %vm3312, %v3053
      %3328 = vst.msk [vmem:[%s281 + $0x78] sm:$0xff] %vm3312, %v3055
      %3329 = vst.msk [vmem:[%s281 + $0x80] sm:$0xff] %vm3312, %v3057
      %3330 = vst.msk [vmem:[%s281 + $0x88] sm:$0xff] %vm3312, %v3059
      %3331 = vst.msk [vmem:[%s281 + $0x90] sm:$0xff] %vm3312, %v3061
      %3332 = vst.msk [vmem:[%s281 + $0x98] sm:$0xff] %vm3312, %v3063
      %3333 = vst.msk [vmem:[%s281 + $0xa0] sm:$0xff] %vm3312, %v3065
      %3334 = vst.msk [vmem:[%s281 + $0xa8] sm:$0xff] %vm3312, %v3067
      %3335 = vst.msk [vmem:[%s281 + $0xb0] sm:$0xff] %vm3312, %v3069
      %3336 = vst.msk [vmem:[%s281 + $0xb8] sm:$0xff] %vm3312, %v3071
      %3337 = vst.msk [vmem:[%s281 + $0xc0] sm:$0xff] %vm3312, %v3073
      %3338 = vst.msk [vmem:[%s281 + $0xc8] sm:$0xff] %vm3312, %v3075
      %3339 = vst.msk [vmem:[%s281 + $0xd0] sm:$0xff] %vm3312, %v3077
      %3340 = vst.msk [vmem:[%s281 + $0xd8] sm:$0xff] %vm3312, %v3079
      %3341 = vst.msk [vmem:[%s281 + $0xe0] sm:$0xff] %vm3312, %v3081
      %3342 = vst.msk [vmem:[%s281 + $0xe8] sm:$0xff] %vm3312, %v3083
      %3343 = vst.msk [vmem:[%s281 + $0xf0] sm:$0xff] %vm3312, %v3085
      %3344 = vst.msk [vmem:[%s281 + $0xf8] sm:$0xff] %vm3312, %v3087
      %3345 = vst.msk [vmem:[%s281 + $0x100] sm:$0xff] %vm3312, %v3089
      %3346 = vst.msk [vmem:[%s281 + $0x108] sm:$0xff] %vm3312, %v3091
      %3347 = vst.msk [vmem:[%s281 + $0x110] sm:$0xff] %vm3312, %v3093
      %3348 = vst.msk [vmem:[%s281 + $0x118] sm:$0xff] %vm3312, %v3095
      %3349 = vst.msk [vmem:[%s281 + $0x120] sm:$0xff] %vm3312, %v3097
      %3350 = vst.msk [vmem:[%s281 + $0x128] sm:$0xff] %vm3312, %v3099
      %3351 = vst.msk [vmem:[%s281 + $0x130] sm:$0xff] %vm3312, %v3101
      %3352 = vst.msk [vmem:[%s281 + $0x138] sm:$0xff] %vm3312, %v3103
      %3353 = vst.msk [vmem:[%s281 + $0x140] sm:$0xff] %vm3312, %v3105
      %3354 = vst.msk [vmem:[%s281 + $0x148] sm:$0xff] %vm3312, %v3107
      %3355 = vst.msk [vmem:[%s281 + $0x150] sm:$0xff] %vm3312, %v3109
      %3356 = vst.msk [vmem:[%s281 + $0x158] sm:$0xff] %vm3312, %v3111
      %3357 = vst.msk [vmem:[%s281 + $0x160] sm:$0xff] %vm3312, %v3113
      %3358 = vst.msk [vmem:[%s281 + $0x168] sm:$0xff] %vm3312, %v3115
      %3359 = vst.msk [vmem:[%s281 + $0x170] sm:$0xff] %vm3312, %v3117
      %3360 = vst.msk [vmem:[%s281 + $0x178] sm:$0xff] %vm3312, %v3119
      %3361 = vst.msk [vmem:[%s281 + $0x180] sm:$0xff] %vm3312, %v3121
      %3362 = vst.msk [vmem:[%s281 + $0x188] sm:$0xff] %vm3312, %v3123
      %3363 = vst.msk [vmem:[%s281 + $0x190] sm:$0xff] %vm3312, %v3125
      %3364 = vst.msk [vmem:[%s281 + $0x198] sm:$0xff] %vm3312, %v3127
      %3365 = vst.msk [vmem:[%s281 + $0x1a0] sm:$0xff] %vm3312, %v3129
      %3366 = vst.msk [vmem:[%s281 + $0x1a8] sm:$0xff] %vm3312, %v3131
      %3367 = vst.msk [vmem:[%s281 + $0x1b0] sm:$0xff] %vm3312, %v3133
      %3368 = vst.msk [vmem:[%s281 + $0x1b8] sm:$0xff] %vm3312, %v3135
      %3369 = vst.msk [vmem:[%s281 + $0x1c0] sm:$0xff] %vm3312, %v3137
      %3370 = vst.msk [vmem:[%s281 + $0x1c8] sm:$0xff] %vm3312, %v3139
      %3371 = vst.msk [vmem:[%s281 + $0x1d0] sm:$0xff] %vm3312, %v3141
      %3372 = vst.msk [vmem:[%s281 + $0x1d8] sm:$0xff] %vm3312, %v3143
      %3373 = vst.msk [vmem:[%s281 + $0x1e0] sm:$0xff] %vm3312, %v3145
      %3374 = vst.msk [vmem:[%s281 + $0x1e8] sm:$0xff] %vm3312, %v3147
      %3375 = vst.msk [vmem:[%s281 + $0x1f0] sm:$0xff] %vm3312, %v3149
      %3376 = vst.msk [vmem:[%s281 + $0x1f8] sm:$0xff] %vm3312, %v3151
      %3377 = vst.msk [vmem:[%s281 + $0x200] sm:$0xff] %vm3312, %v3153
      %3378 = vst.msk [vmem:[%s281 + $0x208] sm:$0xff] %vm3312, %v3155
      %3379 = vst.msk [vmem:[%s281 + $0x210] sm:$0xff] %vm3312, %v3157
      %3380 = vst.msk [vmem:[%s281 + $0x218] sm:$0xff] %vm3312, %v3159
      %3381 = vst.msk [vmem:[%s281 + $0x220] sm:$0xff] %vm3312, %v3161
      %3382 = vst.msk [vmem:[%s281 + $0x228] sm:$0xff] %vm3312, %v3163
      %3383 = vst.msk [vmem:[%s281 + $0x230] sm:$0xff] %vm3312, %v3165
      %3384 = vst.msk [vmem:[%s281 + $0x238] sm:$0xff] %vm3312, %v3167
      %3385 = vst.msk [vmem:[%s281 + $0x240] sm:$0xff] %vm3312, %v3169
      %3386 = vst.msk [vmem:[%s281 + $0x248] sm:$0xff] %vm3312, %v3171
      %3387 = vst.msk [vmem:[%s281 + $0x250] sm:$0xff] %vm3312, %v3173
      %3388 = vst.msk [vmem:[%s281 + $0x258] sm:$0xff] %vm3312, %v3175
      %3389 = vst.msk [vmem:[%s281 + $0x260] sm:$0xff] %vm3312, %v3177
      %3390 = vst.msk [vmem:[%s281 + $0x268] sm:$0xff] %vm3312, %v3179
      %3391 = vst.msk [vmem:[%s281 + $0x270] sm:$0xff] %vm3312, %v3181
      %3392 = vst.msk [vmem:[%s281 + $0x278] sm:$0xff] %vm3312, %v3183
      %3393 = vst.msk [vmem:[%s281 + $0x280] sm:$0xff] %vm3312, %v3185
      %3394 = vst.msk [vmem:[%s281 + $0x288] sm:$0xff] %vm3312, %v3187
      %3395 = vst.msk [vmem:[%s281 + $0x290] sm:$0xff] %vm3312, %v3189
      %3396 = vst.msk [vmem:[%s281 + $0x298] sm:$0xff] %vm3312, %v3191
      %3397 = vst.msk [vmem:[%s281 + $0x2a0] sm:$0xff] %vm3312, %v3193
      %3398 = vst.msk [vmem:[%s281 + $0x2a8] sm:$0xff] %vm3312, %v3195
      %3399 = vst.msk [vmem:[%s281 + $0x2b0] sm:$0xff] %vm3312, %v3197
      %3400 = vst.msk [vmem:[%s281 + $0x2b8] sm:$0xff] %vm3312, %v3199
      %3401 = vst.msk [vmem:[%s281 + $0x2c0] sm:$0xff] %vm3312, %v3201
      %3402 = vst.msk [vmem:[%s281 + $0x2c8] sm:$0xff] %vm3312, %v3203
      %3403 = vst.msk [vmem:[%s281 + $0x2d0] sm:$0xff] %vm3312, %v3205
      %3404 = vst.msk [vmem:[%s281 + $0x2d8] sm:$0xff] %vm3312, %v3207
      %3405 = vst.msk [vmem:[%s281 + $0x2e0] sm:$0xff] %vm3312, %v3209
      %3406 = vst.msk [vmem:[%s281 + $0x2e8] sm:$0xff] %vm3312, %v3211
      %3407 = vst.msk [vmem:[%s281 + $0x2f0] sm:$0xff] %vm3312, %v3213
      %3408 = vst.msk [vmem:[%s281 + $0x2f8] sm:$0xff] %vm3312, %v3215
      %s3409 = smul.u32 32, %s21
      %p3410 = scmp.lt.s32.totalorder %s20, 1
      %s3411 = scalar_select %p3410, %s20, 1
      %p3412 = scmp.lt.s32.totalorder %s3409, 31
      %s3413 = scalar_select %p3412, %s3409, 31
      %s3414 = smul.addr %s3411, 96
      %s3415 = sadd.s32 %s3413, %s3414
      %s3416 = smul.addr %s3415, 8
      %s3417 = scalar_lea.vmem %s3, %s3416
      %s3418 = smul.u32 32, %s21
      %p3419 = scmp.lt.s32.totalorder %s20, 1
      %s3420 = scalar_select %p3419, %s20, 1
      %p3421 = scmp.lt.s32.totalorder %s3418, 31
      %s3422 = scalar_select %p3421, %s3418, 31
      %s3423 = smul.addr %s3420, 96
      %s3424 = sadd.s32 %s3422, %s3423
      %s3425 = smul.addr %s3424, 8
      %s3426 = scalar_lea.vmem %s4, %s3425
      // Predicated region
      $region33: #{yolo_forward.1} parent=31 // pred_check
        %p3427 = pneg %p123
      $region34: #{yolo_forward.1} parent=31 // pred_check_branch
        %3429 = sbr.rel (%p3427) target = $region36
      $region35: #{yolo_forward.1} parent=31 // pred_region
        %s3430 = smul.u32 32, %s21
      $region36: #{yolo_forward.1} parent=31 // pred_fallthru
        _
      // Predicated region
      $region37: #{yolo_forward.1} parent=31 // pred_check
        %p3431 = pneg %p151
      $region38: #{yolo_forward.1} parent=31 // pred_check_branch
        %3433 = sbr.rel (%p3431) target = $region40
      $region39: #{yolo_forward.1} parent=31 // pred_region
        %s3434 = smul.u32 32, %s21
      $region40: #{yolo_forward.1} parent=31 // pred_fallthru
        _
    $region32: #{yolo_forward.1} parent=5 // pred_fallthru
      _
    %p3435 = scmp.le.s32.totalorder 2, %s11
    // Predicated region
    $region41: #{yolo_forward.1} parent=5 // pred_check
      %p3436 = pneg %p3435
    $region42: #{yolo_forward.1} parent=5 // pred_check_branch
      %3438 = sbr.rel (%p3436) target = $region44
    $region43: #{yolo_forward.1} parent=5 // pred_region
      %s3439 = ssub.s32 %s11, 2
      // Predicated region
      $region45: #{yolo_forward.1} parent=43 // pred_check
        %p3440 = pneg %p129
      $region46: #{yolo_forward.1} parent=43 // pred_check_branch
        %3442 = sbr.rel (%p3440) target = $region48
      $region47: #{yolo_forward.1} parent=43 // pred_region
        %s3443 = smul.u32 32, %s23
        %p3444 = scmp.lt.s32.totalorder %s22, 1
        %s3445 = scalar_select %p3444, %s22, 1
        %p3446 = scmp.lt.s32.totalorder %s3443, 31
        %s3447 = scalar_select %p3446, %s3443, 31
        %s3448 = smul.addr %s3445, 96
        %s3449 = sadd.s32 %s3447, %s3448
        %s3450 = smul.addr %s3449, 8
        %s3451 = scalar_lea.vmem %s3, %s3450
      $region48: #{yolo_forward.1} parent=43 // pred_fallthru
        _
      // Predicated region
      $region49: #{yolo_forward.1} parent=43 // pred_check
        %p3452 = pneg %p157
      $region50: #{yolo_forward.1} parent=43 // pred_check_branch
        %3454 = sbr.rel (%p3452) target = $region52
      $region51: #{yolo_forward.1} parent=43 // pred_region
        %s3455 = smul.u32 32, %s23
        %p3456 = scmp.lt.s32.totalorder %s22, 1
        %s3457 = scalar_select %p3456, %s22, 1
        %p3458 = scmp.lt.s32.totalorder %s3455, 31
        %s3459 = scalar_select %p3458, %s3455, 31
        %s3460 = smul.addr %s3457, 96
        %s3461 = sadd.s32 %s3459, %s3460
        %s3462 = smul.addr %s3461, 8
        %s3463 = scalar_lea.vmem %s4, %s3462
      $region52: #{yolo_forward.1} parent=43 // pred_fallthru
        _
    $region44: #{yolo_forward.1} parent=5 // pred_fallthru
      _
  $region6: #{yolo_forward.1} parent=0 // loop_footer
    %s15 = sadd.s32 1, %s11
  $region7: #{yolo_forward.1} parent=0 // loop_footer_branch
    %10 = sbr.rel target = $region3
  $region8: #{yolo_forward.1} parent=0 // loop_exit
    _

</llo_original>
